<compile_context>
chip_gen: v7x
topology: tpu7x:2x2x1
jax: 0.10.0
libtpu: 0.0.40
codegen_flags: <defaults>
</compile_context>

<pallas_src>
import math
from functools import lru_cache, partial

import numpy as np
import jax
import jax.numpy as jnp
from jax.experimental import pallas as pl
from jax.experimental.pallas import tpu as pltpu

N_NODES   = 8
IN_DIM    = 8
LATENT    = 8
HIDDEN    = 32
NUM_HEADS = 1          # original forward only works for 1 head (see note above)
T_STEPS   = 4          # target.size()[0]
GRU_SIZE  = N_NODES * LATENT
NEG_SLOPE = 0.01       # F.leaky_relu default


def make_planning_gat_kernel(n, lat, t_steps):
    g = n * lat

    def flat_row(mat):   # (n, lat) -> (1, n*lat), row-major (lane concat; Mosaic-safe)
        return jnp.concatenate([mat[i:i + 1, :] for i in range(n)], axis=1)

    def unflat(vec):     # (1, n*lat) -> (n, lat), row-major (sublane concat; Mosaic-safe)
        return jnp.concatenate([vec[:, i * lat:(i + 1) * lat] for i in range(n)], axis=0)
        # TODO(synk): compare against jnp.reshape / strided pltpu.roll relayouts via
        # pl.lower_as_mlir on hardware; slice+concat is kept because it is known to lower.

    def gat_core(z, s_dst, a_src_row, mask_bias):
        """Masked-softmax aggregation given z (n,L) and the per-dst score column (n,1)."""
        # (1, n) row of source scores via trans_b dot_general (no explicit transpose op).
        s_src = jax.lax.dot_general(a_src_row, z, (((1,), (1,)), ((), ())),
                                    preferred_element_type=jnp.float32)     # (1, n)
        e = s_dst + s_src                                                    # e[dst, src]
        e = jnp.maximum(e, NEG_SLOPE * e)                                    # leaky_relu
        e = e + mask_bias                                                    # mask non-edges
        m = jnp.max(e, axis=1, keepdims=True)
        p = jnp.exp(e - m)                          # masked entries underflow to exactly 0
        inv = pl.reciprocal(jnp.sum(p, axis=1, keepdims=True), approx=True)  # EUP slot
        alpha = p * inv
        # NOTE: a node with zero in-edges would give 0*inf; self-loops guarantee >=1 edge
        # (asserted host-side in pack_kernel_params).
        return jnp.dot(alpha, z, preferred_element_type=jnp.float32)        # (n, L)

    def kernel(temp_ref, mask_ref,
               w1e_ref, a1s_ref,
               w2e_ref, a2s_ref, bh2i_ref,
               wgru_ref, bgru_ref,
               wtail_ref, btail_ref,
               out_ref, h0_ref):
        # Hoist only the tiny loop-invariant operands (a few vregs each); the large GRU /
        # tail weights are read from their refs at point of use to keep live ranges short.
        mask = mask_ref[...]
        w1e, a1s = w1e_ref[...], a1s_ref[...]            # (in, L+1), (1, L)
        w2e, a2s = w2e_ref[...], a2s_ref[...]            # (L, 2L+1), (1, L)
        bh2i = bh2i_ref[...]                             # (1, in)
        bgru = bgru_ref[...]                             # (1, 4g)

        temp = temp_ref[...]
        hidden = jnp.zeros((1, g), jnp.float32)          # torch.zeros((1, 1, gru_size))
        out_m = jnp.zeros((n, lat), jnp.float32)

        for _ in range(t_steps):                         # statically unrolled recurrence
            # ---- layer1 = MultiHeadGATLayer(in_dim -> latent, 1 head) -------------------
            # One extended matmul gives z1 and the per-dst attention score column.
            z1e = jnp.dot(temp, w1e, preferred_element_type=jnp.float32)    # (n, L+1)
            h1 = gat_core(z1e[:, 0:lat], z1e[:, lat:lat + 1], a1s, mask)    # (n, L)

            # ---- GRU (1 step, 1 layer) with repacked weights ----------------------------
            # xh = [flatten(h1) | hidden]  (single lane-concat of n+1 pieces)
            xh = jnp.concatenate([h1[i:i + 1, :] for i in range(n)] + [hidden], axis=1)
            gates = jnp.dot(xh, wgru_ref[...],           # read ref at point of use
                            preferred_element_type=jnp.float32) + bgru      # (1, 4g)
            # col groups: [r (pre-summed) | z (pre-summed) | gi_n | gh_n]
            r   = jax.nn.sigmoid(gates[:, 0:g])
            zt  = jax.nn.sigmoid(gates[:, g:2 * g])
            nn_ = jnp.tanh(gates[:, 2 * g:3 * g] + r * gates[:, 3 * g:4 * g])
            h_flat = (1.0 - zt) * nn_ + zt * hidden
            # out == hid for seq_len=1, 1 layer -> one un-flatten serves both
            out_m = unflat(h_flat)                                          # (n, lat)

            # ---- layer2 GAT on hid, fused with temp = hid2in(out) -----------------------
            # columns: [w2t (0:L) | wh2i_t (L:2L) | w2t@a2_dst (2L:2L+1)]
            z2e = jnp.dot(out_m, w2e, preferred_element_type=jnp.float32)   # (n, 2L+1)
            hid_m = gat_core(z2e[:, 0:lat], z2e[:, 2 * lat:2 * lat + 1], a2s, mask)
            hidden = flat_row(hid_m)                                        # next GRU state
            temp = z2e[:, lat:2 * lat] + bh2i                               # hid2in(out)

        # h0 = hid3(hid2(hid1(hidden))) -- no activations, folded host-side into one affine
        h0 = jnp.dot(hidden, wtail_ref[...],
                     preferred_element_type=jnp.float32) + btail_ref[...]

        out_ref[...] = out_m
        h0_ref[...] = h0

    return kernel


def pack_kernel_params(params, adj):
    """Host-side, one-time packing (NOT on the per-call path).

    - w1_ext / w2_ext : GAT fc weight with the per-dst attention column (and, for layer 2,
      the hid2in weight) appended, so score/temp come out of the feature matmul for free.
    - w_gru / b_gru   : GRU weights repacked so the r and z gates of W_ih / W_hh are stacked
      (summed by the matmul) and their biases pre-added; only the n gate stays split.
    - w_tail / b_tail : hid1->hid2->hid3 collapsed into a single affine map.
    """
    adj_np = np.asarray(adj)
    assert np.all(adj_np.sum(axis=1) >= 1.0), \
        "every destination node needs >=1 in-edge (self-loop), else softmax is 0/0"

    g = GRU_SIZE
    wih_t, whh_t = params["wih_t"], params["whh_t"]      # (g, 3g), cols ordered [r | z | n]
    zcol = jnp.zeros((g, g), jnp.float32)
    w_gru = jnp.concatenate(
        [jnp.concatenate([wih_t[:, 0:g], wih_t[:, g:2 * g], wih_t[:, 2 * g:3 * g], zcol], axis=1),
         jnp.concatenate([whh_t[:, 0:g], whh_t[:, g:2 * g], zcol, whh_t[:, 2 * g:3 * g]], axis=1)],
        axis=0)                                                              # (2g, 4g)
    b_ih, b_hh = params["b_ih"], params["b_hh"]
    b_gru = jnp.concatenate([b_ih[:, 0:g] + b_hh[:, 0:g],
                             b_ih[:, g:2 * g] + b_hh[:, g:2 * g],
                             b_ih[:, 2 * g:3 * g], b_hh[:, 2 * g:3 * g]], axis=1)   # (1, 4g)

    w_tail = params["w1h_t"] @ params["w2h_t"] @ params["w3h_t"]            # (g, HIDDEN)
    b_tail = (params["b1"] @ params["w2h_t"] @ params["w3h_t"]
              + params["b2"] @ params["w3h_t"] + params["b3"])              # (1, HIDDEN)

    a1_dst_col = params["a1"][1:2, :].T
    a2_dst_col = params["a2"][1:2, :].T
    w1_ext = jnp.concatenate([params["w1_t"], params["w1_t"] @ a1_dst_col], axis=1)  # (in, L+1)
    w2_ext = jnp.concatenate([params["w2_t"], params["wh2i_t"],
                              params["w2_t"] @ a2_dst_col], axis=1)                  # (L, 2L+1)

    return {
        "mask_bias": jnp.where(adj > 0.0, 0.0, -1e30).astype(jnp.float32),
        "w1_ext": w1_ext, "a1_src": params["a1"][0:1, :],
        "w2_ext": w2_ext, "a2_src": params["a2"][0:1, :], "b_h2i": params["b_h2i"],
        "w_gru": w_gru, "b_gru": b_gru,
        "w_tail": w_tail, "b_tail": b_tail,
    }


@lru_cache(maxsize=None)
def _build_planning_gat_call(t_steps):
    """Cached pallas_call (one trace per distinct t_steps)."""
    kernel = make_planning_gat_kernel(N_NODES, LATENT, t_steps)
    n_in = 11
    # TODO(synk): if a batch of graphs/initial states ever exists, add a leading "parallel"
    # grid axis so v7x can shard it across its 2 TensorCores; single forward has no batch.
    return pl.pallas_call(
        kernel,
        out_shape=(jax.ShapeDtypeStruct((N_NODES, LATENT), jnp.float32),
                   jax.ShapeDtypeStruct((1, HIDDEN), jnp.float32)),
        in_specs=[pl.BlockSpec(memory_space=pltpu.MemorySpace.VMEM)] * n_in,
        out_specs=(pl.BlockSpec(memory_space=pltpu.MemorySpace.VMEM),
                   pl.BlockSpec(memory_space=pltpu.MemorySpace.VMEM)),
    )


@partial(jax.jit, static_argnames=("t_steps",))
def _planning_gat_jit(temp0, kp, t_steps):
    call = _build_planning_gat_call(t_steps)
    out, h0 = call(temp0, kp["mask_bias"],
                   kp["w1_ext"], kp["a1_src"],
                   kp["w2_ext"], kp["a2_src"], kp["b_h2i"],
                   kp["w_gru"], kp["b_gru"],
                   kp["w_tail"], kp["b_tail"])
    return out, h0.reshape(1, 1, HIDDEN)


def planning_gat_forward(h, target, packed_params):
    temp0 = h[0]                                  # temp = h[0]
    t_steps = int(target.shape[0])                # only target.size()[0] is used
    return _planning_gat_jit(temp0, packed_params, t_steps)


# ------------------------- pure-JAX reference (for verification) -------------------------

def _gat_ref(x, w_t, a2, adj):
    z = x @ w_t
    s_src = z @ a2[0:1, :].T
    s_dst = z @ a2[1:2, :].T
    e = s_dst + s_src.T
    e = jnp.where(e >= 0.0, e, NEG_SLOPE * e)
    e = jnp.where(adj > 0.0, e, -1e30)
    m = jnp.max(e, axis=1, keepdims=True)
    p = jnp.exp(e - m) * adj
    alpha = p / jnp.sum(p, axis=1, keepdims=True)
    return alpha @ z


def planning_gat_reference(h, target, params, adj):
    g = GRU_SIZE
    temp = h[0]
    hidden = jnp.zeros((1, g), jnp.float32)
    out_m = jnp.zeros((N_NODES, LATENT), jnp.float32)
    for _ in range(int(target.shape[0])):
        h1 = _gat_ref(temp, params["w1_t"], params["a1"], adj)
        x = h1.reshape(1, g)
        gi = x @ params["wih_t"] + params["b_ih"]
        gh = hidden @ params["whh_t"] + params["b_hh"]
        r   = jax.nn.sigmoid(gi[:, 0:g] + gh[:, 0:g])
        zt  = jax.nn.sigmoid(gi[:, g:2 * g] + gh[:, g:2 * g])
        nn_ = jnp.tanh(gi[:, 2 * g:3 * g] + r * gh[:, 2 * g:3 * g])
        h_flat = (1.0 - zt) * nn_ + zt * hidden
        out_m = h_flat.reshape(N_NODES, LATENT)
        hidden = _gat_ref(out_m, params["w2_t"], params["a2"], adj).reshape(1, g)
        temp = out_m @ params["wh2i_t"] + params["b_h2i"]
    h0 = hidden @ params["w1h_t"] + params["b1"]
    h0 = h0 @ params["w2h_t"] + params["b2"]
    h0 = h0 @ params["w3h_t"] + params["b3"]
    return out_m, h0.reshape(1, 1, HIDDEN)


# ------------------------------- deterministic parameters --------------------------------

def init_params(key):
    g = GRU_SIZE
    gain = math.sqrt(2.0)                       # nn.init.calculate_gain('relu')
    ks = jax.random.split(key, 16)

    def xavier(k, out_f, in_f):                 # xavier_normal_ on a (out, in) Linear weight
        std = gain * math.sqrt(2.0 / (in_f + out_f))
        return std * jax.random.normal(k, (out_f, in_f), jnp.float32)

    def uni(k, shape, fan_in):                  # PyTorch default Linear/GRU init
        b = 1.0 / math.sqrt(fan_in)
        return jax.random.uniform(k, shape, jnp.float32, -b, b)

    w1 = xavier(ks[0], LATENT, IN_DIM)          # GAT layer1 fc        (latent, in_dim)
    a1 = xavier(ks[1], 1, 2 * LATENT)           # GAT layer1 attn_fc   (1, 2*latent)
    w2 = xavier(ks[2], LATENT, LATENT)          # GAT layer2 fc
    a2 = xavier(ks[3], 1, 2 * LATENT)           # GAT layer2 attn_fc
    w_ih = uni(ks[4], (3 * g, g), g); b_ih = uni(ks[5], (3 * g,), g)
    w_hh = uni(ks[6], (3 * g, g), g); b_hh = uni(ks[7], (3 * g,), g)
    w_h2i = uni(ks[8], (IN_DIM, LATENT), LATENT); b_h2i = uni(ks[9], (IN_DIM,), LATENT)
    w_h1 = uni(ks[10], (HIDDEN, g), g);           b1 = uni(ks[11], (HIDDEN,), g)
    w_h2 = uni(ks[12], (HIDDEN, HIDDEN), HIDDEN); b2 = uni(ks[13], (HIDDEN,), HIDDEN)
    w_h3 = uni(ks[14], (HIDDEN, HIDDEN), HIDDEN); b3 = uni(ks[15], (HIDDEN,), HIDDEN)

    return {
        "w1_t": w1.T,
        "a1":   jnp.stack([a1[0, :LATENT], a1[0, LATENT:]], axis=0),   # (2, L): [src; dst]
        "w2_t": w2.T,
        "a2":   jnp.stack([a2[0, :LATENT], a2[0, LATENT:]], axis=0),
        "wih_t": w_ih.T, "whh_t": w_hh.T,
        "b_ih": b_ih.reshape(1, -1), "b_hh": b_hh.reshape(1, -1),
        "wh2i_t": w_h2i.T, "b_h2i": b_h2i.reshape(1, -1),
        "w1h_t": w_h1.T, "b1": b1.reshape(1, -1),
        "w2h_t": w_h2.T, "b2": b2.reshape(1, -1),
        "w3h_t": w_h3.T, "b3": b3.reshape(1, -1),
    }


def build_adjacency():
    # Deterministic synthetic graph (DGL `g` stand-in): ring + self-loops, adj[dst, src].
    adj = np.zeros((N_NODES, N_NODES), np.float32)
    for i in range(N_NODES):
        adj[i, i] = 1.0
        adj[i, (i - 1) % N_NODES] = 1.0
        adj[i, (i + 1) % N_NODES] = 1.0
    return jnp.asarray(adj)


if __name__ == "__main__":
    key = jax.random.PRNGKey(0)
    k_p, k_h, k_t = jax.random.split(key, 3)
    params = init_params(k_p)
    adj = build_adjacency()
    packed = pack_kernel_params(params, adj)     # one-time packing, off the per-call path
    h = jax.random.normal(k_h, (2, N_NODES, IN_DIM), jnp.float32)   # only h[0] is consumed
    target = jax.random.normal(k_t, (T_STEPS, 6), jnp.float32)      # only its length is used

    out, h0 = planning_gat_forward(h, target, packed)
    out, h0 = jax.block_until_ready((out, h0))
    # second call hits the jit / pallas_call cache (no re-trace, no re-pack)
    out, h0 = jax.block_until_ready(planning_gat_forward(h, target, packed))

    out_ref, h0_ref = planning_gat_reference(h, target, params, adj)
    assert out.shape == (N_NODES, LATENT) and h0.shape == (1, 1, HIDDEN)
    assert np.allclose(np.asarray(out), np.asarray(out_ref), rtol=5e-2, atol=5e-2)
    assert np.allclose(np.asarray(h0), np.asarray(h0_ref), rtol=5e-2, atol=5e-2)
    print("KERNEL_OK")
</pallas_src>

<mosaic_0001>
module attributes {stable_mosaic.version = 11 : i64} {
  func.func @kernel(%arg0: memref<8x8xf32, #tpu.memory_space<vmem>>, %arg1: memref<8x8xf32, #tpu.memory_space<vmem>>, %arg2: memref<8x9xf32, #tpu.memory_space<vmem>>, %arg3: memref<1x8xf32, #tpu.memory_space<vmem>>, %arg4: memref<8x17xf32, #tpu.memory_space<vmem>>, %arg5: memref<1x8xf32, #tpu.memory_space<vmem>>, %arg6: memref<1x8xf32, #tpu.memory_space<vmem>>, %arg7: memref<128x256xf32, #tpu.memory_space<vmem>>, %arg8: memref<1x256xf32, #tpu.memory_space<vmem>>, %arg9: memref<64x32xf32, #tpu.memory_space<vmem>>, %arg10: memref<1x32xf32, #tpu.memory_space<vmem>>, %arg11: memref<8x8xf32, #tpu.memory_space<vmem>>, %arg12: memref<1x32xf32, #tpu.memory_space<vmem>>) attributes {dimension_semantics = [], scalar_prefetch = 0 : i64, scratch_operands = 0 : i64, tpu.core_type = #tpu.core_type<tc>} {
    %c0 = arith.constant 0 : index
    %c0_0 = arith.constant 0 : index
    %0 = vector.load %arg1[%c0, %c0_0] : memref<8x8xf32, #tpu.memory_space<vmem>>, vector<8x8xf32>
    %c0_1 = arith.constant 0 : index
    %c0_2 = arith.constant 0 : index
    %1 = vector.load %arg2[%c0_1, %c0_2] : memref<8x9xf32, #tpu.memory_space<vmem>>, vector<8x9xf32>
    %c0_3 = arith.constant 0 : index
    %c0_4 = arith.constant 0 : index
    %2 = vector.load %arg3[%c0_3, %c0_4] : memref<1x8xf32, #tpu.memory_space<vmem>>, vector<1x8xf32>
    %c0_5 = arith.constant 0 : index
    %c0_6 = arith.constant 0 : index
    %3 = vector.load %arg4[%c0_5, %c0_6] : memref<8x17xf32, #tpu.memory_space<vmem>>, vector<8x17xf32>
    %c0_7 = arith.constant 0 : index
    %c0_8 = arith.constant 0 : index
    %4 = vector.load %arg5[%c0_7, %c0_8] : memref<1x8xf32, #tpu.memory_space<vmem>>, vector<1x8xf32>
    %c0_9 = arith.constant 0 : index
    %c0_10 = arith.constant 0 : index
    %5 = vector.load %arg6[%c0_9, %c0_10] : memref<1x8xf32, #tpu.memory_space<vmem>>, vector<1x8xf32>
    %c0_11 = arith.constant 0 : index
    %c0_12 = arith.constant 0 : index
    %6 = vector.load %arg8[%c0_11, %c0_12] : memref<1x256xf32, #tpu.memory_space<vmem>>, vector<1x256xf32>
    %c0_13 = arith.constant 0 : index
    %c0_14 = arith.constant 0 : index
    %7 = vector.load %arg0[%c0_13, %c0_14] : memref<8x8xf32, #tpu.memory_space<vmem>>, vector<8x8xf32>
    %cst = arith.constant 0.000000e+00 : f32
    %8 = vector.broadcast %cst : f32 to vector<1x64xf32>
    %cst_15 = arith.constant dense<0.000000e+00> : vector<8x9xf32>
    %9 = tpu.matmul %7, %1, %cst_15 {dimension_numbers = #tpu.dot_dimension_numbers<[1], [0], [0], [1], [0, 0, 1, 1], [], []>} : vector<8x8xf32>, vector<8x9xf32>, vector<8x9xf32> -> vector<8x9xf32>
    %10 = vector.extract_strided_slice %9 {offsets = [0, 0], sizes = [8, 8], strides = [1, 1]} : vector<8x9xf32> to vector<8x8xf32>
    %11 = vector.extract_strided_slice %9 {offsets = [0, 8], sizes = [8, 1], strides = [1, 1]} : vector<8x9xf32> to vector<8x1xf32>
    %cst_16 = arith.constant dense<0.000000e+00> : vector<1x8xf32>
    %12 = tpu.matmul %2, %10, %cst_16 {dimension_numbers = #tpu.dot_dimension_numbers<[1], [1], [0], [0], [0, 0, 1, 0], [], []>} : vector<1x8xf32>, vector<8x8xf32>, vector<1x8xf32> -> vector<1x8xf32>
    %13 = vector.broadcast %11 : vector<8x1xf32> to vector<8x8xf32>
    %14 = vector.broadcast %12 : vector<1x8xf32> to vector<8x8xf32>
    %15 = arith.addf %13, %14 : vector<8x8xf32>
    %cst_17 = arith.constant 0.00999999977 : f32
    %16 = vector.broadcast %cst_17 : f32 to vector<8x8xf32>
    %17 = arith.mulf %16, %15 : vector<8x8xf32>
    %18 = arith.maximumf %15, %17 : vector<8x8xf32>
    %19 = arith.addf %18, %0 : vector<8x8xf32>
    %cst_18 = arith.constant dense<0xFF800000> : vector<8xf32>
    %20 = vector.multi_reduction <maximumf>, %19, %cst_18 [1] : vector<8x8xf32> to vector<8xf32>
    %21 = vector.shape_cast %20 : vector<8xf32> to vector<8x1xf32>
    %22 = vector.broadcast %21 : vector<8x1xf32> to vector<8x8xf32>
    %23 = arith.subf %19, %22 : vector<8x8xf32>
    %24 = math.exp %23 : vector<8x8xf32>
    %cst_19 = arith.constant dense<0.000000e+00> : vector<8xf32>
    %25 = vector.multi_reduction <add>, %24, %cst_19 [1] : vector<8x8xf32> to vector<8xf32>
    %26 = vector.shape_cast %25 : vector<8xf32> to vector<8x1xf32>
    %27 = tpu.reciprocal %26 {approx = true} : vector<8x1xf32> -> vector<8x1xf32>
    %28 = vector.broadcast %27 : vector<8x1xf32> to vector<8x8xf32>
    %29 = arith.mulf %24, %28 : vector<8x8xf32>
    %cst_20 = arith.constant dense<0.000000e+00> : vector<8x8xf32>
    %30 = tpu.matmul %29, %10, %cst_20 {dimension_numbers = #tpu.dot_dimension_numbers<[1], [0], [0], [1], [0, 0, 1, 1], [], []>} : vector<8x8xf32>, vector<8x8xf32>, vector<8x8xf32> -> vector<8x8xf32>
    %31 = vector.extract_strided_slice %30 {offsets = [0, 0], sizes = [1, 8], strides = [1, 1]} : vector<8x8xf32> to vector<1x8xf32>
    %32 = vector.extract_strided_slice %30 {offsets = [1, 0], sizes = [1, 8], strides = [1, 1]} : vector<8x8xf32> to vector<1x8xf32>
    %33 = vector.extract_strided_slice %30 {offsets = [2, 0], sizes = [1, 8], strides = [1, 1]} : vector<8x8xf32> to vector<1x8xf32>
    %34 = vector.extract_strided_slice %30 {offsets = [3, 0], sizes = [1, 8], strides = [1, 1]} : vector<8x8xf32> to vector<1x8xf32>
    %35 = vector.extract_strided_slice %30 {offsets = [4, 0], sizes = [1, 8], strides = [1, 1]} : vector<8x8xf32> to vector<1x8xf32>
    %36 = vector.extract_strided_slice %30 {offsets = [5, 0], sizes = [1, 8], strides = [1, 1]} : vector<8x8xf32> to vector<1x8xf32>
    %37 = vector.extract_strided_slice %30 {offsets = [6, 0], sizes = [1, 8], strides = [1, 1]} : vector<8x8xf32> to vector<1x8xf32>
    %38 = vector.extract_strided_slice %30 {offsets = [7, 0], sizes = [1, 8], strides = [1, 1]} : vector<8x8xf32> to vector<1x8xf32>
    %39 = tpu.concatenate %31, %32, %33, %34, %35, %36, %37, %38, %8 in 1 : vector<1x8xf32>, vector<1x8xf32>, vector<1x8xf32>, vector<1x8xf32>, vector<1x8xf32>, vector<1x8xf32>, vector<1x8xf32>, vector<1x8xf32>, vector<1x64xf32> -> vector<1x128xf32>
    %c0_21 = arith.constant 0 : index
    %c0_22 = arith.constant 0 : index
    %40 = vector.load %arg7[%c0_21, %c0_22] : memref<128x256xf32, #tpu.memory_space<vmem>>, vector<128x256xf32>
    %cst_23 = arith.constant dense<0.000000e+00> : vector<1x256xf32>
    %41 = tpu.matmul %39, %40, %cst_23 {dimension_numbers = #tpu.dot_dimension_numbers<[1], [0], [0], [1], [0, 0, 1, 1], [], []>} : vector<1x128xf32>, vector<128x256xf32>, vector<1x256xf32> -> vector<1x256xf32>
    %42 = arith.addf %41, %6 : vector<1x256xf32>
    %43 = vector.extract_strided_slice %42 {offsets = [0, 0], sizes = [1, 64], strides = [1, 1]} : vector<1x256xf32> to vector<1x64xf32>
    %44 = arith.negf %43 : vector<1x64xf32>
    %45 = math.exp %44 : vector<1x64xf32>
    %cst_24 = arith.constant 1.000000e+00 : f32
    %46 = vector.broadcast %cst_24 : f32 to vector<1x64xf32>
    %47 = arith.addf %46, %45 : vector<1x64xf32>
    %48 = arith.divf %46, %47 : vector<1x64xf32>
    %49 = vector.extract_strided_slice %42 {offsets = [0, 64], sizes = [1, 64], strides = [1, 1]} : vector<1x256xf32> to vector<1x64xf32>
    %50 = arith.negf %49 : vector<1x64xf32>
    %51 = math.exp %50 : vector<1x64xf32>
    %cst_25 = arith.constant 1.000000e+00 : f32
    %52 = vector.broadcast %cst_25 : f32 to vector<1x64xf32>
    %53 = arith.addf %52, %51 : vector<1x64xf32>
    %54 = arith.divf %52, %53 : vector<1x64xf32>
    %55 = vector.extract_strided_slice %42 {offsets = [0, 128], sizes = [1, 64], strides = [1, 1]} : vector<1x256xf32> to vector<1x64xf32>
    %56 = vector.extract_strided_slice %42 {offsets = [0, 192], sizes = [1, 64], strides = [1, 1]} : vector<1x256xf32> to vector<1x64xf32>
    %57 = arith.mulf %48, %56 : vector<1x64xf32>
    %58 = arith.addf %55, %57 : vector<1x64xf32>
    %59 = math.tanh %58 : vector<1x64xf32>
    %cst_26 = arith.constant 1.000000e+00 : f32
    %60 = vector.broadcast %cst_26 : f32 to vector<1x64xf32>
    %61 = arith.subf %60, %54 : vector<1x64xf32>
    %62 = arith.mulf %61, %59 : vector<1x64xf32>
    %63 = arith.mulf %54, %8 : vector<1x64xf32>
    %64 = arith.addf %62, %63 : vector<1x64xf32>
    %65 = vector.extract_strided_slice %64 {offsets = [0, 0], sizes = [1, 8], strides = [1, 1]} : vector<1x64xf32> to vector<1x8xf32>
    %66 = vector.extract_strided_slice %64 {offsets = [0, 8], sizes = [1, 8], strides = [1, 1]} : vector<1x64xf32> to vector<1x8xf32>
    %67 = vector.extract_strided_slice %64 {offsets = [0, 16], sizes = [1, 8], strides = [1, 1]} : vector<1x64xf32> to vector<1x8xf32>
    %68 = vector.extract_strided_slice %64 {offsets = [0, 24], sizes = [1, 8], strides = [1, 1]} : vector<1x64xf32> to vector<1x8xf32>
    %69 = vector.extract_strided_slice %64 {offsets = [0, 32], sizes = [1, 8], strides = [1, 1]} : vector<1x64xf32> to vector<1x8xf32>
    %70 = vector.extract_strided_slice %64 {offsets = [0, 40], sizes = [1, 8], strides = [1, 1]} : vector<1x64xf32> to vector<1x8xf32>
    %71 = vector.extract_strided_slice %64 {offsets = [0, 48], sizes = [1, 8], strides = [1, 1]} : vector<1x64xf32> to vector<1x8xf32>
    %72 = vector.extract_strided_slice %64 {offsets = [0, 56], sizes = [1, 8], strides = [1, 1]} : vector<1x64xf32> to vector<1x8xf32>
    %73 = tpu.concatenate %65, %66, %67, %68, %69, %70, %71, %72 in 0 : vector<1x8xf32>, vector<1x8xf32>, vector<1x8xf32>, vector<1x8xf32>, vector<1x8xf32>, vector<1x8xf32>, vector<1x8xf32>, vector<1x8xf32> -> vector<8x8xf32>
    %cst_27 = arith.constant dense<0.000000e+00> : vector<8x17xf32>
    %74 = tpu.matmul %73, %3, %cst_27 {dimension_numbers = #tpu.dot_dimension_numbers<[1], [0], [0], [1], [0, 0, 1, 1], [], []>} : vector<8x8xf32>, vector<8x17xf32>, vector<8x17xf32> -> vector<8x17xf32>
    %75 = vector.extract_strided_slice %74 {offsets = [0, 0], sizes = [8, 8], strides = [1, 1]} : vector<8x17xf32> to vector<8x8xf32>
    %76 = vector.extract_strided_slice %74 {offsets = [0, 16], sizes = [8, 1], strides = [1, 1]} : vector<8x17xf32> to vector<8x1xf32>
    %cst_28 = arith.constant dense<0.000000e+00> : vector<1x8xf32>
    %77 = tpu.matmul %4, %75, %cst_28 {dimension_numbers = #tpu.dot_dimension_numbers<[1], [1], [0], [0], [0, 0, 1, 0], [], []>} : vector<1x8xf32>, vector<8x8xf32>, vector<1x8xf32> -> vector<1x8xf32>
    %78 = vector.broadcast %76 : vector<8x1xf32> to vector<8x8xf32>
    %79 = vector.broadcast %77 : vector<1x8xf32> to vector<8x8xf32>
    %80 = arith.addf %78, %79 : vector<8x8xf32>
    %cst_29 = arith.constant 0.00999999977 : f32
    %81 = vector.broadcast %cst_29 : f32 to vector<8x8xf32>
    %82 = arith.mulf %81, %80 : vector<8x8xf32>
    %83 = arith.maximumf %80, %82 : vector<8x8xf32>
    %84 = arith.addf %83, %0 : vector<8x8xf32>
    %cst_30 = arith.constant dense<0xFF800000> : vector<8xf32>
    %85 = vector.multi_reduction <maximumf>, %84, %cst_30 [1] : vector<8x8xf32> to vector<8xf32>
    %86 = vector.shape_cast %85 : vector<8xf32> to vector<8x1xf32>
    %87 = vector.broadcast %86 : vector<8x1xf32> to vector<8x8xf32>
    %88 = arith.subf %84, %87 : vector<8x8xf32>
    %89 = math.exp %88 : vector<8x8xf32>
    %cst_31 = arith.constant dense<0.000000e+00> : vector<8xf32>
    %90 = vector.multi_reduction <add>, %89, %cst_31 [1] : vector<8x8xf32> to vector<8xf32>
    %91 = vector.shape_cast %90 : vector<8xf32> to vector<8x1xf32>
    %92 = tpu.reciprocal %91 {approx = true} : vector<8x1xf32> -> vector<8x1xf32>
    %93 = vector.broadcast %92 : vector<8x1xf32> to vector<8x8xf32>
    %94 = arith.mulf %89, %93 : vector<8x8xf32>
    %cst_32 = arith.constant dense<0.000000e+00> : vector<8x8xf32>
    %95 = tpu.matmul %94, %75, %cst_32 {dimension_numbers = #tpu.dot_dimension_numbers<[1], [0], [0], [1], [0, 0, 1, 1], [], []>} : vector<8x8xf32>, vector<8x8xf32>, vector<8x8xf32> -> vector<8x8xf32>
    %96 = vector.extract_strided_slice %95 {offsets = [0, 0], sizes = [1, 8], strides = [1, 1]} : vector<8x8xf32> to vector<1x8xf32>
    %97 = vector.extract_strided_slice %95 {offsets = [1, 0], sizes = [1, 8], strides = [1, 1]} : vector<8x8xf32> to vector<1x8xf32>
    %98 = vector.extract_strided_slice %95 {offsets = [2, 0], sizes = [1, 8], strides = [1, 1]} : vector<8x8xf32> to vector<1x8xf32>
    %99 = vector.extract_strided_slice %95 {offsets = [3, 0], sizes = [1, 8], strides = [1, 1]} : vector<8x8xf32> to vector<1x8xf32>
    %100 = vector.extract_strided_slice %95 {offsets = [4, 0], sizes = [1, 8], strides = [1, 1]} : vector<8x8xf32> to vector<1x8xf32>
    %101 = vector.extract_strided_slice %95 {offsets = [5, 0], sizes = [1, 8], strides = [1, 1]} : vector<8x8xf32> to vector<1x8xf32>
    %102 = vector.extract_strided_slice %95 {offsets = [6, 0], sizes = [1, 8], strides = [1, 1]} : vector<8x8xf32> to vector<1x8xf32>
    %103 = vector.extract_strided_slice %95 {offsets = [7, 0], sizes = [1, 8], strides = [1, 1]} : vector<8x8xf32> to vector<1x8xf32>
    %104 = tpu.concatenate %96, %97, %98, %99, %100, %101, %102, %103 in 1 : vector<1x8xf32>, vector<1x8xf32>, vector<1x8xf32>, vector<1x8xf32>, vector<1x8xf32>, vector<1x8xf32>, vector<1x8xf32>, vector<1x8xf32> -> vector<1x64xf32>
    %105 = vector.extract_strided_slice %74 {offsets = [0, 8], sizes = [8, 8], strides = [1, 1]} : vector<8x17xf32> to vector<8x8xf32>
    %106 = vector.broadcast %5 : vector<1x8xf32> to vector<8x8xf32>
    %107 = arith.addf %105, %106 : vector<8x8xf32>
    %cst_33 = arith.constant dense<0.000000e+00> : vector<8x9xf32>
    %108 = tpu.matmul %107, %1, %cst_33 {dimension_numbers = #tpu.dot_dimension_numbers<[1], [0], [0], [1], [0, 0, 1, 1], [], []>} : vector<8x8xf32>, vector<8x9xf32>, vector<8x9xf32> -> vector<8x9xf32>
    %109 = vector.extract_strided_slice %108 {offsets = [0, 0], sizes = [8, 8], strides = [1, 1]} : vector<8x9xf32> to vector<8x8xf32>
    %110 = vector.extract_strided_slice %108 {offsets = [0, 8], sizes = [8, 1], strides = [1, 1]} : vector<8x9xf32> to vector<8x1xf32>
    %cst_34 = arith.constant dense<0.000000e+00> : vector<1x8xf32>
    %111 = tpu.matmul %2, %109, %cst_34 {dimension_numbers = #tpu.dot_dimension_numbers<[1], [1], [0], [0], [0, 0, 1, 0], [], []>} : vector<1x8xf32>, vector<8x8xf32>, vector<1x8xf32> -> vector<1x8xf32>
    %112 = vector.broadcast %110 : vector<8x1xf32> to vector<8x8xf32>
    %113 = vector.broadcast %111 : vector<1x8xf32> to vector<8x8xf32>
    %114 = arith.addf %112, %113 : vector<8x8xf32>
    %cst_35 = arith.constant 0.00999999977 : f32
    %115 = vector.broadcast %cst_35 : f32 to vector<8x8xf32>
    %116 = arith.mulf %115, %114 : vector<8x8xf32>
    %117 = arith.maximumf %114, %116 : vector<8x8xf32>
    %118 = arith.addf %117, %0 : vector<8x8xf32>
    %cst_36 = arith.constant dense<0xFF800000> : vector<8xf32>
    %119 = vector.multi_reduction <maximumf>, %118, %cst_36 [1] : vector<8x8xf32> to vector<8xf32>
    %120 = vector.shape_cast %119 : vector<8xf32> to vector<8x1xf32>
    %121 = vector.broadcast %120 : vector<8x1xf32> to vector<8x8xf32>
    %122 = arith.subf %118, %121 : vector<8x8xf32>
    %123 = math.exp %122 : vector<8x8xf32>
    %cst_37 = arith.constant dense<0.000000e+00> : vector<8xf32>
    %124 = vector.multi_reduction <add>, %123, %cst_37 [1] : vector<8x8xf32> to vector<8xf32>
    %125 = vector.shape_cast %124 : vector<8xf32> to vector<8x1xf32>
    %126 = tpu.reciprocal %125 {approx = true} : vector<8x1xf32> -> vector<8x1xf32>
    %127 = vector.broadcast %126 : vector<8x1xf32> to vector<8x8xf32>
    %128 = arith.mulf %123, %127 : vector<8x8xf32>
    %cst_38 = arith.constant dense<0.000000e+00> : vector<8x8xf32>
    %129 = tpu.matmul %128, %109, %cst_38 {dimension_numbers = #tpu.dot_dimension_numbers<[1], [0], [0], [1], [0, 0, 1, 1], [], []>} : vector<8x8xf32>, vector<8x8xf32>, vector<8x8xf32> -> vector<8x8xf32>
    %130 = vector.extract_strided_slice %129 {offsets = [0, 0], sizes = [1, 8], strides = [1, 1]} : vector<8x8xf32> to vector<1x8xf32>
    %131 = vector.extract_strided_slice %129 {offsets = [1, 0], sizes = [1, 8], strides = [1, 1]} : vector<8x8xf32> to vector<1x8xf32>
    %132 = vector.extract_strided_slice %129 {offsets = [2, 0], sizes = [1, 8], strides = [1, 1]} : vector<8x8xf32> to vector<1x8xf32>
    %133 = vector.extract_strided_slice %129 {offsets = [3, 0], sizes = [1, 8], strides = [1, 1]} : vector<8x8xf32> to vector<1x8xf32>
    %134 = vector.extract_strided_slice %129 {offsets = [4, 0], sizes = [1, 8], strides = [1, 1]} : vector<8x8xf32> to vector<1x8xf32>
    %135 = vector.extract_strided_slice %129 {offsets = [5, 0], sizes = [1, 8], strides = [1, 1]} : vector<8x8xf32> to vector<1x8xf32>
    %136 = vector.extract_strided_slice %129 {offsets = [6, 0], sizes = [1, 8], strides = [1, 1]} : vector<8x8xf32> to vector<1x8xf32>
    %137 = vector.extract_strided_slice %129 {offsets = [7, 0], sizes = [1, 8], strides = [1, 1]} : vector<8x8xf32> to vector<1x8xf32>
    %138 = tpu.concatenate %130, %131, %132, %133, %134, %135, %136, %137, %104 in 1 : vector<1x8xf32>, vector<1x8xf32>, vector<1x8xf32>, vector<1x8xf32>, vector<1x8xf32>, vector<1x8xf32>, vector<1x8xf32>, vector<1x8xf32>, vector<1x64xf32> -> vector<1x128xf32>
    %c0_39 = arith.constant 0 : index
    %c0_40 = arith.constant 0 : index
    %139 = vector.load %arg7[%c0_39, %c0_40] : memref<128x256xf32, #tpu.memory_space<vmem>>, vector<128x256xf32>
    %cst_41 = arith.constant dense<0.000000e+00> : vector<1x256xf32>
    %140 = tpu.matmul %138, %139, %cst_41 {dimension_numbers = #tpu.dot_dimension_numbers<[1], [0], [0], [1], [0, 0, 1, 1], [], []>} : vector<1x128xf32>, vector<128x256xf32>, vector<1x256xf32> -> vector<1x256xf32>
    %141 = arith.addf %140, %6 : vector<1x256xf32>
    %142 = vector.extract_strided_slice %141 {offsets = [0, 0], sizes = [1, 64], strides = [1, 1]} : vector<1x256xf32> to vector<1x64xf32>
    %143 = arith.negf %142 : vector<1x64xf32>
    %144 = math.exp %143 : vector<1x64xf32>
    %cst_42 = arith.constant 1.000000e+00 : f32
    %145 = vector.broadcast %cst_42 : f32 to vector<1x64xf32>
    %146 = arith.addf %145, %144 : vector<1x64xf32>
    %147 = arith.divf %145, %146 : vector<1x64xf32>
    %148 = vector.extract_strided_slice %141 {offsets = [0, 64], sizes = [1, 64], strides = [1, 1]} : vector<1x256xf32> to vector<1x64xf32>
    %149 = arith.negf %148 : vector<1x64xf32>
    %150 = math.exp %149 : vector<1x64xf32>
    %cst_43 = arith.constant 1.000000e+00 : f32
    %151 = vector.broadcast %cst_43 : f32 to vector<1x64xf32>
    %152 = arith.addf %151, %150 : vector<1x64xf32>
    %153 = arith.divf %151, %152 : vector<1x64xf32>
    %154 = vector.extract_strided_slice %141 {offsets = [0, 128], sizes = [1, 64], strides = [1, 1]} : vector<1x256xf32> to vector<1x64xf32>
    %155 = vector.extract_strided_slice %141 {offsets = [0, 192], sizes = [1, 64], strides = [1, 1]} : vector<1x256xf32> to vector<1x64xf32>
    %156 = arith.mulf %147, %155 : vector<1x64xf32>
    %157 = arith.addf %154, %156 : vector<1x64xf32>
    %158 = math.tanh %157 : vector<1x64xf32>
    %cst_44 = arith.constant 1.000000e+00 : f32
    %159 = vector.broadcast %cst_44 : f32 to vector<1x64xf32>
    %160 = arith.subf %159, %153 : vector<1x64xf32>
    %161 = arith.mulf %160, %158 : vector<1x64xf32>
    %162 = arith.mulf %153, %104 : vector<1x64xf32>
    %163 = arith.addf %161, %162 : vector<1x64xf32>
    %164 = vector.extract_strided_slice %163 {offsets = [0, 0], sizes = [1, 8], strides = [1, 1]} : vector<1x64xf32> to vector<1x8xf32>
    %165 = vector.extract_strided_slice %163 {offsets = [0, 8], sizes = [1, 8], strides = [1, 1]} : vector<1x64xf32> to vector<1x8xf32>
    %166 = vector.extract_strided_slice %163 {offsets = [0, 16], sizes = [1, 8], strides = [1, 1]} : vector<1x64xf32> to vector<1x8xf32>
    %167 = vector.extract_strided_slice %163 {offsets = [0, 24], sizes = [1, 8], strides = [1, 1]} : vector<1x64xf32> to vector<1x8xf32>
    %168 = vector.extract_strided_slice %163 {offsets = [0, 32], sizes = [1, 8], strides = [1, 1]} : vector<1x64xf32> to vector<1x8xf32>
    %169 = vector.extract_strided_slice %163 {offsets = [0, 40], sizes = [1, 8], strides = [1, 1]} : vector<1x64xf32> to vector<1x8xf32>
    %170 = vector.extract_strided_slice %163 {offsets = [0, 48], sizes = [1, 8], strides = [1, 1]} : vector<1x64xf32> to vector<1x8xf32>
    %171 = vector.extract_strided_slice %163 {offsets = [0, 56], sizes = [1, 8], strides = [1, 1]} : vector<1x64xf32> to vector<1x8xf32>
    %172 = tpu.concatenate %164, %165, %166, %167, %168, %169, %170, %171 in 0 : vector<1x8xf32>, vector<1x8xf32>, vector<1x8xf32>, vector<1x8xf32>, vector<1x8xf32>, vector<1x8xf32>, vector<1x8xf32>, vector<1x8xf32> -> vector<8x8xf32>
    %cst_45 = arith.constant dense<0.000000e+00> : vector<8x17xf32>
    %173 = tpu.matmul %172, %3, %cst_45 {dimension_numbers = #tpu.dot_dimension_numbers<[1], [0], [0], [1], [0, 0, 1, 1], [], []>} : vector<8x8xf32>, vector<8x17xf32>, vector<8x17xf32> -> vector<8x17xf32>
    %174 = vector.extract_strided_slice %173 {offsets = [0, 0], sizes = [8, 8], strides = [1, 1]} : vector<8x17xf32> to vector<8x8xf32>
    %175 = vector.extract_strided_slice %173 {offsets = [0, 16], sizes = [8, 1], strides = [1, 1]} : vector<8x17xf32> to vector<8x1xf32>
    %cst_46 = arith.constant dense<0.000000e+00> : vector<1x8xf32>
    %176 = tpu.matmul %4, %174, %cst_46 {dimension_numbers = #tpu.dot_dimension_numbers<[1], [1], [0], [0], [0, 0, 1, 0], [], []>} : vector<1x8xf32>, vector<8x8xf32>, vector<1x8xf32> -> vector<1x8xf32>
    %177 = vector.broadcast %175 : vector<8x1xf32> to vector<8x8xf32>
    %178 = vector.broadcast %176 : vector<1x8xf32> to vector<8x8xf32>
    %179 = arith.addf %177, %178 : vector<8x8xf32>
    %cst_47 = arith.constant 0.00999999977 : f32
    %180 = vector.broadcast %cst_47 : f32 to vector<8x8xf32>
    %181 = arith.mulf %180, %179 : vector<8x8xf32>
    %182 = arith.maximumf %179, %181 : vector<8x8xf32>
    %183 = arith.addf %182, %0 : vector<8x8xf32>
    %cst_48 = arith.constant dense<0xFF800000> : vector<8xf32>
    %184 = vector.multi_reduction <maximumf>, %183, %cst_48 [1] : vector<8x8xf32> to vector<8xf32>
    %185 = vector.shape_cast %184 : vector<8xf32> to vector<8x1xf32>
    %186 = vector.broadcast %185 : vector<8x1xf32> to vector<8x8xf32>
    %187 = arith.subf %183, %186 : vector<8x8xf32>
    %188 = math.exp %187 : vector<8x8xf32>
    %cst_49 = arith.constant dense<0.000000e+00> : vector<8xf32>
    %189 = vector.multi_reduction <add>, %188, %cst_49 [1] : vector<8x8xf32> to vector<8xf32>
    %190 = vector.shape_cast %189 : vector<8xf32> to vector<8x1xf32>
    %191 = tpu.reciprocal %190 {approx = true} : vector<8x1xf32> -> vector<8x1xf32>
    %192 = vector.broadcast %191 : vector<8x1xf32> to vector<8x8xf32>
    %193 = arith.mulf %188, %192 : vector<8x8xf32>
    %cst_50 = arith.constant dense<0.000000e+00> : vector<8x8xf32>
    %194 = tpu.matmul %193, %174, %cst_50 {dimension_numbers = #tpu.dot_dimension_numbers<[1], [0], [0], [1], [0, 0, 1, 1], [], []>} : vector<8x8xf32>, vector<8x8xf32>, vector<8x8xf32> -> vector<8x8xf32>
    %195 = vector.extract_strided_slice %194 {offsets = [0, 0], sizes = [1, 8], strides = [1, 1]} : vector<8x8xf32> to vector<1x8xf32>
    %196 = vector.extract_strided_slice %194 {offsets = [1, 0], sizes = [1, 8], strides = [1, 1]} : vector<8x8xf32> to vector<1x8xf32>
    %197 = vector.extract_strided_slice %194 {offsets = [2, 0], sizes = [1, 8], strides = [1, 1]} : vector<8x8xf32> to vector<1x8xf32>
    %198 = vector.extract_strided_slice %194 {offsets = [3, 0], sizes = [1, 8], strides = [1, 1]} : vector<8x8xf32> to vector<1x8xf32>
    %199 = vector.extract_strided_slice %194 {offsets = [4, 0], sizes = [1, 8], strides = [1, 1]} : vector<8x8xf32> to vector<1x8xf32>
    %200 = vector.extract_strided_slice %194 {offsets = [5, 0], sizes = [1, 8], strides = [1, 1]} : vector<8x8xf32> to vector<1x8xf32>
    %201 = vector.extract_strided_slice %194 {offsets = [6, 0], sizes = [1, 8], strides = [1, 1]} : vector<8x8xf32> to vector<1x8xf32>
    %202 = vector.extract_strided_slice %194 {offsets = [7, 0], sizes = [1, 8], strides = [1, 1]} : vector<8x8xf32> to vector<1x8xf32>
    %203 = tpu.concatenate %195, %196, %197, %198, %199, %200, %201, %202 in 1 : vector<1x8xf32>, vector<1x8xf32>, vector<1x8xf32>, vector<1x8xf32>, vector<1x8xf32>, vector<1x8xf32>, vector<1x8xf32>, vector<1x8xf32> -> vector<1x64xf32>
    %204 = vector.extract_strided_slice %173 {offsets = [0, 8], sizes = [8, 8], strides = [1, 1]} : vector<8x17xf32> to vector<8x8xf32>
    %205 = vector.broadcast %5 : vector<1x8xf32> to vector<8x8xf32>
    %206 = arith.addf %204, %205 : vector<8x8xf32>
    %cst_51 = arith.constant dense<0.000000e+00> : vector<8x9xf32>
    %207 = tpu.matmul %206, %1, %cst_51 {dimension_numbers = #tpu.dot_dimension_numbers<[1], [0], [0], [1], [0, 0, 1, 1], [], []>} : vector<8x8xf32>, vector<8x9xf32>, vector<8x9xf32> -> vector<8x9xf32>
    %208 = vector.extract_strided_slice %207 {offsets = [0, 0], sizes = [8, 8], strides = [1, 1]} : vector<8x9xf32> to vector<8x8xf32>
    %209 = vector.extract_strided_slice %207 {offsets = [0, 8], sizes = [8, 1], strides = [1, 1]} : vector<8x9xf32> to vector<8x1xf32>
    %cst_52 = arith.constant dense<0.000000e+00> : vector<1x8xf32>
    %210 = tpu.matmul %2, %208, %cst_52 {dimension_numbers = #tpu.dot_dimension_numbers<[1], [1], [0], [0], [0, 0, 1, 0], [], []>} : vector<1x8xf32>, vector<8x8xf32>, vector<1x8xf32> -> vector<1x8xf32>
    %211 = vector.broadcast %209 : vector<8x1xf32> to vector<8x8xf32>
    %212 = vector.broadcast %210 : vector<1x8xf32> to vector<8x8xf32>
    %213 = arith.addf %211, %212 : vector<8x8xf32>
    %cst_53 = arith.constant 0.00999999977 : f32
    %214 = vector.broadcast %cst_53 : f32 to vector<8x8xf32>
    %215 = arith.mulf %214, %213 : vector<8x8xf32>
    %216 = arith.maximumf %213, %215 : vector<8x8xf32>
    %217 = arith.addf %216, %0 : vector<8x8xf32>
    %cst_54 = arith.constant dense<0xFF800000> : vector<8xf32>
    %218 = vector.multi_reduction <maximumf>, %217, %cst_54 [1] : vector<8x8xf32> to vector<8xf32>
    %219 = vector.shape_cast %218 : vector<8xf32> to vector<8x1xf32>
    %220 = vector.broadcast %219 : vector<8x1xf32> to vector<8x8xf32>
    %221 = arith.subf %217, %220 : vector<8x8xf32>
    %222 = math.exp %221 : vector<8x8xf32>
    %cst_55 = arith.constant dense<0.000000e+00> : vector<8xf32>
    %223 = vector.multi_reduction <add>, %222, %cst_55 [1] : vector<8x8xf32> to vector<8xf32>
    %224 = vector.shape_cast %223 : vector<8xf32> to vector<8x1xf32>
    %225 = tpu.reciprocal %224 {approx = true} : vector<8x1xf32> -> vector<8x1xf32>
    %226 = vector.broadcast %225 : vector<8x1xf32> to vector<8x8xf32>
    %227 = arith.mulf %222, %226 : vector<8x8xf32>
    %cst_56 = arith.constant dense<0.000000e+00> : vector<8x8xf32>
    %228 = tpu.matmul %227, %208, %cst_56 {dimension_numbers = #tpu.dot_dimension_numbers<[1], [0], [0], [1], [0, 0, 1, 1], [], []>} : vector<8x8xf32>, vector<8x8xf32>, vector<8x8xf32> -> vector<8x8xf32>
    %229 = vector.extract_strided_slice %228 {offsets = [0, 0], sizes = [1, 8], strides = [1, 1]} : vector<8x8xf32> to vector<1x8xf32>
    %230 = vector.extract_strided_slice %228 {offsets = [1, 0], sizes = [1, 8], strides = [1, 1]} : vector<8x8xf32> to vector<1x8xf32>
    %231 = vector.extract_strided_slice %228 {offsets = [2, 0], sizes = [1, 8], strides = [1, 1]} : vector<8x8xf32> to vector<1x8xf32>
    %232 = vector.extract_strided_slice %228 {offsets = [3, 0], sizes = [1, 8], strides = [1, 1]} : vector<8x8xf32> to vector<1x8xf32>
    %233 = vector.extract_strided_slice %228 {offsets = [4, 0], sizes = [1, 8], strides = [1, 1]} : vector<8x8xf32> to vector<1x8xf32>
    %234 = vector.extract_strided_slice %228 {offsets = [5, 0], sizes = [1, 8], strides = [1, 1]} : vector<8x8xf32> to vector<1x8xf32>
    %235 = vector.extract_strided_slice %228 {offsets = [6, 0], sizes = [1, 8], strides = [1, 1]} : vector<8x8xf32> to vector<1x8xf32>
    %236 = vector.extract_strided_slice %228 {offsets = [7, 0], sizes = [1, 8], strides = [1, 1]} : vector<8x8xf32> to vector<1x8xf32>
    %237 = tpu.concatenate %229, %230, %231, %232, %233, %234, %235, %236, %203 in 1 : vector<1x8xf32>, vector<1x8xf32>, vector<1x8xf32>, vector<1x8xf32>, vector<1x8xf32>, vector<1x8xf32>, vector<1x8xf32>, vector<1x8xf32>, vector<1x64xf32> -> vector<1x128xf32>
    %c0_57 = arith.constant 0 : index
    %c0_58 = arith.constant 0 : index
    %238 = vector.load %arg7[%c0_57, %c0_58] : memref<128x256xf32, #tpu.memory_space<vmem>>, vector<128x256xf32>
    %cst_59 = arith.constant dense<0.000000e+00> : vector<1x256xf32>
    %239 = tpu.matmul %237, %238, %cst_59 {dimension_numbers = #tpu.dot_dimension_numbers<[1], [0], [0], [1], [0, 0, 1, 1], [], []>} : vector<1x128xf32>, vector<128x256xf32>, vector<1x256xf32> -> vector<1x256xf32>
    %240 = arith.addf %239, %6 : vector<1x256xf32>
    %241 = vector.extract_strided_slice %240 {offsets = [0, 0], sizes = [1, 64], strides = [1, 1]} : vector<1x256xf32> to vector<1x64xf32>
    %242 = arith.negf %241 : vector<1x64xf32>
    %243 = math.exp %242 : vector<1x64xf32>
    %cst_60 = arith.constant 1.000000e+00 : f32
    %244 = vector.broadcast %cst_60 : f32 to vector<1x64xf32>
    %245 = arith.addf %244, %243 : vector<1x64xf32>
    %246 = arith.divf %244, %245 : vector<1x64xf32>
    %247 = vector.extract_strided_slice %240 {offsets = [0, 64], sizes = [1, 64], strides = [1, 1]} : vector<1x256xf32> to vector<1x64xf32>
    %248 = arith.negf %247 : vector<1x64xf32>
    %249 = math.exp %248 : vector<1x64xf32>
    %cst_61 = arith.constant 1.000000e+00 : f32
    %250 = vector.broadcast %cst_61 : f32 to vector<1x64xf32>
    %251 = arith.addf %250, %249 : vector<1x64xf32>
    %252 = arith.divf %250, %251 : vector<1x64xf32>
    %253 = vector.extract_strided_slice %240 {offsets = [0, 128], sizes = [1, 64], strides = [1, 1]} : vector<1x256xf32> to vector<1x64xf32>
    %254 = vector.extract_strided_slice %240 {offsets = [0, 192], sizes = [1, 64], strides = [1, 1]} : vector<1x256xf32> to vector<1x64xf32>
    %255 = arith.mulf %246, %254 : vector<1x64xf32>
    %256 = arith.addf %253, %255 : vector<1x64xf32>
    %257 = math.tanh %256 : vector<1x64xf32>
    %cst_62 = arith.constant 1.000000e+00 : f32
    %258 = vector.broadcast %cst_62 : f32 to vector<1x64xf32>
    %259 = arith.subf %258, %252 : vector<1x64xf32>
    %260 = arith.mulf %259, %257 : vector<1x64xf32>
    %261 = arith.mulf %252, %203 : vector<1x64xf32>
    %262 = arith.addf %260, %261 : vector<1x64xf32>
    %263 = vector.extract_strided_slice %262 {offsets = [0, 0], sizes = [1, 8], strides = [1, 1]} : vector<1x64xf32> to vector<1x8xf32>
    %264 = vector.extract_strided_slice %262 {offsets = [0, 8], sizes = [1, 8], strides = [1, 1]} : vector<1x64xf32> to vector<1x8xf32>
    %265 = vector.extract_strided_slice %262 {offsets = [0, 16], sizes = [1, 8], strides = [1, 1]} : vector<1x64xf32> to vector<1x8xf32>
    %266 = vector.extract_strided_slice %262 {offsets = [0, 24], sizes = [1, 8], strides = [1, 1]} : vector<1x64xf32> to vector<1x8xf32>
    %267 = vector.extract_strided_slice %262 {offsets = [0, 32], sizes = [1, 8], strides = [1, 1]} : vector<1x64xf32> to vector<1x8xf32>
    %268 = vector.extract_strided_slice %262 {offsets = [0, 40], sizes = [1, 8], strides = [1, 1]} : vector<1x64xf32> to vector<1x8xf32>
    %269 = vector.extract_strided_slice %262 {offsets = [0, 48], sizes = [1, 8], strides = [1, 1]} : vector<1x64xf32> to vector<1x8xf32>
    %270 = vector.extract_strided_slice %262 {offsets = [0, 56], sizes = [1, 8], strides = [1, 1]} : vector<1x64xf32> to vector<1x8xf32>
    %271 = tpu.concatenate %263, %264, %265, %266, %267, %268, %269, %270 in 0 : vector<1x8xf32>, vector<1x8xf32>, vector<1x8xf32>, vector<1x8xf32>, vector<1x8xf32>, vector<1x8xf32>, vector<1x8xf32>, vector<1x8xf32> -> vector<8x8xf32>
    %cst_63 = arith.constant dense<0.000000e+00> : vector<8x17xf32>
    %272 = tpu.matmul %271, %3, %cst_63 {dimension_numbers = #tpu.dot_dimension_numbers<[1], [0], [0], [1], [0, 0, 1, 1], [], []>} : vector<8x8xf32>, vector<8x17xf32>, vector<8x17xf32> -> vector<8x17xf32>
    %273 = vector.extract_strided_slice %272 {offsets = [0, 0], sizes = [8, 8], strides = [1, 1]} : vector<8x17xf32> to vector<8x8xf32>
    %274 = vector.extract_strided_slice %272 {offsets = [0, 16], sizes = [8, 1], strides = [1, 1]} : vector<8x17xf32> to vector<8x1xf32>
    %cst_64 = arith.constant dense<0.000000e+00> : vector<1x8xf32>
    %275 = tpu.matmul %4, %273, %cst_64 {dimension_numbers = #tpu.dot_dimension_numbers<[1], [1], [0], [0], [0, 0, 1, 0], [], []>} : vector<1x8xf32>, vector<8x8xf32>, vector<1x8xf32> -> vector<1x8xf32>
    %276 = vector.broadcast %274 : vector<8x1xf32> to vector<8x8xf32>
    %277 = vector.broadcast %275 : vector<1x8xf32> to vector<8x8xf32>
    %278 = arith.addf %276, %277 : vector<8x8xf32>
    %cst_65 = arith.constant 0.00999999977 : f32
    %279 = vector.broadcast %cst_65 : f32 to vector<8x8xf32>
    %280 = arith.mulf %279, %278 : vector<8x8xf32>
    %281 = arith.maximumf %278, %280 : vector<8x8xf32>
    %282 = arith.addf %281, %0 : vector<8x8xf32>
    %cst_66 = arith.constant dense<0xFF800000> : vector<8xf32>
    %283 = vector.multi_reduction <maximumf>, %282, %cst_66 [1] : vector<8x8xf32> to vector<8xf32>
    %284 = vector.shape_cast %283 : vector<8xf32> to vector<8x1xf32>
    %285 = vector.broadcast %284 : vector<8x1xf32> to vector<8x8xf32>
    %286 = arith.subf %282, %285 : vector<8x8xf32>
    %287 = math.exp %286 : vector<8x8xf32>
    %cst_67 = arith.constant dense<0.000000e+00> : vector<8xf32>
    %288 = vector.multi_reduction <add>, %287, %cst_67 [1] : vector<8x8xf32> to vector<8xf32>
    %289 = vector.shape_cast %288 : vector<8xf32> to vector<8x1xf32>
    %290 = tpu.reciprocal %289 {approx = true} : vector<8x1xf32> -> vector<8x1xf32>
    %291 = vector.broadcast %290 : vector<8x1xf32> to vector<8x8xf32>
    %292 = arith.mulf %287, %291 : vector<8x8xf32>
    %cst_68 = arith.constant dense<0.000000e+00> : vector<8x8xf32>
    %293 = tpu.matmul %292, %273, %cst_68 {dimension_numbers = #tpu.dot_dimension_numbers<[1], [0], [0], [1], [0, 0, 1, 1], [], []>} : vector<8x8xf32>, vector<8x8xf32>, vector<8x8xf32> -> vector<8x8xf32>
    %294 = vector.extract_strided_slice %293 {offsets = [0, 0], sizes = [1, 8], strides = [1, 1]} : vector<8x8xf32> to vector<1x8xf32>
    %295 = vector.extract_strided_slice %293 {offsets = [1, 0], sizes = [1, 8], strides = [1, 1]} : vector<8x8xf32> to vector<1x8xf32>
    %296 = vector.extract_strided_slice %293 {offsets = [2, 0], sizes = [1, 8], strides = [1, 1]} : vector<8x8xf32> to vector<1x8xf32>
    %297 = vector.extract_strided_slice %293 {offsets = [3, 0], sizes = [1, 8], strides = [1, 1]} : vector<8x8xf32> to vector<1x8xf32>
    %298 = vector.extract_strided_slice %293 {offsets = [4, 0], sizes = [1, 8], strides = [1, 1]} : vector<8x8xf32> to vector<1x8xf32>
    %299 = vector.extract_strided_slice %293 {offsets = [5, 0], sizes = [1, 8], strides = [1, 1]} : vector<8x8xf32> to vector<1x8xf32>
    %300 = vector.extract_strided_slice %293 {offsets = [6, 0], sizes = [1, 8], strides = [1, 1]} : vector<8x8xf32> to vector<1x8xf32>
    %301 = vector.extract_strided_slice %293 {offsets = [7, 0], sizes = [1, 8], strides = [1, 1]} : vector<8x8xf32> to vector<1x8xf32>
    %302 = tpu.concatenate %294, %295, %296, %297, %298, %299, %300, %301 in 1 : vector<1x8xf32>, vector<1x8xf32>, vector<1x8xf32>, vector<1x8xf32>, vector<1x8xf32>, vector<1x8xf32>, vector<1x8xf32>, vector<1x8xf32> -> vector<1x64xf32>
    %303 = vector.extract_strided_slice %272 {offsets = [0, 8], sizes = [8, 8], strides = [1, 1]} : vector<8x17xf32> to vector<8x8xf32>
    %304 = vector.broadcast %5 : vector<1x8xf32> to vector<8x8xf32>
    %305 = arith.addf %303, %304 : vector<8x8xf32>
    %cst_69 = arith.constant dense<0.000000e+00> : vector<8x9xf32>
    %306 = tpu.matmul %305, %1, %cst_69 {dimension_numbers = #tpu.dot_dimension_numbers<[1], [0], [0], [1], [0, 0, 1, 1], [], []>} : vector<8x8xf32>, vector<8x9xf32>, vector<8x9xf32> -> vector<8x9xf32>
    %307 = vector.extract_strided_slice %306 {offsets = [0, 0], sizes = [8, 8], strides = [1, 1]} : vector<8x9xf32> to vector<8x8xf32>
    %308 = vector.extract_strided_slice %306 {offsets = [0, 8], sizes = [8, 1], strides = [1, 1]} : vector<8x9xf32> to vector<8x1xf32>
    %cst_70 = arith.constant dense<0.000000e+00> : vector<1x8xf32>
    %309 = tpu.matmul %2, %307, %cst_70 {dimension_numbers = #tpu.dot_dimension_numbers<[1], [1], [0], [0], [0, 0, 1, 0], [], []>} : vector<1x8xf32>, vector<8x8xf32>, vector<1x8xf32> -> vector<1x8xf32>
    %310 = vector.broadcast %308 : vector<8x1xf32> to vector<8x8xf32>
    %311 = vector.broadcast %309 : vector<1x8xf32> to vector<8x8xf32>
    %312 = arith.addf %310, %311 : vector<8x8xf32>
    %cst_71 = arith.constant 0.00999999977 : f32
    %313 = vector.broadcast %cst_71 : f32 to vector<8x8xf32>
    %314 = arith.mulf %313, %312 : vector<8x8xf32>
    %315 = arith.maximumf %312, %314 : vector<8x8xf32>
    %316 = arith.addf %315, %0 : vector<8x8xf32>
    %cst_72 = arith.constant dense<0xFF800000> : vector<8xf32>
    %317 = vector.multi_reduction <maximumf>, %316, %cst_72 [1] : vector<8x8xf32> to vector<8xf32>
    %318 = vector.shape_cast %317 : vector<8xf32> to vector<8x1xf32>
    %319 = vector.broadcast %318 : vector<8x1xf32> to vector<8x8xf32>
    %320 = arith.subf %316, %319 : vector<8x8xf32>
    %321 = math.exp %320 : vector<8x8xf32>
    %cst_73 = arith.constant dense<0.000000e+00> : vector<8xf32>
    %322 = vector.multi_reduction <add>, %321, %cst_73 [1] : vector<8x8xf32> to vector<8xf32>
    %323 = vector.shape_cast %322 : vector<8xf32> to vector<8x1xf32>
    %324 = tpu.reciprocal %323 {approx = true} : vector<8x1xf32> -> vector<8x1xf32>
    %325 = vector.broadcast %324 : vector<8x1xf32> to vector<8x8xf32>
    %326 = arith.mulf %321, %325 : vector<8x8xf32>
    %cst_74 = arith.constant dense<0.000000e+00> : vector<8x8xf32>
    %327 = tpu.matmul %326, %307, %cst_74 {dimension_numbers = #tpu.dot_dimension_numbers<[1], [0], [0], [1], [0, 0, 1, 1], [], []>} : vector<8x8xf32>, vector<8x8xf32>, vector<8x8xf32> -> vector<8x8xf32>
    %328 = vector.extract_strided_slice %327 {offsets = [0, 0], sizes = [1, 8], strides = [1, 1]} : vector<8x8xf32> to vector<1x8xf32>
    %329 = vector.extract_strided_slice %327 {offsets = [1, 0], sizes = [1, 8], strides = [1, 1]} : vector<8x8xf32> to vector<1x8xf32>
    %330 = vector.extract_strided_slice %327 {offsets = [2, 0], sizes = [1, 8], strides = [1, 1]} : vector<8x8xf32> to vector<1x8xf32>
    %331 = vector.extract_strided_slice %327 {offsets = [3, 0], sizes = [1, 8], strides = [1, 1]} : vector<8x8xf32> to vector<1x8xf32>
    %332 = vector.extract_strided_slice %327 {offsets = [4, 0], sizes = [1, 8], strides = [1, 1]} : vector<8x8xf32> to vector<1x8xf32>
    %333 = vector.extract_strided_slice %327 {offsets = [5, 0], sizes = [1, 8], strides = [1, 1]} : vector<8x8xf32> to vector<1x8xf32>
    %334 = vector.extract_strided_slice %327 {offsets = [6, 0], sizes = [1, 8], strides = [1, 1]} : vector<8x8xf32> to vector<1x8xf32>
    %335 = vector.extract_strided_slice %327 {offsets = [7, 0], sizes = [1, 8], strides = [1, 1]} : vector<8x8xf32> to vector<1x8xf32>
    %336 = tpu.concatenate %328, %329, %330, %331, %332, %333, %334, %335, %302 in 1 : vector<1x8xf32>, vector<1x8xf32>, vector<1x8xf32>, vector<1x8xf32>, vector<1x8xf32>, vector<1x8xf32>, vector<1x8xf32>, vector<1x8xf32>, vector<1x64xf32> -> vector<1x128xf32>
    %c0_75 = arith.constant 0 : index
    %c0_76 = arith.constant 0 : index
    %337 = vector.load %arg7[%c0_75, %c0_76] : memref<128x256xf32, #tpu.memory_space<vmem>>, vector<128x256xf32>
    %cst_77 = arith.constant dense<0.000000e+00> : vector<1x256xf32>
    %338 = tpu.matmul %336, %337, %cst_77 {dimension_numbers = #tpu.dot_dimension_numbers<[1], [0], [0], [1], [0, 0, 1, 1], [], []>} : vector<1x128xf32>, vector<128x256xf32>, vector<1x256xf32> -> vector<1x256xf32>
    %339 = arith.addf %338, %6 : vector<1x256xf32>
    %340 = vector.extract_strided_slice %339 {offsets = [0, 0], sizes = [1, 64], strides = [1, 1]} : vector<1x256xf32> to vector<1x64xf32>
    %341 = arith.negf %340 : vector<1x64xf32>
    %342 = math.exp %341 : vector<1x64xf32>
    %cst_78 = arith.constant 1.000000e+00 : f32
    %343 = vector.broadcast %cst_78 : f32 to vector<1x64xf32>
    %344 = arith.addf %343, %342 : vector<1x64xf32>
    %345 = arith.divf %343, %344 : vector<1x64xf32>
    %346 = vector.extract_strided_slice %339 {offsets = [0, 64], sizes = [1, 64], strides = [1, 1]} : vector<1x256xf32> to vector<1x64xf32>
    %347 = arith.negf %346 : vector<1x64xf32>
    %348 = math.exp %347 : vector<1x64xf32>
    %cst_79 = arith.constant 1.000000e+00 : f32
    %349 = vector.broadcast %cst_79 : f32 to vector<1x64xf32>
    %350 = arith.addf %349, %348 : vector<1x64xf32>
    %351 = arith.divf %349, %350 : vector<1x64xf32>
    %352 = vector.extract_strided_slice %339 {offsets = [0, 128], sizes = [1, 64], strides = [1, 1]} : vector<1x256xf32> to vector<1x64xf32>
    %353 = vector.extract_strided_slice %339 {offsets = [0, 192], sizes = [1, 64], strides = [1, 1]} : vector<1x256xf32> to vector<1x64xf32>
    %354 = arith.mulf %345, %353 : vector<1x64xf32>
    %355 = arith.addf %352, %354 : vector<1x64xf32>
    %356 = math.tanh %355 : vector<1x64xf32>
    %cst_80 = arith.constant 1.000000e+00 : f32
    %357 = vector.broadcast %cst_80 : f32 to vector<1x64xf32>
    %358 = arith.subf %357, %351 : vector<1x64xf32>
    %359 = arith.mulf %358, %356 : vector<1x64xf32>
    %360 = arith.mulf %351, %302 : vector<1x64xf32>
    %361 = arith.addf %359, %360 : vector<1x64xf32>
    %362 = vector.extract_strided_slice %361 {offsets = [0, 0], sizes = [1, 8], strides = [1, 1]} : vector<1x64xf32> to vector<1x8xf32>
    %363 = vector.extract_strided_slice %361 {offsets = [0, 8], sizes = [1, 8], strides = [1, 1]} : vector<1x64xf32> to vector<1x8xf32>
    %364 = vector.extract_strided_slice %361 {offsets = [0, 16], sizes = [1, 8], strides = [1, 1]} : vector<1x64xf32> to vector<1x8xf32>
    %365 = vector.extract_strided_slice %361 {offsets = [0, 24], sizes = [1, 8], strides = [1, 1]} : vector<1x64xf32> to vector<1x8xf32>
    %366 = vector.extract_strided_slice %361 {offsets = [0, 32], sizes = [1, 8], strides = [1, 1]} : vector<1x64xf32> to vector<1x8xf32>
    %367 = vector.extract_strided_slice %361 {offsets = [0, 40], sizes = [1, 8], strides = [1, 1]} : vector<1x64xf32> to vector<1x8xf32>
    %368 = vector.extract_strided_slice %361 {offsets = [0, 48], sizes = [1, 8], strides = [1, 1]} : vector<1x64xf32> to vector<1x8xf32>
    %369 = vector.extract_strided_slice %361 {offsets = [0, 56], sizes = [1, 8], strides = [1, 1]} : vector<1x64xf32> to vector<1x8xf32>
    %370 = tpu.concatenate %362, %363, %364, %365, %366, %367, %368, %369 in 0 : vector<1x8xf32>, vector<1x8xf32>, vector<1x8xf32>, vector<1x8xf32>, vector<1x8xf32>, vector<1x8xf32>, vector<1x8xf32>, vector<1x8xf32> -> vector<8x8xf32>
    %cst_81 = arith.constant dense<0.000000e+00> : vector<8x17xf32>
    %371 = tpu.matmul %370, %3, %cst_81 {dimension_numbers = #tpu.dot_dimension_numbers<[1], [0], [0], [1], [0, 0, 1, 1], [], []>} : vector<8x8xf32>, vector<8x17xf32>, vector<8x17xf32> -> vector<8x17xf32>
    %372 = vector.extract_strided_slice %371 {offsets = [0, 0], sizes = [8, 8], strides = [1, 1]} : vector<8x17xf32> to vector<8x8xf32>
    %373 = vector.extract_strided_slice %371 {offsets = [0, 16], sizes = [8, 1], strides = [1, 1]} : vector<8x17xf32> to vector<8x1xf32>
    %cst_82 = arith.constant dense<0.000000e+00> : vector<1x8xf32>
    %374 = tpu.matmul %4, %372, %cst_82 {dimension_numbers = #tpu.dot_dimension_numbers<[1], [1], [0], [0], [0, 0, 1, 0], [], []>} : vector<1x8xf32>, vector<8x8xf32>, vector<1x8xf32> -> vector<1x8xf32>
    %375 = vector.broadcast %373 : vector<8x1xf32> to vector<8x8xf32>
    %376 = vector.broadcast %374 : vector<1x8xf32> to vector<8x8xf32>
    %377 = arith.addf %375, %376 : vector<8x8xf32>
    %cst_83 = arith.constant 0.00999999977 : f32
    %378 = vector.broadcast %cst_83 : f32 to vector<8x8xf32>
    %379 = arith.mulf %378, %377 : vector<8x8xf32>
    %380 = arith.maximumf %377, %379 : vector<8x8xf32>
    %381 = arith.addf %380, %0 : vector<8x8xf32>
    %cst_84 = arith.constant dense<0xFF800000> : vector<8xf32>
    %382 = vector.multi_reduction <maximumf>, %381, %cst_84 [1] : vector<8x8xf32> to vector<8xf32>
    %383 = vector.shape_cast %382 : vector<8xf32> to vector<8x1xf32>
    %384 = vector.broadcast %383 : vector<8x1xf32> to vector<8x8xf32>
    %385 = arith.subf %381, %384 : vector<8x8xf32>
    %386 = math.exp %385 : vector<8x8xf32>
    %cst_85 = arith.constant dense<0.000000e+00> : vector<8xf32>
    %387 = vector.multi_reduction <add>, %386, %cst_85 [1] : vector<8x8xf32> to vector<8xf32>
    %388 = vector.shape_cast %387 : vector<8xf32> to vector<8x1xf32>
    %389 = tpu.reciprocal %388 {approx = true} : vector<8x1xf32> -> vector<8x1xf32>
    %390 = vector.broadcast %389 : vector<8x1xf32> to vector<8x8xf32>
    %391 = arith.mulf %386, %390 : vector<8x8xf32>
    %cst_86 = arith.constant dense<0.000000e+00> : vector<8x8xf32>
    %392 = tpu.matmul %391, %372, %cst_86 {dimension_numbers = #tpu.dot_dimension_numbers<[1], [0], [0], [1], [0, 0, 1, 1], [], []>} : vector<8x8xf32>, vector<8x8xf32>, vector<8x8xf32> -> vector<8x8xf32>
    %393 = vector.extract_strided_slice %392 {offsets = [0, 0], sizes = [1, 8], strides = [1, 1]} : vector<8x8xf32> to vector<1x8xf32>
    %394 = vector.extract_strided_slice %392 {offsets = [1, 0], sizes = [1, 8], strides = [1, 1]} : vector<8x8xf32> to vector<1x8xf32>
    %395 = vector.extract_strided_slice %392 {offsets = [2, 0], sizes = [1, 8], strides = [1, 1]} : vector<8x8xf32> to vector<1x8xf32>
    %396 = vector.extract_strided_slice %392 {offsets = [3, 0], sizes = [1, 8], strides = [1, 1]} : vector<8x8xf32> to vector<1x8xf32>
    %397 = vector.extract_strided_slice %392 {offsets = [4, 0], sizes = [1, 8], strides = [1, 1]} : vector<8x8xf32> to vector<1x8xf32>
    %398 = vector.extract_strided_slice %392 {offsets = [5, 0], sizes = [1, 8], strides = [1, 1]} : vector<8x8xf32> to vector<1x8xf32>
    %399 = vector.extract_strided_slice %392 {offsets = [6, 0], sizes = [1, 8], strides = [1, 1]} : vector<8x8xf32> to vector<1x8xf32>
    %400 = vector.extract_strided_slice %392 {offsets = [7, 0], sizes = [1, 8], strides = [1, 1]} : vector<8x8xf32> to vector<1x8xf32>
    %401 = tpu.concatenate %393, %394, %395, %396, %397, %398, %399, %400 in 1 : vector<1x8xf32>, vector<1x8xf32>, vector<1x8xf32>, vector<1x8xf32>, vector<1x8xf32>, vector<1x8xf32>, vector<1x8xf32>, vector<1x8xf32> -> vector<1x64xf32>
    %c0_87 = arith.constant 0 : index
    %c0_88 = arith.constant 0 : index
    %402 = vector.load %arg9[%c0_87, %c0_88] : memref<64x32xf32, #tpu.memory_space<vmem>>, vector<64x32xf32>
    %cst_89 = arith.constant dense<0.000000e+00> : vector<1x32xf32>
    %403 = tpu.matmul %401, %402, %cst_89 {dimension_numbers = #tpu.dot_dimension_numbers<[1], [0], [0], [1], [0, 0, 1, 1], [], []>} : vector<1x64xf32>, vector<64x32xf32>, vector<1x32xf32> -> vector<1x32xf32>
    %c0_90 = arith.constant 0 : index
    %c0_91 = arith.constant 0 : index
    %404 = vector.load %arg10[%c0_90, %c0_91] : memref<1x32xf32, #tpu.memory_space<vmem>>, vector<1x32xf32>
    %405 = arith.addf %403, %404 : vector<1x32xf32>
    %c0_92 = arith.constant 0 : index
    %c0_93 = arith.constant 0 : index
    %406 = vector.load %arg11[%c0_92, %c0_93] : memref<8x8xf32, #tpu.memory_space<vmem>>, vector<8x8xf32>
    tpu.vector_store %arg11[%c0_92, %c0_93], %370 {strides = array<i32>} : memref<8x8xf32, #tpu.memory_space<vmem>>, vector<8x8xf32>,
    %c0_94 = arith.constant 0 : index
    %c0_95 = arith.constant 0 : index
    %407 = vector.load %arg12[%c0_94, %c0_95] : memref<1x32xf32, #tpu.memory_space<vmem>>, vector<1x32xf32>
    tpu.vector_store %arg12[%c0_94, %c0_95], %405 {strides = array<i32>} : memref<1x32xf32, #tpu.memory_space<vmem>>, vector<1x32xf32>,
    return
  }
}

</mosaic_0001>

<llo_original>
// kernel: _planning_gat_jit.1
$region0: #{_planning_gat_jit.1}
  #allocation0 [shape = 'u32[]', space=smem, size = 0x4, offset = 0x4, fixed_abs, tag = 'smem constant byte address 0x4 - core index']
  #allocation1 [shape = 'u32[144,128]{1,0:T(1,128)}', space=vmem, size = 0x12000, scoped, tag = 'internal scratch']
  %s0 = inlined_call_operand.vmem [shape: f32[8,8], index: 0, kind: input, shape index: {}]
  %s1 = inlined_call_operand.vmem [shape: f32[8,8], index: 1, kind: input, shape index: {}]
  %s2 = inlined_call_operand.vmem [shape: f32[8,9], index: 2, kind: input, shape index: {}]
  %s3 = inlined_call_operand.vmem [shape: f32[1,8], index: 3, kind: input, shape index: {}]
  %s4 = inlined_call_operand.vmem [shape: f32[8,17], index: 4, kind: input, shape index: {}]
  %s5 = inlined_call_operand.vmem [shape: f32[1,8], index: 5, kind: input, shape index: {}]
  %s6 = inlined_call_operand.vmem [shape: f32[1,8], index: 6, kind: input, shape index: {}]
  %s7 = inlined_call_operand.hbm [shape: f32[128,256], index: 7, kind: input, shape index: {}]
  %s8 = inlined_call_operand.vmem [shape: f32[1,256], index: 8, kind: input, shape index: {}]
  %s9 = inlined_call_operand.vmem [shape: f32[64,32], index: 9, kind: input, shape index: {}]
  %s10 = inlined_call_operand.vmem [shape: f32[1,32], index: 10, kind: input, shape index: {}]
  %s11 = inlined_call_operand.hbm [shape: f32[8,8], index: 11, kind: output, shape index: {0}]
  %s12 = inlined_call_operand.hbm [shape: f32[1,32], index: 12, kind: output, shape index: {1}]
  %13 = xla_tuple %s11, %s12
  %s14 = sld [smem:[#allocation0]]
  $region66: #{_planning_gat_jit.1} parent=0
    _
  %s16 = ssub.s32 1, %s14
  %s17 = scalar_select 0, %s16, %s14
  $region1: #{_planning_gat_jit.1} parent=0
    #allocation2 [shape = 'u8[131072]{0}', space=vmem, size = 0x20000, scoped, tag = 'input window, operand 7, single buffered']
    #allocation3 [shape = 's32[1]{0}', space=sflag, size = 0x4, scoped, tag = 'scoped memory for _planning_gat_jit.1']
    #allocation4 [shape = 's32[1]{0}', space=sflag, size = 0x4, scoped, tag = 'scoped memory for _planning_gat_jit.1']
    #allocation5 [shape = 'u8[4096]{0}', space=vmem, size = 0x1000, scoped, tag = 'output window, operand 0, single buffered']
    #allocation6 [shape = 'u8[512]{0}', space=vmem, size = 0x400, scoped, tag = 'output window, operand 1, single buffered']
    #allocation7 [shape = 's32[1]{0}', space=sflag, size = 0x4, scoped, tag = 'scoped memory for _planning_gat_jit.1']
    %18 = vsyncpa [#allocation3], 0
    %19 = vsyncpa [#allocation4], 0
    %20 = vsyncpa [#allocation7], 0
    // Predicated region
    $region2: #{_planning_gat_jit.1} parent=1 // pred_check
      _
    $region3: #{_planning_gat_jit.1} parent=1 // pred_check_branch
      %22 = sbr.rel (0) target = $region5
    $region4: #{_planning_gat_jit.1} parent=1 // pred_region
      _
    $region5: #{_planning_gat_jit.1} parent=1 // pred_fallthru
      _
    // Predicated region
    $region6: #{_planning_gat_jit.1} parent=1 // pred_check
      _
    $region7: #{_planning_gat_jit.1} parent=1 // pred_check_branch
      %24 = sbr.rel (0) target = $region9
    $region8: #{_planning_gat_jit.1} parent=1 // pred_region
      _
    $region9: #{_planning_gat_jit.1} parent=1 // pred_fallthru
      _
    // Predicated region
    $region10: #{_planning_gat_jit.1} parent=1 // pred_check
      _
    $region11: #{_planning_gat_jit.1} parent=1 // pred_check_branch
      %26 = sbr.rel (0) target = $region13
    $region12: #{_planning_gat_jit.1} parent=1 // pred_region
      _
    $region13: #{_planning_gat_jit.1} parent=1 // pred_fallthru
      _
    // Predicated region
    $region14: #{_planning_gat_jit.1} parent=1 // pred_check
      _
    $region15: #{_planning_gat_jit.1} parent=1 // pred_check_branch
      %28 = sbr.rel (0) target = $region17
    $region16: #{_planning_gat_jit.1} parent=1 // pred_region
      _
    $region17: #{_planning_gat_jit.1} parent=1 // pred_fallthru
      _
    // Predicated region
    $region18: #{_planning_gat_jit.1} parent=1 // pred_check
      _
    $region19: #{_planning_gat_jit.1} parent=1 // pred_check_branch
      %30 = sbr.rel (0) target = $region21
    $region20: #{_planning_gat_jit.1} parent=1 // pred_region
      _
    $region21: #{_planning_gat_jit.1} parent=1 // pred_fallthru
      _
    // Predicated region
    $region22: #{_planning_gat_jit.1} parent=1 // pred_check
      _
    $region23: #{_planning_gat_jit.1} parent=1 // pred_check_branch
      %32 = sbr.rel (0) target = $region25
    $region24: #{_planning_gat_jit.1} parent=1 // pred_region
      _
    $region25: #{_planning_gat_jit.1} parent=1 // pred_fallthru
      _
    // Predicated region
    $region26: #{_planning_gat_jit.1} parent=1 // pred_check
      _
    $region27: #{_planning_gat_jit.1} parent=1 // pred_check_branch
      %34 = sbr.rel (0) target = $region29
    $region28: #{_planning_gat_jit.1} parent=1 // pred_region
      _
    $region29: #{_planning_gat_jit.1} parent=1 // pred_fallthru
      _
    // Predicated region
    $region30: #{_planning_gat_jit.1} parent=1 // pred_check
      _
    $region31: #{_planning_gat_jit.1} parent=1 // pred_check_branch
      %36 = sbr.rel (0) target = $region33
    $region32: #{_planning_gat_jit.1} parent=1 // pred_region
      %s38 = ssub.s32 4096, 4096
      %39 = vsyncadd [#allocation3], %s38
      %s40 = sshll.u32 [#allocation2], 4
      %s41 = int_to_ptr.vmem [resolvable:$true] %s40
      %46 = dma.hbm_to_vmem [thread:$0]  %s7, 4096, %s41, [#allocation3], 256, 256, 16
    $region33: #{_planning_gat_jit.1} parent=1 // pred_fallthru
      _
    // Predicated region
    $region34: #{_planning_gat_jit.1} parent=1 // pred_check
      _
    $region35: #{_planning_gat_jit.1} parent=1 // pred_check_branch
      %48 = sbr.rel (0) target = $region37
    $region36: #{_planning_gat_jit.1} parent=1 // pred_region
      _
    $region37: #{_planning_gat_jit.1} parent=1 // pred_fallthru
      _
    // Predicated region
    $region38: #{_planning_gat_jit.1} parent=1 // pred_check
      _
    $region39: #{_planning_gat_jit.1} parent=1 // pred_check_branch
      %50 = sbr.rel (0) target = $region41
    $region40: #{_planning_gat_jit.1} parent=1 // pred_region
      _
    $region41: #{_planning_gat_jit.1} parent=1 // pred_fallthru
      _
    // Predicated region
    $region42: #{_planning_gat_jit.1} parent=1 // pred_check
      _
    $region43: #{_planning_gat_jit.1} parent=1 // pred_check_branch
      %52 = sbr.rel (0) target = $region45
    $region44: #{_planning_gat_jit.1} parent=1 // pred_region
      _
    $region45: #{_planning_gat_jit.1} parent=1 // pred_fallthru
      _
    // Predicated region
    $region46: #{_planning_gat_jit.1} parent=1 // pred_check
      _
    $region47: #{_planning_gat_jit.1} parent=1 // pred_check_branch
      %54 = sbr.rel (0) target = $region49
    $region48: #{_planning_gat_jit.1} parent=1 // pred_region
      %55 = dma.done [#allocation3], 4096
    $region49: #{_planning_gat_jit.1} parent=1 // pred_fallthru
      _
    %v56 = vld [vmem:[%s1] sm:$0xff]
    %v57 = vld [vmem:[%s2] sm:$0xff]
    %v58 = vld [vmem:[%s3] sm:$0x1]
    %v59 = vld [vmem:[%s4] sm:$0xff]
    %v60 = vld [vmem:[%s5] sm:$0x1]
    %v61 = vld [vmem:[%s6] sm:$0x1]
    %v62 = vld [vmem:[%s8] sm:$0x3]
    %v63 = vld [vmem:[%s0] sm:$0xff]
    %vm64 = vcmask 64512
    %v66 = vsel %vm64, %v63, 0
    %68 = vmatprep.subr.mxu0 0.0
    %69 = vmatpush1.msra.mxu0 %v57
    %70 = vmatprep.subr.mxu0 0.0
    %71 = vmatpush1.msra.mxu0 0.0
    %72 = vmatprep.subr.mxu0 0.0
    %73 = vmatpush1.msra.mxu0 0.0
    %74 = vmatprep.subr.mxu0 0.0
    %75 = vmatpush1.msra.mxu0 0.0
    %76 = vmatprep.subr.mxu0 0.0
    %77 = vmatpush1.msra.mxu0 0.0
    %78 = vmatprep.subr.mxu0 0.0
    %79 = vmatpush1.msra.mxu0 0.0
    %80 = vmatprep.subr.mxu0 0.0
    %81 = vmatpush1.msra.mxu0 0.0
    %82 = vmatprep.subr.mxu0 0.0
    %83 = vmatpush1.msra.mxu0 0.0
    %84 = vmatprep.subr.mxu0 0.0
    %85 = vmatpush1.msra.mxu0 0.0
    %86 = vmatprep.subr.mxu0 0.0
    %87 = vmatpush1.msra.mxu0 0.0
    %88 = vmatprep.subr.mxu0 0.0
    %89 = vmatpush1.msra.mxu0 0.0
    %90 = vmatprep.subr.mxu0 0.0
    %91 = vmatpush1.msra.mxu0 0.0
    %92 = vmatprep.subr.mxu0 0.0
    %93 = vmatpush1.msra.mxu0 0.0
    %94 = vmatprep.subr.mxu0 0.0
    %95 = vmatpush1.msra.mxu0 0.0
    %96 = vmatprep.subr.mxu0 0.0
    %97 = vmatpush1.msra.mxu0 0.0
    %98 = vmatprep.subr.mxu0 0.0
    %99 = vmatpush1.msra.mxu0 0.0
    %100 = vmatprep.subr.mxu0 0.0
    %101 = vmatpush1.msra.mxu0 0.0
    %102 = vmatprep.subr.mxu0 0.0
    %103 = vmatpush1.msra.mxu0 0.0
    %104 = vmatprep.subr.mxu0 0.0
    %105 = vmatpush1.msra.mxu0 0.0
    %106 = vmatprep.subr.mxu0 0.0
    %107 = vmatpush1.msra.mxu0 0.0
    %108 = vmatprep.subr.mxu0 0.0
    %109 = vmatpush1.msra.mxu0 0.0
    %110 = vmatprep.subr.mxu0 0.0
    %111 = vmatpush1.msra.mxu0 0.0
    %112 = vmatprep.subr.mxu0 0.0
    %113 = vmatpush1.msra.mxu0 0.0
    %114 = vmatprep.subr.mxu0 0.0
    %115 = vmatpush1.msra.mxu0 0.0
    %116 = vmatprep.subr.mxu0 0.0
    %117 = vmatpush1.msra.mxu0 0.0
    %118 = vmatprep.subr.mxu0 0.0
    %119 = vmatpush1.msra.mxu0 0.0
    %120 = vmatprep.subr.mxu0 0.0
    %121 = vmatpush1.msra.mxu0 0.0
    %122 = vmatprep.subr.mxu0 0.0
    %123 = vmatpush1.msra.mxu0 0.0
    %124 = vmatprep.subr.mxu0 0.0
    %125 = vmatpush1.msra.mxu0 0.0
    %126 = vmatprep.subr.mxu0 0.0
    %127 = vmatpush1.msra.mxu0 0.0
    %128 = vmatprep.subr.mxu0 0.0
    %129 = vmatpush1.msra.mxu0 0.0
    %130 = vmatprep.subr.mxu0 0.0
    %131 = vmatpush1.msra.mxu0 0.0
    %132 = vmatprep.mubr.f32.mxu0 0.0
    %133 = vmatmul.mubr.f32.gmra.mrb[0].mxu0 %v66
    %v134 = vpop.f32.mrb[0].mxu0
    %v135 = vadd.f32 0.0, %v134
    %v136 = vpop.f32.mrb[0].mxu0
    %137 = vdwg.mxu0
    %v139 = vsel %vm64, %v58, 0
    %v142 = vsel %vm64, %v135, 0
    %144 = vmatprep.subr.mxu0 0.0
    %145 = vmatpush1.xpose.msra.mxu0 %v142
    %146 = vmatprep.subr.mxu0 0.0
    %147 = vmatpush1.xpose.msra.mxu0 0.0
    %148 = vmatprep.subr.mxu0 0.0
    %149 = vmatpush1.xpose.msra.mxu0 0.0
    %150 = vmatprep.subr.mxu0 0.0
    %151 = vmatpush1.xpose.msra.mxu0 0.0
    %152 = vmatprep.subr.mxu0 0.0
    %153 = vmatpush1.xpose.msra.mxu0 0.0
    %154 = vmatprep.subr.mxu0 0.0
    %155 = vmatpush1.xpose.msra.mxu0 0.0
    %156 = vmatprep.subr.mxu0 0.0
    %157 = vmatpush1.xpose.msra.mxu0 0.0
    %158 = vmatprep.subr.mxu0 0.0
    %159 = vmatpush1.xpose.msra.mxu0 0.0
    %160 = vmatprep.subr.mxu0 0.0
    %161 = vmatpush1.xpose.msra.mxu0 0.0
    %162 = vmatprep.subr.mxu0 0.0
    %163 = vmatpush1.xpose.msra.mxu0 0.0
    %164 = vmatprep.subr.mxu0 0.0
    %165 = vmatpush1.xpose.msra.mxu0 0.0
    %166 = vmatprep.subr.mxu0 0.0
    %167 = vmatpush1.xpose.msra.mxu0 0.0
    %168 = vmatprep.subr.mxu0 0.0
    %169 = vmatpush1.xpose.msra.mxu0 0.0
    %170 = vmatprep.subr.mxu0 0.0
    %171 = vmatpush1.xpose.msra.mxu0 0.0
    %172 = vmatprep.subr.mxu0 0.0
    %173 = vmatpush1.xpose.msra.mxu0 0.0
    %174 = vmatprep.subr.mxu0 0.0
    %175 = vmatpush1.xpose.msra.mxu0 0.0
    %176 = vmatprep.subr.mxu0 0.0
    %177 = vmatpush1.xpose.msra.mxu0 0.0
    %178 = vmatprep.subr.mxu0 0.0
    %179 = vmatpush1.xpose.msra.mxu0 0.0
    %180 = vmatprep.subr.mxu0 0.0
    %181 = vmatpush1.xpose.msra.mxu0 0.0
    %182 = vmatprep.subr.mxu0 0.0
    %183 = vmatpush1.xpose.msra.mxu0 0.0
    %184 = vmatprep.subr.mxu0 0.0
    %185 = vmatpush1.xpose.msra.mxu0 0.0
    %186 = vmatprep.subr.mxu0 0.0
    %187 = vmatpush1.xpose.msra.mxu0 0.0
    %188 = vmatprep.subr.mxu0 0.0
    %189 = vmatpush1.xpose.msra.mxu0 0.0
    %190 = vmatprep.subr.mxu0 0.0
    %191 = vmatpush1.xpose.msra.mxu0 0.0
    %192 = vmatprep.subr.mxu0 0.0
    %193 = vmatpush1.xpose.msra.mxu0 0.0
    %194 = vmatprep.subr.mxu0 0.0
    %195 = vmatpush1.xpose.msra.mxu0 0.0
    %196 = vmatprep.subr.mxu0 0.0
    %197 = vmatpush1.xpose.msra.mxu0 0.0
    %198 = vmatprep.subr.mxu0 0.0
    %199 = vmatpush1.xpose.msra.mxu0 0.0
    %200 = vmatprep.subr.mxu0 0.0
    %201 = vmatpush1.xpose.msra.mxu0 0.0
    %202 = vmatprep.subr.mxu0 0.0
    %203 = vmatpush1.xpose.msra.mxu0 0.0
    %204 = vmatprep.subr.mxu0 0.0
    %205 = vmatpush1.xpose.msra.mxu0 0.0
    %206 = vmatprep.subr.mxu0 0.0
    %207 = vmatpush1.xpose.msra.mxu0 0.0
    %208 = vmatprep.mubr.f32.mxu0 0.0
    %209 = vmatmul.mubr.f32.gmra.mrb[0].mxu0 %v139
    %v210 = vpop.f32.mrb[0].mxu0
    %v211 = vadd.f32 0.0, %v210
    %v212 = vpop.f32.mrb[0].mxu0
    %213 = vdwg.mxu0
    %214 = vset.pattern.permute.xlu0 8
    %215 = vperm.xlu0 %214, %v135
    %v216 = vpop.permute.xlu0 %215
    %v218 = vlaneseq
    %v219 = vshrl.u32 %v218, 7
    %v220 = vsub.s32 0, %v219
    %v221 = vrot.slane %v211, %v220
    %v222 = vadd.f32 %v216, %v221
    %v223 = vmul.f32 %v222, 0.01
    %v224 = vmax.f32 %v222, %v223
    %v225 = vadd.f32 %v224, %v56
    %v226 = vsel %vm64, %v225, -inf
    %227 = vmax.xlane.f32.xlu0 %v226
    %v228 = vpop.xlane.xlu0 %227
    %v229 = vsub.f32 %v225, %v228
    %v230 = vmul.f32 %v229, 1.442695
    %v231 = vpow.pop %v230
    %v232 = vsel %vm64, %v231, 0.0
    %233 = vadd.xlane.f32.xlu0 %v232
    %v234 = vpop.xlane.xlu0 %233
    %v235 = vrcp.pop %v234
    %v236 = vmul.f32 %v231, %v235
    %v238 = vsel %vm64, %v236, 0
    %240 = vmatprep.subr.mxu0 0.0
    %241 = vmatpush1.msra.mxu0 %v135
    %242 = vmatprep.subr.mxu0 0.0
    %243 = vmatpush1.msra.mxu0 0.0
    %244 = vmatprep.subr.mxu0 0.0
    %245 = vmatpush1.msra.mxu0 0.0
    %246 = vmatprep.subr.mxu0 0.0
    %247 = vmatpush1.msra.mxu0 0.0
    %248 = vmatprep.subr.mxu0 0.0
    %249 = vmatpush1.msra.mxu0 0.0
    %250 = vmatprep.subr.mxu0 0.0
    %251 = vmatpush1.msra.mxu0 0.0
    %252 = vmatprep.subr.mxu0 0.0
    %253 = vmatpush1.msra.mxu0 0.0
    %254 = vmatprep.subr.mxu0 0.0
    %255 = vmatpush1.msra.mxu0 0.0
    %256 = vmatprep.subr.mxu0 0.0
    %257 = vmatpush1.msra.mxu0 0.0
    %258 = vmatprep.subr.mxu0 0.0
    %259 = vmatpush1.msra.mxu0 0.0
    %260 = vmatprep.subr.mxu0 0.0
    %261 = vmatpush1.msra.mxu0 0.0
    %262 = vmatprep.subr.mxu0 0.0
    %263 = vmatpush1.msra.mxu0 0.0
    %264 = vmatprep.subr.mxu0 0.0
    %265 = vmatpush1.msra.mxu0 0.0
    %266 = vmatprep.subr.mxu0 0.0
    %267 = vmatpush1.msra.mxu0 0.0
    %268 = vmatprep.subr.mxu0 0.0
    %269 = vmatpush1.msra.mxu0 0.0
    %270 = vmatprep.subr.mxu0 0.0
    %271 = vmatpush1.msra.mxu0 0.0
    %272 = vmatprep.subr.mxu0 0.0
    %273 = vmatpush1.msra.mxu0 0.0
    %274 = vmatprep.subr.mxu0 0.0
    %275 = vmatpush1.msra.mxu0 0.0
    %276 = vmatprep.subr.mxu0 0.0
    %277 = vmatpush1.msra.mxu0 0.0
    %278 = vmatprep.subr.mxu0 0.0
    %279 = vmatpush1.msra.mxu0 0.0
    %280 = vmatprep.subr.mxu0 0.0
    %281 = vmatpush1.msra.mxu0 0.0
    %282 = vmatprep.subr.mxu0 0.0
    %283 = vmatpush1.msra.mxu0 0.0
    %284 = vmatprep.subr.mxu0 0.0
    %285 = vmatpush1.msra.mxu0 0.0
    %286 = vmatprep.subr.mxu0 0.0
    %287 = vmatpush1.msra.mxu0 0.0
    %288 = vmatprep.subr.mxu0 0.0
    %289 = vmatpush1.msra.mxu0 0.0
    %290 = vmatprep.subr.mxu0 0.0
    %291 = vmatpush1.msra.mxu0 0.0
    %292 = vmatprep.subr.mxu0 0.0
    %293 = vmatpush1.msra.mxu0 0.0
    %294 = vmatprep.subr.mxu0 0.0
    %295 = vmatpush1.msra.mxu0 0.0
    %296 = vmatprep.subr.mxu0 0.0
    %297 = vmatpush1.msra.mxu0 0.0
    %298 = vmatprep.subr.mxu0 0.0
    %299 = vmatpush1.msra.mxu0 0.0
    %300 = vmatprep.subr.mxu0 0.0
    %301 = vmatpush1.msra.mxu0 0.0
    %302 = vmatprep.subr.mxu0 0.0
    %303 = vmatpush1.msra.mxu0 0.0
    %304 = vmatprep.mubr.f32.mxu0 0.0
    %305 = vmatmul.mubr.f32.gmra.mrb[0].mxu0 %v238
    %v306 = vpop.f32.mrb[0].mxu0
    %v307 = vadd.f32 0.0, %v306
    %v308 = vpop.f32.mrb[0].mxu0
    %309 = vdwg.mxu0
    %v311 = vrot.slane %v307, 1
    %312 = vrot.lane.b32.xlu0 %v311, 8
    %v313 = vpop.permute.xlu0 %312
    %v315 = vrot.slane %v307, 2
    %316 = vrot.lane.b32.xlu0 %v315, 16
    %v317 = vpop.permute.xlu0 %316
    %v319 = vrot.slane %v307, 3
    %320 = vrot.lane.b32.xlu0 %v319, 24
    %v321 = vpop.permute.xlu0 %320
    %v323 = vrot.slane %v307, 4
    %324 = vrot.lane.b32.xlu0 %v323, 32
    %v325 = vpop.permute.xlu0 %324
    %v327 = vrot.slane %v307, 5
    %328 = vrot.lane.b32.xlu0 %v327, 40
    %v329 = vpop.permute.xlu0 %328
    %v331 = vrot.slane %v307, 6
    %332 = vrot.lane.b32.xlu0 %v331, 48
    %v333 = vpop.permute.xlu0 %332
    %v335 = vrot.slane %v307, 7
    %336 = vrot.lane.b32.xlu0 %v335, 56
    %v337 = vpop.permute.xlu0 %336
    %v339 = vsel %vm64, %v307, %v313
    %vm340 = vcmask 130048
    %v341 = vsel %vm340, %v339, %v317
    %vm342 = vcmask 195584
    %v343 = vsel %vm342, %v341, %v321
    %vm344 = vcmask 261120
    %v345 = vsel %vm344, %v343, %v325
    %vm346 = vcmask 326656
    %v347 = vsel %vm346, %v345, %v329
    %vm348 = vcmask 392192
    %v349 = vsel %vm348, %v347, %v333
    %vm350 = vcmask 457728
    %v351 = vsel %vm350, %v349, %v337
    %vm352 = vcmask 523264
    %v353 = vsel %vm352, %v351, 0.0
    %v354 = vld [vmem:[#allocation2] sm:$0xff]
    %v355 = vld [vmem:[#allocation2 + $0x8] sm:$0xff]
    %v356 = vld [vmem:[#allocation2 + $0x10] sm:$0xff]
    %v357 = vld [vmem:[#allocation2 + $0x18] sm:$0xff]
    %v358 = vld [vmem:[#allocation2 + $0x20] sm:$0xff]
    %v359 = vld [vmem:[#allocation2 + $0x28] sm:$0xff]
    %v360 = vld [vmem:[#allocation2 + $0x30] sm:$0xff]
    %v361 = vld [vmem:[#allocation2 + $0x38] sm:$0xff]
    %v362 = vld [vmem:[#allocation2 + $0x40] sm:$0xff]
    %v363 = vld [vmem:[#allocation2 + $0x48] sm:$0xff]
    %v364 = vld [vmem:[#allocation2 + $0x50] sm:$0xff]
    %v365 = vld [vmem:[#allocation2 + $0x58] sm:$0xff]
    %v366 = vld [vmem:[#allocation2 + $0x60] sm:$0xff]
    %v367 = vld [vmem:[#allocation2 + $0x68] sm:$0xff]
    %v368 = vld [vmem:[#allocation2 + $0x70] sm:$0xff]
    %v369 = vld [vmem:[#allocation2 + $0x78] sm:$0xff]
    %v370 = vld [vmem:[#allocation2 + $0x80] sm:$0xff]
    %v371 = vld [vmem:[#allocation2 + $0x88] sm:$0xff]
    %v372 = vld [vmem:[#allocation2 + $0x90] sm:$0xff]
    %v373 = vld [vmem:[#allocation2 + $0x98] sm:$0xff]
    %v374 = vld [vmem:[#allocation2 + $0xa0] sm:$0xff]
    %v375 = vld [vmem:[#allocation2 + $0xa8] sm:$0xff]
    %v376 = vld [vmem:[#allocation2 + $0xb0] sm:$0xff]
    %v377 = vld [vmem:[#allocation2 + $0xb8] sm:$0xff]
    %v378 = vld [vmem:[#allocation2 + $0xc0] sm:$0xff]
    %v379 = vld [vmem:[#allocation2 + $0xc8] sm:$0xff]
    %v380 = vld [vmem:[#allocation2 + $0xd0] sm:$0xff]
    %v381 = vld [vmem:[#allocation2 + $0xd8] sm:$0xff]
    %v382 = vld [vmem:[#allocation2 + $0xe0] sm:$0xff]
    %v383 = vld [vmem:[#allocation2 + $0xe8] sm:$0xff]
    %v384 = vld [vmem:[#allocation2 + $0xf0] sm:$0xff]
    %v385 = vld [vmem:[#allocation2 + $0xf8] sm:$0xff]
    %v387 = vlaneseq
    %v388 = vshrl.u32 %v387, 7
    %v389 = vsub.s32 0, %v388
    %v390 = vrot.slane %v62, %v389
    %v391 = vlaneseq
    %v392 = vshrl.u32 %v391, 7
    %v393 = vsub.s32 1, %v392
    %v394 = vrot.slane %v62, %v393
    %397 = vmatprep.subr.mxu0 %v355
    %398 = vmatpush1.msra.mxu0 %v354
    %399 = vmatprep.subr.mxu0 %v357
    %400 = vmatpush1.msra.mxu0 %v356
    %401 = vmatprep.subr.mxu0 %v359
    %402 = vmatpush1.msra.mxu0 %v358
    %403 = vmatprep.subr.mxu0 %v361
    %404 = vmatpush1.msra.mxu0 %v360
    %405 = vmatprep.subr.mxu0 %v363
    %406 = vmatpush1.msra.mxu0 %v362
    %407 = vmatprep.subr.mxu0 %v365
    %408 = vmatpush1.msra.mxu0 %v364
    %409 = vmatprep.subr.mxu0 %v367
    %410 = vmatpush1.msra.mxu0 %v366
    %411 = vmatprep.subr.mxu0 %v369
    %412 = vmatpush1.msra.mxu0 %v368
    %413 = vmatprep.subr.mxu0 %v371
    %414 = vmatpush1.msra.mxu0 %v370
    %415 = vmatprep.subr.mxu0 %v373
    %416 = vmatpush1.msra.mxu0 %v372
    %417 = vmatprep.subr.mxu0 %v375
    %418 = vmatpush1.msra.mxu0 %v374
    %419 = vmatprep.subr.mxu0 %v377
    %420 = vmatpush1.msra.mxu0 %v376
    %421 = vmatprep.subr.mxu0 %v379
    %422 = vmatpush1.msra.mxu0 %v378
    %423 = vmatprep.subr.mxu0 %v381
    %424 = vmatpush1.msra.mxu0 %v380
    %425 = vmatprep.subr.mxu0 %v383
    %426 = vmatpush1.msra.mxu0 %v382
    %427 = vmatprep.subr.mxu0 %v385
    %428 = vmatpush1.msra.mxu0 %v384
    %429 = vmatprep.subr.mxu0 0.0
    %430 = vmatpush1.msra.mxu0 0.0
    %431 = vmatprep.subr.mxu0 0.0
    %432 = vmatpush1.msra.mxu0 0.0
    %433 = vmatprep.subr.mxu0 0.0
    %434 = vmatpush1.msra.mxu0 0.0
    %435 = vmatprep.subr.mxu0 0.0
    %436 = vmatpush1.msra.mxu0 0.0
    %437 = vmatprep.subr.mxu0 0.0
    %438 = vmatpush1.msra.mxu0 0.0
    %439 = vmatprep.subr.mxu0 0.0
    %440 = vmatpush1.msra.mxu0 0.0
    %441 = vmatprep.subr.mxu0 0.0
    %442 = vmatpush1.msra.mxu0 0.0
    %443 = vmatprep.subr.mxu0 0.0
    %444 = vmatpush1.msra.mxu0 0.0
    %445 = vmatprep.subr.mxu0 0.0
    %446 = vmatpush1.msra.mxu0 0.0
    %447 = vmatprep.subr.mxu0 0.0
    %448 = vmatpush1.msra.mxu0 0.0
    %449 = vmatprep.subr.mxu0 0.0
    %450 = vmatpush1.msra.mxu0 0.0
    %451 = vmatprep.subr.mxu0 0.0
    %452 = vmatpush1.msra.mxu0 0.0
    %453 = vmatprep.subr.mxu0 0.0
    %454 = vmatpush1.msra.mxu0 0.0
    %455 = vmatprep.subr.mxu0 0.0
    %456 = vmatpush1.msra.mxu0 0.0
    %457 = vmatprep.subr.mxu0 0.0
    %458 = vmatpush1.msra.mxu0 0.0
    %459 = vmatprep.subr.mxu0 0.0
    %460 = vmatpush1.msra.mxu0 0.0
    %461 = vmatprep.mubr.f32.mxu0 0.0
    %462 = vmatmul.mubr.f32.gmra.mrb[0].mxu0 %v353
    %v463 = vpop.f32.mrb[0].mxu0
    %v464 = vadd.f32 %v390, %v463
    %v465 = vpop.f32.mrb[0].mxu0
    %v466 = vadd.f32 %v394, %v465
    %467 = vdwg.mxu0
    %v468 = vxor.u32 %v464, 2147483648
    %v469 = vmul.f32 %v468, 1.442695
    %v470 = vpow.pop %v469
    %v471 = vadd.f32 %v470, 1.0
    %v472 = vrcp.pop %v471
    %v473 = vmul.f32 1.0, %v472
    %475 = vrot.lane.b32.xlu0 %v466, 64
    %v476 = vpop.permute.xlu0 %475
    %v478 = vmul.f32 %v473, %v476
    %v479 = vadd.f32 %v466, %v478
    %v480 = vtanh.pop %v479
    %v481 = vsub.f32 1.0, %v473
    %483 = vrot.lane.b32.xlu0 %v480, 64
    %v484 = vpop.permute.xlu0 %483
    %v486 = vmul.f32 %v481, %v484
    %v487 = vmul.f32 %v473, 0.0
    %v488 = vadd.f32 %v486, %v487
    %v490 = vrot.slane %v488, 7
    %491 = vrot.lane.b32.xlu0 %v490, 120
    %v492 = vpop.permute.xlu0 %491
    %v494 = vrot.slane %v488, 6
    %495 = vrot.lane.b32.xlu0 %v494, 112
    %v496 = vpop.permute.xlu0 %495
    %v498 = vrot.slane %v488, 5
    %499 = vrot.lane.b32.xlu0 %v498, 104
    %v500 = vpop.permute.xlu0 %499
    %v502 = vrot.slane %v488, 4
    %503 = vrot.lane.b32.xlu0 %v502, 96
    %v504 = vpop.permute.xlu0 %503
    %v506 = vrot.slane %v488, 3
    %507 = vrot.lane.b32.xlu0 %v506, 88
    %v508 = vpop.permute.xlu0 %507
    %v510 = vrot.slane %v488, 2
    %511 = vrot.lane.b32.xlu0 %v510, 80
    %v512 = vpop.permute.xlu0 %511
    %v514 = vrot.slane %v488, 1
    %515 = vrot.lane.b32.xlu0 %v514, 72
    %v516 = vpop.permute.xlu0 %515
    %vm518 = vcmask 1040384
    %v519 = vsel %vm518, %v488, %v492
    %vm520 = vcmask 1041408
    %v521 = vsel %vm520, %v519, %v496
    %vm522 = vcmask 1042432
    %v523 = vsel %vm522, %v521, %v500
    %vm524 = vcmask 1043456
    %v525 = vsel %vm524, %v523, %v504
    %vm526 = vcmask 1044480
    %v527 = vsel %vm526, %v525, %v508
    %vm528 = vcmask 1045504
    %v529 = vsel %vm528, %v527, %v512
    %vm530 = vcmask 1046528
    %v531 = vsel %vm530, %v529, %v516
    %533 = vrot.lane.b32.xlu0 %v531, 64
    %v534 = vpop.permute.xlu0 %533
    %v535 = vsel %vm64, %v534, 0
    %537 = vmatprep.subr.mxu0 0.0
    %538 = vmatpush1.msra.mxu0 %v59
    %539 = vmatprep.subr.mxu0 0.0
    %540 = vmatpush1.msra.mxu0 0.0
    %541 = vmatprep.subr.mxu0 0.0
    %542 = vmatpush1.msra.mxu0 0.0
    %543 = vmatprep.subr.mxu0 0.0
    %544 = vmatpush1.msra.mxu0 0.0
    %545 = vmatprep.subr.mxu0 0.0
    %546 = vmatpush1.msra.mxu0 0.0
    %547 = vmatprep.subr.mxu0 0.0
    %548 = vmatpush1.msra.mxu0 0.0
    %549 = vmatprep.subr.mxu0 0.0
    %550 = vmatpush1.msra.mxu0 0.0
    %551 = vmatprep.subr.mxu0 0.0
    %552 = vmatpush1.msra.mxu0 0.0
    %553 = vmatprep.subr.mxu0 0.0
    %554 = vmatpush1.msra.mxu0 0.0
    %555 = vmatprep.subr.mxu0 0.0
    %556 = vmatpush1.msra.mxu0 0.0
    %557 = vmatprep.subr.mxu0 0.0
    %558 = vmatpush1.msra.mxu0 0.0
    %559 = vmatprep.subr.mxu0 0.0
    %560 = vmatpush1.msra.mxu0 0.0
    %561 = vmatprep.subr.mxu0 0.0
    %562 = vmatpush1.msra.mxu0 0.0
    %563 = vmatprep.subr.mxu0 0.0
    %564 = vmatpush1.msra.mxu0 0.0
    %565 = vmatprep.subr.mxu0 0.0
    %566 = vmatpush1.msra.mxu0 0.0
    %567 = vmatprep.subr.mxu0 0.0
    %568 = vmatpush1.msra.mxu0 0.0
    %569 = vmatprep.subr.mxu0 0.0
    %570 = vmatpush1.msra.mxu0 0.0
    %571 = vmatprep.subr.mxu0 0.0
    %572 = vmatpush1.msra.mxu0 0.0
    %573 = vmatprep.subr.mxu0 0.0
    %574 = vmatpush1.msra.mxu0 0.0
    %575 = vmatprep.subr.mxu0 0.0
    %576 = vmatpush1.msra.mxu0 0.0
    %577 = vmatprep.subr.mxu0 0.0
    %578 = vmatpush1.msra.mxu0 0.0
    %579 = vmatprep.subr.mxu0 0.0
    %580 = vmatpush1.msra.mxu0 0.0
    %581 = vmatprep.subr.mxu0 0.0
    %582 = vmatpush1.msra.mxu0 0.0
    %583 = vmatprep.subr.mxu0 0.0
    %584 = vmatpush1.msra.mxu0 0.0
    %585 = vmatprep.subr.mxu0 0.0
    %586 = vmatpush1.msra.mxu0 0.0
    %587 = vmatprep.subr.mxu0 0.0
    %588 = vmatpush1.msra.mxu0 0.0
    %589 = vmatprep.subr.mxu0 0.0
    %590 = vmatpush1.msra.mxu0 0.0
    %591 = vmatprep.subr.mxu0 0.0
    %592 = vmatpush1.msra.mxu0 0.0
    %593 = vmatprep.subr.mxu0 0.0
    %594 = vmatpush1.msra.mxu0 0.0
    %595 = vmatprep.subr.mxu0 0.0
    %596 = vmatpush1.msra.mxu0 0.0
    %597 = vmatprep.subr.mxu0 0.0
    %598 = vmatpush1.msra.mxu0 0.0
    %599 = vmatprep.subr.mxu0 0.0
    %600 = vmatpush1.msra.mxu0 0.0
    %601 = vmatprep.mubr.f32.mxu0 0.0
    %602 = vmatmul.mubr.f32.gmra.mrb[0].mxu0 %v535
    %v603 = vpop.f32.mrb[0].mxu0
    %v604 = vadd.f32 0.0, %v603
    %v605 = vpop.f32.mrb[0].mxu0
    %606 = vdwg.mxu0
    %v608 = vsel %vm64, %v60, 0
    %v611 = vsel %vm64, %v604, 0
    %613 = vmatprep.subr.mxu0 0.0
    %614 = vmatpush1.xpose.msra.mxu0 %v611
    %615 = vmatprep.subr.mxu0 0.0
    %616 = vmatpush1.xpose.msra.mxu0 0.0
    %617 = vmatprep.subr.mxu0 0.0
    %618 = vmatpush1.xpose.msra.mxu0 0.0
    %619 = vmatprep.subr.mxu0 0.0
    %620 = vmatpush1.xpose.msra.mxu0 0.0
    %621 = vmatprep.subr.mxu0 0.0
    %622 = vmatpush1.xpose.msra.mxu0 0.0
    %623 = vmatprep.subr.mxu0 0.0
    %624 = vmatpush1.xpose.msra.mxu0 0.0
    %625 = vmatprep.subr.mxu0 0.0
    %626 = vmatpush1.xpose.msra.mxu0 0.0
    %627 = vmatprep.subr.mxu0 0.0
    %628 = vmatpush1.xpose.msra.mxu0 0.0
    %629 = vmatprep.subr.mxu0 0.0
    %630 = vmatpush1.xpose.msra.mxu0 0.0
    %631 = vmatprep.subr.mxu0 0.0
    %632 = vmatpush1.xpose.msra.mxu0 0.0
    %633 = vmatprep.subr.mxu0 0.0
    %634 = vmatpush1.xpose.msra.mxu0 0.0
    %635 = vmatprep.subr.mxu0 0.0
    %636 = vmatpush1.xpose.msra.mxu0 0.0
    %637 = vmatprep.subr.mxu0 0.0
    %638 = vmatpush1.xpose.msra.mxu0 0.0
    %639 = vmatprep.subr.mxu0 0.0
    %640 = vmatpush1.xpose.msra.mxu0 0.0
    %641 = vmatprep.subr.mxu0 0.0
    %642 = vmatpush1.xpose.msra.mxu0 0.0
    %643 = vmatprep.subr.mxu0 0.0
    %644 = vmatpush1.xpose.msra.mxu0 0.0
    %645 = vmatprep.subr.mxu0 0.0
    %646 = vmatpush1.xpose.msra.mxu0 0.0
    %647 = vmatprep.subr.mxu0 0.0
    %648 = vmatpush1.xpose.msra.mxu0 0.0
    %649 = vmatprep.subr.mxu0 0.0
    %650 = vmatpush1.xpose.msra.mxu0 0.0
    %651 = vmatprep.subr.mxu0 0.0
    %652 = vmatpush1.xpose.msra.mxu0 0.0
    %653 = vmatprep.subr.mxu0 0.0
    %654 = vmatpush1.xpose.msra.mxu0 0.0
    %655 = vmatprep.subr.mxu0 0.0
    %656 = vmatpush1.xpose.msra.mxu0 0.0
    %657 = vmatprep.subr.mxu0 0.0
    %658 = vmatpush1.xpose.msra.mxu0 0.0
    %659 = vmatprep.subr.mxu0 0.0
    %660 = vmatpush1.xpose.msra.mxu0 0.0
    %661 = vmatprep.subr.mxu0 0.0
    %662 = vmatpush1.xpose.msra.mxu0 0.0
    %663 = vmatprep.subr.mxu0 0.0
    %664 = vmatpush1.xpose.msra.mxu0 0.0
    %665 = vmatprep.subr.mxu0 0.0
    %666 = vmatpush1.xpose.msra.mxu0 0.0
    %667 = vmatprep.subr.mxu0 0.0
    %668 = vmatpush1.xpose.msra.mxu0 0.0
    %669 = vmatprep.subr.mxu0 0.0
    %670 = vmatpush1.xpose.msra.mxu0 0.0
    %671 = vmatprep.subr.mxu0 0.0
    %672 = vmatpush1.xpose.msra.mxu0 0.0
    %673 = vmatprep.subr.mxu0 0.0
    %674 = vmatpush1.xpose.msra.mxu0 0.0
    %675 = vmatprep.subr.mxu0 0.0
    %676 = vmatpush1.xpose.msra.mxu0 0.0
    %677 = vmatprep.mubr.f32.mxu0 0.0
    %678 = vmatmul.mubr.f32.gmra.mrb[0].mxu0 %v608
    %v679 = vpop.f32.mrb[0].mxu0
    %v680 = vadd.f32 0.0, %v679
    %v681 = vpop.f32.mrb[0].mxu0
    %682 = vdwg.mxu0
    %683 = vset.pattern.permute.xlu0 16
    %684 = vperm.xlu0 %683, %v604
    %v685 = vpop.permute.xlu0 %684
    %v687 = vlaneseq
    %v688 = vshrl.u32 %v687, 7
    %v689 = vsub.s32 0, %v688
    %v690 = vrot.slane %v680, %v689
    %v691 = vadd.f32 %v685, %v690
    %v692 = vmul.f32 %v691, 0.01
    %v693 = vmax.f32 %v691, %v692
    %v694 = vadd.f32 %v693, %v56
    %v695 = vsel %vm64, %v694, -inf
    %696 = vmax.xlane.f32.xlu0 %v695
    %v697 = vpop.xlane.xlu0 %696
    %v698 = vsub.f32 %v694, %v697
    %v699 = vmul.f32 %v698, 1.442695
    %v700 = vpow.pop %v699
    %v701 = vsel %vm64, %v700, 0.0
    %702 = vadd.xlane.f32.xlu0 %v701
    %v703 = vpop.xlane.xlu0 %702
    %v704 = vrcp.pop %v703
    %v705 = vmul.f32 %v700, %v704
    %v707 = vsel %vm64, %v705, 0
    %709 = vmatprep.subr.mxu0 0.0
    %710 = vmatpush1.msra.mxu0 %v604
    %711 = vmatprep.subr.mxu0 0.0
    %712 = vmatpush1.msra.mxu0 0.0
    %713 = vmatprep.subr.mxu0 0.0
    %714 = vmatpush1.msra.mxu0 0.0
    %715 = vmatprep.subr.mxu0 0.0
    %716 = vmatpush1.msra.mxu0 0.0
    %717 = vmatprep.subr.mxu0 0.0
    %718 = vmatpush1.msra.mxu0 0.0
    %719 = vmatprep.subr.mxu0 0.0
    %720 = vmatpush1.msra.mxu0 0.0
    %721 = vmatprep.subr.mxu0 0.0
    %722 = vmatpush1.msra.mxu0 0.0
    %723 = vmatprep.subr.mxu0 0.0
    %724 = vmatpush1.msra.mxu0 0.0
    %725 = vmatprep.subr.mxu0 0.0
    %726 = vmatpush1.msra.mxu0 0.0
    %727 = vmatprep.subr.mxu0 0.0
    %728 = vmatpush1.msra.mxu0 0.0
    %729 = vmatprep.subr.mxu0 0.0
    %730 = vmatpush1.msra.mxu0 0.0
    %731 = vmatprep.subr.mxu0 0.0
    %732 = vmatpush1.msra.mxu0 0.0
    %733 = vmatprep.subr.mxu0 0.0
    %734 = vmatpush1.msra.mxu0 0.0
    %735 = vmatprep.subr.mxu0 0.0
    %736 = vmatpush1.msra.mxu0 0.0
    %737 = vmatprep.subr.mxu0 0.0
    %738 = vmatpush1.msra.mxu0 0.0
    %739 = vmatprep.subr.mxu0 0.0
    %740 = vmatpush1.msra.mxu0 0.0
    %741 = vmatprep.subr.mxu0 0.0
    %742 = vmatpush1.msra.mxu0 0.0
    %743 = vmatprep.subr.mxu0 0.0
    %744 = vmatpush1.msra.mxu0 0.0
    %745 = vmatprep.subr.mxu0 0.0
    %746 = vmatpush1.msra.mxu0 0.0
    %747 = vmatprep.subr.mxu0 0.0
    %748 = vmatpush1.msra.mxu0 0.0
    %749 = vmatprep.subr.mxu0 0.0
    %750 = vmatpush1.msra.mxu0 0.0
    %751 = vmatprep.subr.mxu0 0.0
    %752 = vmatpush1.msra.mxu0 0.0
    %753 = vmatprep.subr.mxu0 0.0
    %754 = vmatpush1.msra.mxu0 0.0
    %755 = vmatprep.subr.mxu0 0.0
    %756 = vmatpush1.msra.mxu0 0.0
    %757 = vmatprep.subr.mxu0 0.0
    %758 = vmatpush1.msra.mxu0 0.0
    %759 = vmatprep.subr.mxu0 0.0
    %760 = vmatpush1.msra.mxu0 0.0
    %761 = vmatprep.subr.mxu0 0.0
    %762 = vmatpush1.msra.mxu0 0.0
    %763 = vmatprep.subr.mxu0 0.0
    %764 = vmatpush1.msra.mxu0 0.0
    %765 = vmatprep.subr.mxu0 0.0
    %766 = vmatpush1.msra.mxu0 0.0
    %767 = vmatprep.subr.mxu0 0.0
    %768 = vmatpush1.msra.mxu0 0.0
    %769 = vmatprep.subr.mxu0 0.0
    %770 = vmatpush1.msra.mxu0 0.0
    %771 = vmatprep.subr.mxu0 0.0
    %772 = vmatpush1.msra.mxu0 0.0
    %773 = vmatprep.mubr.f32.mxu0 0.0
    %774 = vmatmul.mubr.f32.gmra.mrb[0].mxu0 %v707
    %v775 = vpop.f32.mrb[0].mxu0
    %v776 = vadd.f32 0.0, %v775
    %v777 = vpop.f32.mrb[0].mxu0
    %778 = vdwg.mxu0
    %v780 = vrot.slane %v776, 1
    %781 = vrot.lane.b32.xlu0 %v780, 8
    %v782 = vpop.permute.xlu0 %781
    %v784 = vrot.slane %v776, 2
    %785 = vrot.lane.b32.xlu0 %v784, 16
    %v786 = vpop.permute.xlu0 %785
    %v788 = vrot.slane %v776, 3
    %789 = vrot.lane.b32.xlu0 %v788, 24
    %v790 = vpop.permute.xlu0 %789
    %v792 = vrot.slane %v776, 4
    %793 = vrot.lane.b32.xlu0 %v792, 32
    %v794 = vpop.permute.xlu0 %793
    %v796 = vrot.slane %v776, 5
    %797 = vrot.lane.b32.xlu0 %v796, 40
    %v798 = vpop.permute.xlu0 %797
    %v800 = vrot.slane %v776, 6
    %801 = vrot.lane.b32.xlu0 %v800, 48
    %v802 = vpop.permute.xlu0 %801
    %v804 = vrot.slane %v776, 7
    %805 = vrot.lane.b32.xlu0 %v804, 56
    %v806 = vpop.permute.xlu0 %805
    %v808 = vsel %vm64, %v776, %v782
    %v809 = vsel %vm340, %v808, %v786
    %v810 = vsel %vm342, %v809, %v790
    %v811 = vsel %vm344, %v810, %v794
    %v812 = vsel %vm346, %v811, %v798
    %v813 = vsel %vm348, %v812, %v802
    %v814 = vsel %vm350, %v813, %v806
    %v816 = vlaneseq
    %v817 = vshrl.u32 %v816, 7
    %v818 = vsub.s32 0, %v817
    %v819 = vrot.slane %v61, %v818
    %820 = vrot.lane.b32.xlu0 %v819, 8
    %v821 = vpop.permute.xlu0 %820
    %v823 = vadd.f32 %v604, %v821
    %825 = vrot.lane.b32.xlu0 %v823, 120
    %v826 = vpop.permute.xlu0 %825
    %v827 = vsel %vm64, %v826, 0
    %829 = vmatprep.subr.mxu0 0.0
    %830 = vmatpush1.msra.mxu0 %v57
    %831 = vmatprep.subr.mxu0 0.0
    %832 = vmatpush1.msra.mxu0 0.0
    %833 = vmatprep.subr.mxu0 0.0
    %834 = vmatpush1.msra.mxu0 0.0
    %835 = vmatprep.subr.mxu0 0.0
    %836 = vmatpush1.msra.mxu0 0.0
    %837 = vmatprep.subr.mxu0 0.0
    %838 = vmatpush1.msra.mxu0 0.0
    %839 = vmatprep.subr.mxu0 0.0
    %840 = vmatpush1.msra.mxu0 0.0
    %841 = vmatprep.subr.mxu0 0.0
    %842 = vmatpush1.msra.mxu0 0.0
    %843 = vmatprep.subr.mxu0 0.0
    %844 = vmatpush1.msra.mxu0 0.0
    %845 = vmatprep.subr.mxu0 0.0
    %846 = vmatpush1.msra.mxu0 0.0
    %847 = vmatprep.subr.mxu0 0.0
    %848 = vmatpush1.msra.mxu0 0.0
    %849 = vmatprep.subr.mxu0 0.0
    %850 = vmatpush1.msra.mxu0 0.0
    %851 = vmatprep.subr.mxu0 0.0
    %852 = vmatpush1.msra.mxu0 0.0
    %853 = vmatprep.subr.mxu0 0.0
    %854 = vmatpush1.msra.mxu0 0.0
    %855 = vmatprep.subr.mxu0 0.0
    %856 = vmatpush1.msra.mxu0 0.0
    %857 = vmatprep.subr.mxu0 0.0
    %858 = vmatpush1.msra.mxu0 0.0
    %859 = vmatprep.subr.mxu0 0.0
    %860 = vmatpush1.msra.mxu0 0.0
    %861 = vmatprep.subr.mxu0 0.0
    %862 = vmatpush1.msra.mxu0 0.0
    %863 = vmatprep.subr.mxu0 0.0
    %864 = vmatpush1.msra.mxu0 0.0
    %865 = vmatprep.subr.mxu0 0.0
    %866 = vmatpush1.msra.mxu0 0.0
    %867 = vmatprep.subr.mxu0 0.0
    %868 = vmatpush1.msra.mxu0 0.0
    %869 = vmatprep.subr.mxu0 0.0
    %870 = vmatpush1.msra.mxu0 0.0
    %871 = vmatprep.subr.mxu0 0.0
    %872 = vmatpush1.msra.mxu0 0.0
    %873 = vmatprep.subr.mxu0 0.0
    %874 = vmatpush1.msra.mxu0 0.0
    %875 = vmatprep.subr.mxu0 0.0
    %876 = vmatpush1.msra.mxu0 0.0
    %877 = vmatprep.subr.mxu0 0.0
    %878 = vmatpush1.msra.mxu0 0.0
    %879 = vmatprep.subr.mxu0 0.0
    %880 = vmatpush1.msra.mxu0 0.0
    %881 = vmatprep.subr.mxu0 0.0
    %882 = vmatpush1.msra.mxu0 0.0
    %883 = vmatprep.subr.mxu0 0.0
    %884 = vmatpush1.msra.mxu0 0.0
    %885 = vmatprep.subr.mxu0 0.0
    %886 = vmatpush1.msra.mxu0 0.0
    %887 = vmatprep.subr.mxu0 0.0
    %888 = vmatpush1.msra.mxu0 0.0
    %889 = vmatprep.subr.mxu0 0.0
    %890 = vmatpush1.msra.mxu0 0.0
    %891 = vmatprep.subr.mxu0 0.0
    %892 = vmatpush1.msra.mxu0 0.0
    %893 = vmatprep.mubr.f32.mxu0 0.0
    %894 = vmatmul.mubr.f32.gmra.mrb[0].mxu0 %v827
    %v895 = vpop.f32.mrb[0].mxu0
    %v896 = vadd.f32 0.0, %v895
    %v897 = vpop.f32.mrb[0].mxu0
    %898 = vdwg.mxu0
    %v900 = vsel %vm64, %v896, 0
    %902 = vmatprep.subr.mxu0 0.0
    %903 = vmatpush1.xpose.msra.mxu0 %v900
    %904 = vmatprep.subr.mxu0 0.0
    %905 = vmatpush1.xpose.msra.mxu0 0.0
    %906 = vmatprep.subr.mxu0 0.0
    %907 = vmatpush1.xpose.msra.mxu0 0.0
    %908 = vmatprep.subr.mxu0 0.0
    %909 = vmatpush1.xpose.msra.mxu0 0.0
    %910 = vmatprep.subr.mxu0 0.0
    %911 = vmatpush1.xpose.msra.mxu0 0.0
    %912 = vmatprep.subr.mxu0 0.0
    %913 = vmatpush1.xpose.msra.mxu0 0.0
    %914 = vmatprep.subr.mxu0 0.0
    %915 = vmatpush1.xpose.msra.mxu0 0.0
    %916 = vmatprep.subr.mxu0 0.0
    %917 = vmatpush1.xpose.msra.mxu0 0.0
    %918 = vmatprep.subr.mxu0 0.0
    %919 = vmatpush1.xpose.msra.mxu0 0.0
    %920 = vmatprep.subr.mxu0 0.0
    %921 = vmatpush1.xpose.msra.mxu0 0.0
    %922 = vmatprep.subr.mxu0 0.0
    %923 = vmatpush1.xpose.msra.mxu0 0.0
    %924 = vmatprep.subr.mxu0 0.0
    %925 = vmatpush1.xpose.msra.mxu0 0.0
    %926 = vmatprep.subr.mxu0 0.0
    %927 = vmatpush1.xpose.msra.mxu0 0.0
    %928 = vmatprep.subr.mxu0 0.0
    %929 = vmatpush1.xpose.msra.mxu0 0.0
    %930 = vmatprep.subr.mxu0 0.0
    %931 = vmatpush1.xpose.msra.mxu0 0.0
    %932 = vmatprep.subr.mxu0 0.0
    %933 = vmatpush1.xpose.msra.mxu0 0.0
    %934 = vmatprep.subr.mxu0 0.0
    %935 = vmatpush1.xpose.msra.mxu0 0.0
    %936 = vmatprep.subr.mxu0 0.0
    %937 = vmatpush1.xpose.msra.mxu0 0.0
    %938 = vmatprep.subr.mxu0 0.0
    %939 = vmatpush1.xpose.msra.mxu0 0.0
    %940 = vmatprep.subr.mxu0 0.0
    %941 = vmatpush1.xpose.msra.mxu0 0.0
    %942 = vmatprep.subr.mxu0 0.0
    %943 = vmatpush1.xpose.msra.mxu0 0.0
    %944 = vmatprep.subr.mxu0 0.0
    %945 = vmatpush1.xpose.msra.mxu0 0.0
    %946 = vmatprep.subr.mxu0 0.0
    %947 = vmatpush1.xpose.msra.mxu0 0.0
    %948 = vmatprep.subr.mxu0 0.0
    %949 = vmatpush1.xpose.msra.mxu0 0.0
    %950 = vmatprep.subr.mxu0 0.0
    %951 = vmatpush1.xpose.msra.mxu0 0.0
    %952 = vmatprep.subr.mxu0 0.0
    %953 = vmatpush1.xpose.msra.mxu0 0.0
    %954 = vmatprep.subr.mxu0 0.0
    %955 = vmatpush1.xpose.msra.mxu0 0.0
    %956 = vmatprep.subr.mxu0 0.0
    %957 = vmatpush1.xpose.msra.mxu0 0.0
    %958 = vmatprep.subr.mxu0 0.0
    %959 = vmatpush1.xpose.msra.mxu0 0.0
    %960 = vmatprep.subr.mxu0 0.0
    %961 = vmatpush1.xpose.msra.mxu0 0.0
    %962 = vmatprep.subr.mxu0 0.0
    %963 = vmatpush1.xpose.msra.mxu0 0.0
    %964 = vmatprep.subr.mxu0 0.0
    %965 = vmatpush1.xpose.msra.mxu0 0.0
    %966 = vmatprep.mubr.f32.mxu0 0.0
    %967 = vmatmul.mubr.f32.gmra.mrb[0].mxu0 %v139
    %v968 = vpop.f32.mrb[0].mxu0
    %v969 = vadd.f32 0.0, %v968
    %v970 = vpop.f32.mrb[0].mxu0
    %971 = vdwg.mxu0
    %972 = vset.pattern.permute.xlu0 8
    %973 = vperm.xlu0 %972, %v896
    %v974 = vpop.permute.xlu0 %973
    %v976 = vlaneseq
    %v977 = vshrl.u32 %v976, 7
    %v978 = vsub.s32 0, %v977
    %v979 = vrot.slane %v969, %v978
    %v980 = vadd.f32 %v974, %v979
    %v981 = vmul.f32 %v980, 0.01
    %v982 = vmax.f32 %v980, %v981
    %v983 = vadd.f32 %v982, %v56
    %v984 = vsel %vm64, %v983, -inf
    %985 = vmax.xlane.f32.xlu0 %v984
    %v986 = vpop.xlane.xlu0 %985
    %v987 = vsub.f32 %v983, %v986
    %v988 = vmul.f32 %v987, 1.442695
    %v989 = vpow.pop %v988
    %v990 = vsel %vm64, %v989, 0.0
    %991 = vadd.xlane.f32.xlu0 %v990
    %v992 = vpop.xlane.xlu0 %991
    %v993 = vrcp.pop %v992
    %v994 = vmul.f32 %v989, %v993
    %v996 = vsel %vm64, %v994, 0
    %998 = vmatprep.subr.mxu0 0.0
    %999 = vmatpush1.msra.mxu0 %v896
    %1000 = vmatprep.subr.mxu0 0.0
    %1001 = vmatpush1.msra.mxu0 0.0
    %1002 = vmatprep.subr.mxu0 0.0
    %1003 = vmatpush1.msra.mxu0 0.0
    %1004 = vmatprep.subr.mxu0 0.0
    %1005 = vmatpush1.msra.mxu0 0.0
    %1006 = vmatprep.subr.mxu0 0.0
    %1007 = vmatpush1.msra.mxu0 0.0
    %1008 = vmatprep.subr.mxu0 0.0
    %1009 = vmatpush1.msra.mxu0 0.0
    %1010 = vmatprep.subr.mxu0 0.0
    %1011 = vmatpush1.msra.mxu0 0.0
    %1012 = vmatprep.subr.mxu0 0.0
    %1013 = vmatpush1.msra.mxu0 0.0
    %1014 = vmatprep.subr.mxu0 0.0
    %1015 = vmatpush1.msra.mxu0 0.0
    %1016 = vmatprep.subr.mxu0 0.0
    %1017 = vmatpush1.msra.mxu0 0.0
    %1018 = vmatprep.subr.mxu0 0.0
    %1019 = vmatpush1.msra.mxu0 0.0
    %1020 = vmatprep.subr.mxu0 0.0
    %1021 = vmatpush1.msra.mxu0 0.0
    %1022 = vmatprep.subr.mxu0 0.0
    %1023 = vmatpush1.msra.mxu0 0.0
    %1024 = vmatprep.subr.mxu0 0.0
    %1025 = vmatpush1.msra.mxu0 0.0
    %1026 = vmatprep.subr.mxu0 0.0
    %1027 = vmatpush1.msra.mxu0 0.0
    %1028 = vmatprep.subr.mxu0 0.0
    %1029 = vmatpush1.msra.mxu0 0.0
    %1030 = vmatprep.subr.mxu0 0.0
    %1031 = vmatpush1.msra.mxu0 0.0
    %1032 = vmatprep.subr.mxu0 0.0
    %1033 = vmatpush1.msra.mxu0 0.0
    %1034 = vmatprep.subr.mxu0 0.0
    %1035 = vmatpush1.msra.mxu0 0.0
    %1036 = vmatprep.subr.mxu0 0.0
    %1037 = vmatpush1.msra.mxu0 0.0
    %1038 = vmatprep.subr.mxu0 0.0
    %1039 = vmatpush1.msra.mxu0 0.0
    %1040 = vmatprep.subr.mxu0 0.0
    %1041 = vmatpush1.msra.mxu0 0.0
    %1042 = vmatprep.subr.mxu0 0.0
    %1043 = vmatpush1.msra.mxu0 0.0
    %1044 = vmatprep.subr.mxu0 0.0
    %1045 = vmatpush1.msra.mxu0 0.0
    %1046 = vmatprep.subr.mxu0 0.0
    %1047 = vmatpush1.msra.mxu0 0.0
    %1048 = vmatprep.subr.mxu0 0.0
    %1049 = vmatpush1.msra.mxu0 0.0
    %1050 = vmatprep.subr.mxu0 0.0
    %1051 = vmatpush1.msra.mxu0 0.0
    %1052 = vmatprep.subr.mxu0 0.0
    %1053 = vmatpush1.msra.mxu0 0.0
    %1054 = vmatprep.subr.mxu0 0.0
    %1055 = vmatpush1.msra.mxu0 0.0
    %1056 = vmatprep.subr.mxu0 0.0
    %1057 = vmatpush1.msra.mxu0 0.0
    %1058 = vmatprep.subr.mxu0 0.0
    %1059 = vmatpush1.msra.mxu0 0.0
    %1060 = vmatprep.subr.mxu0 0.0
    %1061 = vmatpush1.msra.mxu0 0.0
    %1062 = vmatprep.mubr.f32.mxu0 0.0
    %1063 = vmatmul.mubr.f32.gmra.mrb[0].mxu0 %v996
    %v1064 = vpop.f32.mrb[0].mxu0
    %v1065 = vadd.f32 0.0, %v1064
    %v1066 = vpop.f32.mrb[0].mxu0
    %1067 = vdwg.mxu0
    %v1069 = vrot.slane %v1065, 1
    %1070 = vrot.lane.b32.xlu0 %v1069, 8
    %v1071 = vpop.permute.xlu0 %1070
    %v1073 = vrot.slane %v1065, 2
    %1074 = vrot.lane.b32.xlu0 %v1073, 16
    %v1075 = vpop.permute.xlu0 %1074
    %v1077 = vrot.slane %v1065, 3
    %1078 = vrot.lane.b32.xlu0 %v1077, 24
    %v1079 = vpop.permute.xlu0 %1078
    %v1081 = vrot.slane %v1065, 4
    %1082 = vrot.lane.b32.xlu0 %v1081, 32
    %v1083 = vpop.permute.xlu0 %1082
    %v1085 = vrot.slane %v1065, 5
    %1086 = vrot.lane.b32.xlu0 %v1085, 40
    %v1087 = vpop.permute.xlu0 %1086
    %v1089 = vrot.slane %v1065, 6
    %1090 = vrot.lane.b32.xlu0 %v1089, 48
    %v1091 = vpop.permute.xlu0 %1090
    %v1093 = vrot.slane %v1065, 7
    %1094 = vrot.lane.b32.xlu0 %v1093, 56
    %v1095 = vpop.permute.xlu0 %1094
    %1098 = vrot.lane.b32.xlu0 %v814, 64
    %v1099 = vpop.permute.xlu0 %1098
    %v1101 = vsel %vm64, %v1065, %v1071
    %v1102 = vsel %vm340, %v1101, %v1075
    %v1103 = vsel %vm342, %v1102, %v1079
    %v1104 = vsel %vm344, %v1103, %v1083
    %v1105 = vsel %vm346, %v1104, %v1087
    %v1106 = vsel %vm348, %v1105, %v1091
    %v1107 = vsel %vm350, %v1106, %v1095
    %v1108 = vsel %vm352, %v1107, %v1099
    %1109 = vmatprep.subr.mxu0 %v355
    %1110 = vmatpush1.msra.mxu0 %v354
    %1111 = vmatprep.subr.mxu0 %v357
    %1112 = vmatpush1.msra.mxu0 %v356
    %1113 = vmatprep.subr.mxu0 %v359
    %1114 = vmatpush1.msra.mxu0 %v358
    %1115 = vmatprep.subr.mxu0 %v361
    %1116 = vmatpush1.msra.mxu0 %v360
    %1117 = vmatprep.subr.mxu0 %v363
    %1118 = vmatpush1.msra.mxu0 %v362
    %1119 = vmatprep.subr.mxu0 %v365
    %1120 = vmatpush1.msra.mxu0 %v364
    %1121 = vmatprep.subr.mxu0 %v367
    %1122 = vmatpush1.msra.mxu0 %v366
    %1123 = vmatprep.subr.mxu0 %v369
    %1124 = vmatpush1.msra.mxu0 %v368
    %1125 = vmatprep.subr.mxu0 %v371
    %1126 = vmatpush1.msra.mxu0 %v370
    %1127 = vmatprep.subr.mxu0 %v373
    %1128 = vmatpush1.msra.mxu0 %v372
    %1129 = vmatprep.subr.mxu0 %v375
    %1130 = vmatpush1.msra.mxu0 %v374
    %1131 = vmatprep.subr.mxu0 %v377
    %1132 = vmatpush1.msra.mxu0 %v376
    %1133 = vmatprep.subr.mxu0 %v379
    %1134 = vmatpush1.msra.mxu0 %v378
    %1135 = vmatprep.subr.mxu0 %v381
    %1136 = vmatpush1.msra.mxu0 %v380
    %1137 = vmatprep.subr.mxu0 %v383
    %1138 = vmatpush1.msra.mxu0 %v382
    %1139 = vmatprep.subr.mxu0 %v385
    %1140 = vmatpush1.msra.mxu0 %v384
    %1141 = vmatprep.subr.mxu0 0.0
    %1142 = vmatpush1.msra.mxu0 0.0
    %1143 = vmatprep.subr.mxu0 0.0
    %1144 = vmatpush1.msra.mxu0 0.0
    %1145 = vmatprep.subr.mxu0 0.0
    %1146 = vmatpush1.msra.mxu0 0.0
    %1147 = vmatprep.subr.mxu0 0.0
    %1148 = vmatpush1.msra.mxu0 0.0
    %1149 = vmatprep.subr.mxu0 0.0
    %1150 = vmatpush1.msra.mxu0 0.0
    %1151 = vmatprep.subr.mxu0 0.0
    %1152 = vmatpush1.msra.mxu0 0.0
    %1153 = vmatprep.subr.mxu0 0.0
    %1154 = vmatpush1.msra.mxu0 0.0
    %1155 = vmatprep.subr.mxu0 0.0
    %1156 = vmatpush1.msra.mxu0 0.0
    %1157 = vmatprep.subr.mxu0 0.0
    %1158 = vmatpush1.msra.mxu0 0.0
    %1159 = vmatprep.subr.mxu0 0.0
    %1160 = vmatpush1.msra.mxu0 0.0
    %1161 = vmatprep.subr.mxu0 0.0
    %1162 = vmatpush1.msra.mxu0 0.0
    %1163 = vmatprep.subr.mxu0 0.0
    %1164 = vmatpush1.msra.mxu0 0.0
    %1165 = vmatprep.subr.mxu0 0.0
    %1166 = vmatpush1.msra.mxu0 0.0
    %1167 = vmatprep.subr.mxu0 0.0
    %1168 = vmatpush1.msra.mxu0 0.0
    %1169 = vmatprep.subr.mxu0 0.0
    %1170 = vmatpush1.msra.mxu0 0.0
    %1171 = vmatprep.subr.mxu0 0.0
    %1172 = vmatpush1.msra.mxu0 0.0
    %1173 = vmatprep.mubr.f32.mxu0 0.0
    %1174 = vmatmul.mubr.f32.gmra.mrb[0].mxu0 %v1108
    %v1175 = vpop.f32.mrb[0].mxu0
    %v1176 = vadd.f32 %v390, %v1175
    %v1177 = vpop.f32.mrb[0].mxu0
    %v1178 = vadd.f32 %v394, %v1177
    %1179 = vdwg.mxu0
    %v1180 = vxor.u32 %v1176, 2147483648
    %v1181 = vmul.f32 %v1180, 1.442695
    %v1182 = vpow.pop %v1181
    %v1183 = vadd.f32 %v1182, 1.0
    %v1184 = vrcp.pop %v1183
    %v1185 = vmul.f32 1.0, %v1184
    %1187 = vrot.lane.b32.xlu0 %v1178, 64
    %v1188 = vpop.permute.xlu0 %1187
    %v1190 = vmul.f32 %v1185, %v1188
    %v1191 = vadd.f32 %v1178, %v1190
    %v1192 = vtanh.pop %v1191
    %v1193 = vsub.f32 1.0, %v1185
    %1195 = vrot.lane.b32.xlu0 %v1192, 64
    %v1196 = vpop.permute.xlu0 %1195
    %v1198 = vmul.f32 %v1193, %v1196
    %v1199 = vmul.f32 %v1185, %v1099
    %v1200 = vadd.f32 %v1198, %v1199
    %v1202 = vrot.slane %v1200, 7
    %1203 = vrot.lane.b32.xlu0 %v1202, 120
    %v1204 = vpop.permute.xlu0 %1203
    %v1206 = vrot.slane %v1200, 6
    %1207 = vrot.lane.b32.xlu0 %v1206, 112
    %v1208 = vpop.permute.xlu0 %1207
    %v1210 = vrot.slane %v1200, 5
    %1211 = vrot.lane.b32.xlu0 %v1210, 104
    %v1212 = vpop.permute.xlu0 %1211
    %v1214 = vrot.slane %v1200, 4
    %1215 = vrot.lane.b32.xlu0 %v1214, 96
    %v1216 = vpop.permute.xlu0 %1215
    %v1218 = vrot.slane %v1200, 3
    %1219 = vrot.lane.b32.xlu0 %v1218, 88
    %v1220 = vpop.permute.xlu0 %1219
    %v1222 = vrot.slane %v1200, 2
    %1223 = vrot.lane.b32.xlu0 %v1222, 80
    %v1224 = vpop.permute.xlu0 %1223
    %v1226 = vrot.slane %v1200, 1
    %1227 = vrot.lane.b32.xlu0 %v1226, 72
    %v1228 = vpop.permute.xlu0 %1227
    %v1230 = vsel %vm518, %v1200, %v1204
    %v1231 = vsel %vm520, %v1230, %v1208
    %v1232 = vsel %vm522, %v1231, %v1212
    %v1233 = vsel %vm524, %v1232, %v1216
    %v1234 = vsel %vm526, %v1233, %v1220
    %v1235 = vsel %vm528, %v1234, %v1224
    %v1236 = vsel %vm530, %v1235, %v1228
    %1238 = vrot.lane.b32.xlu0 %v1236, 64
    %v1239 = vpop.permute.xlu0 %1238
    %v1240 = vsel %vm64, %v1239, 0
    %1242 = vmatprep.subr.mxu0 0.0
    %1243 = vmatpush1.msra.mxu0 %v59
    %1244 = vmatprep.subr.mxu0 0.0
    %1245 = vmatpush1.msra.mxu0 0.0
    %1246 = vmatprep.subr.mxu0 0.0
    %1247 = vmatpush1.msra.mxu0 0.0
    %1248 = vmatprep.subr.mxu0 0.0
    %1249 = vmatpush1.msra.mxu0 0.0
    %1250 = vmatprep.subr.mxu0 0.0
    %1251 = vmatpush1.msra.mxu0 0.0
    %1252 = vmatprep.subr.mxu0 0.0
    %1253 = vmatpush1.msra.mxu0 0.0
    %1254 = vmatprep.subr.mxu0 0.0
    %1255 = vmatpush1.msra.mxu0 0.0
    %1256 = vmatprep.subr.mxu0 0.0
    %1257 = vmatpush1.msra.mxu0 0.0
    %1258 = vmatprep.subr.mxu0 0.0
    %1259 = vmatpush1.msra.mxu0 0.0
    %1260 = vmatprep.subr.mxu0 0.0
    %1261 = vmatpush1.msra.mxu0 0.0
    %1262 = vmatprep.subr.mxu0 0.0
    %1263 = vmatpush1.msra.mxu0 0.0
    %1264 = vmatprep.subr.mxu0 0.0
    %1265 = vmatpush1.msra.mxu0 0.0
    %1266 = vmatprep.subr.mxu0 0.0
    %1267 = vmatpush1.msra.mxu0 0.0
    %1268 = vmatprep.subr.mxu0 0.0
    %1269 = vmatpush1.msra.mxu0 0.0
    %1270 = vmatprep.subr.mxu0 0.0
    %1271 = vmatpush1.msra.mxu0 0.0
    %1272 = vmatprep.subr.mxu0 0.0
    %1273 = vmatpush1.msra.mxu0 0.0
    %1274 = vmatprep.subr.mxu0 0.0
    %1275 = vmatpush1.msra.mxu0 0.0
    %1276 = vmatprep.subr.mxu0 0.0
    %1277 = vmatpush1.msra.mxu0 0.0
    %1278 = vmatprep.subr.mxu0 0.0
    %1279 = vmatpush1.msra.mxu0 0.0
    %1280 = vmatprep.subr.mxu0 0.0
    %1281 = vmatpush1.msra.mxu0 0.0
    %1282 = vmatprep.subr.mxu0 0.0
    %1283 = vmatpush1.msra.mxu0 0.0
    %1284 = vmatprep.subr.mxu0 0.0
    %1285 = vmatpush1.msra.mxu0 0.0
    %1286 = vmatprep.subr.mxu0 0.0
    %1287 = vmatpush1.msra.mxu0 0.0
    %1288 = vmatprep.subr.mxu0 0.0
    %1289 = vmatpush1.msra.mxu0 0.0
    %1290 = vmatprep.subr.mxu0 0.0
    %1291 = vmatpush1.msra.mxu0 0.0
    %1292 = vmatprep.subr.mxu0 0.0
    %1293 = vmatpush1.msra.mxu0 0.0
    %1294 = vmatprep.subr.mxu0 0.0
    %1295 = vmatpush1.msra.mxu0 0.0
    %1296 = vmatprep.subr.mxu0 0.0
    %1297 = vmatpush1.msra.mxu0 0.0
    %1298 = vmatprep.subr.mxu0 0.0
    %1299 = vmatpush1.msra.mxu0 0.0
    %1300 = vmatprep.subr.mxu0 0.0
    %1301 = vmatpush1.msra.mxu0 0.0
    %1302 = vmatprep.subr.mxu0 0.0
    %1303 = vmatpush1.msra.mxu0 0.0
    %1304 = vmatprep.subr.mxu0 0.0
    %1305 = vmatpush1.msra.mxu0 0.0
    %1306 = vmatprep.mubr.f32.mxu0 0.0
    %1307 = vmatmul.mubr.f32.gmra.mrb[0].mxu0 %v1240
    %v1308 = vpop.f32.mrb[0].mxu0
    %v1309 = vadd.f32 0.0, %v1308
    %v1310 = vpop.f32.mrb[0].mxu0
    %1311 = vdwg.mxu0
    %v1313 = vsel %vm64, %v1309, 0
    %1315 = vmatprep.subr.mxu0 0.0
    %1316 = vmatpush1.xpose.msra.mxu0 %v1313
    %1317 = vmatprep.subr.mxu0 0.0
    %1318 = vmatpush1.xpose.msra.mxu0 0.0
    %1319 = vmatprep.subr.mxu0 0.0
    %1320 = vmatpush1.xpose.msra.mxu0 0.0
    %1321 = vmatprep.subr.mxu0 0.0
    %1322 = vmatpush1.xpose.msra.mxu0 0.0
    %1323 = vmatprep.subr.mxu0 0.0
    %1324 = vmatpush1.xpose.msra.mxu0 0.0
    %1325 = vmatprep.subr.mxu0 0.0
    %1326 = vmatpush1.xpose.msra.mxu0 0.0
    %1327 = vmatprep.subr.mxu0 0.0
    %1328 = vmatpush1.xpose.msra.mxu0 0.0
    %1329 = vmatprep.subr.mxu0 0.0
    %1330 = vmatpush1.xpose.msra.mxu0 0.0
    %1331 = vmatprep.subr.mxu0 0.0
    %1332 = vmatpush1.xpose.msra.mxu0 0.0
    %1333 = vmatprep.subr.mxu0 0.0
    %1334 = vmatpush1.xpose.msra.mxu0 0.0
    %1335 = vmatprep.subr.mxu0 0.0
    %1336 = vmatpush1.xpose.msra.mxu0 0.0
    %1337 = vmatprep.subr.mxu0 0.0
    %1338 = vmatpush1.xpose.msra.mxu0 0.0
    %1339 = vmatprep.subr.mxu0 0.0
    %1340 = vmatpush1.xpose.msra.mxu0 0.0
    %1341 = vmatprep.subr.mxu0 0.0
    %1342 = vmatpush1.xpose.msra.mxu0 0.0
    %1343 = vmatprep.subr.mxu0 0.0
    %1344 = vmatpush1.xpose.msra.mxu0 0.0
    %1345 = vmatprep.subr.mxu0 0.0
    %1346 = vmatpush1.xpose.msra.mxu0 0.0
    %1347 = vmatprep.subr.mxu0 0.0
    %1348 = vmatpush1.xpose.msra.mxu0 0.0
    %1349 = vmatprep.subr.mxu0 0.0
    %1350 = vmatpush1.xpose.msra.mxu0 0.0
    %1351 = vmatprep.subr.mxu0 0.0
    %1352 = vmatpush1.xpose.msra.mxu0 0.0
    %1353 = vmatprep.subr.mxu0 0.0
    %1354 = vmatpush1.xpose.msra.mxu0 0.0
    %1355 = vmatprep.subr.mxu0 0.0
    %1356 = vmatpush1.xpose.msra.mxu0 0.0
    %1357 = vmatprep.subr.mxu0 0.0
    %1358 = vmatpush1.xpose.msra.mxu0 0.0
    %1359 = vmatprep.subr.mxu0 0.0
    %1360 = vmatpush1.xpose.msra.mxu0 0.0
    %1361 = vmatprep.subr.mxu0 0.0
    %1362 = vmatpush1.xpose.msra.mxu0 0.0
    %1363 = vmatprep.subr.mxu0 0.0
    %1364 = vmatpush1.xpose.msra.mxu0 0.0
    %1365 = vmatprep.subr.mxu0 0.0
    %1366 = vmatpush1.xpose.msra.mxu0 0.0
    %1367 = vmatprep.subr.mxu0 0.0
    %1368 = vmatpush1.xpose.msra.mxu0 0.0
    %1369 = vmatprep.subr.mxu0 0.0
    %1370 = vmatpush1.xpose.msra.mxu0 0.0
    %1371 = vmatprep.subr.mxu0 0.0
    %1372 = vmatpush1.xpose.msra.mxu0 0.0
    %1373 = vmatprep.subr.mxu0 0.0
    %1374 = vmatpush1.xpose.msra.mxu0 0.0
    %1375 = vmatprep.subr.mxu0 0.0
    %1376 = vmatpush1.xpose.msra.mxu0 0.0
    %1377 = vmatprep.subr.mxu0 0.0
    %1378 = vmatpush1.xpose.msra.mxu0 0.0
    %1379 = vmatprep.mubr.f32.mxu0 0.0
    %1380 = vmatmul.mubr.f32.gmra.mrb[0].mxu0 %v608
    %v1381 = vpop.f32.mrb[0].mxu0
    %v1382 = vadd.f32 0.0, %v1381
    %v1383 = vpop.f32.mrb[0].mxu0
    %1384 = vdwg.mxu0
    %1385 = vset.pattern.permute.xlu0 16
    %1386 = vperm.xlu0 %1385, %v1309
    %v1387 = vpop.permute.xlu0 %1386
    %v1389 = vlaneseq
    %v1390 = vshrl.u32 %v1389, 7
    %v1391 = vsub.s32 0, %v1390
    %v1392 = vrot.slane %v1382, %v1391
    %v1393 = vadd.f32 %v1387, %v1392
    %v1394 = vmul.f32 %v1393, 0.01
    %v1395 = vmax.f32 %v1393, %v1394
    %v1396 = vadd.f32 %v1395, %v56
    %v1397 = vsel %vm64, %v1396, -inf
    %1398 = vmax.xlane.f32.xlu0 %v1397
    %v1399 = vpop.xlane.xlu0 %1398
    %v1400 = vsub.f32 %v1396, %v1399
    %v1401 = vmul.f32 %v1400, 1.442695
    %v1402 = vpow.pop %v1401
    %v1403 = vsel %vm64, %v1402, 0.0
    %1404 = vadd.xlane.f32.xlu0 %v1403
    %v1405 = vpop.xlane.xlu0 %1404
    %v1406 = vrcp.pop %v1405
    %v1407 = vmul.f32 %v1402, %v1406
    %v1409 = vsel %vm64, %v1407, 0
    %1411 = vmatprep.subr.mxu0 0.0
    %1412 = vmatpush1.msra.mxu0 %v1309
    %1413 = vmatprep.subr.mxu0 0.0
    %1414 = vmatpush1.msra.mxu0 0.0
    %1415 = vmatprep.subr.mxu0 0.0
    %1416 = vmatpush1.msra.mxu0 0.0
    %1417 = vmatprep.subr.mxu0 0.0
    %1418 = vmatpush1.msra.mxu0 0.0
    %1419 = vmatprep.subr.mxu0 0.0
    %1420 = vmatpush1.msra.mxu0 0.0
    %1421 = vmatprep.subr.mxu0 0.0
    %1422 = vmatpush1.msra.mxu0 0.0
    %1423 = vmatprep.subr.mxu0 0.0
    %1424 = vmatpush1.msra.mxu0 0.0
    %1425 = vmatprep.subr.mxu0 0.0
    %1426 = vmatpush1.msra.mxu0 0.0
    %1427 = vmatprep.subr.mxu0 0.0
    %1428 = vmatpush1.msra.mxu0 0.0
    %1429 = vmatprep.subr.mxu0 0.0
    %1430 = vmatpush1.msra.mxu0 0.0
    %1431 = vmatprep.subr.mxu0 0.0
    %1432 = vmatpush1.msra.mxu0 0.0
    %1433 = vmatprep.subr.mxu0 0.0
    %1434 = vmatpush1.msra.mxu0 0.0
    %1435 = vmatprep.subr.mxu0 0.0
    %1436 = vmatpush1.msra.mxu0 0.0
    %1437 = vmatprep.subr.mxu0 0.0
    %1438 = vmatpush1.msra.mxu0 0.0
    %1439 = vmatprep.subr.mxu0 0.0
    %1440 = vmatpush1.msra.mxu0 0.0
    %1441 = vmatprep.subr.mxu0 0.0
    %1442 = vmatpush1.msra.mxu0 0.0
    %1443 = vmatprep.subr.mxu0 0.0
    %1444 = vmatpush1.msra.mxu0 0.0
    %1445 = vmatprep.subr.mxu0 0.0
    %1446 = vmatpush1.msra.mxu0 0.0
    %1447 = vmatprep.subr.mxu0 0.0
    %1448 = vmatpush1.msra.mxu0 0.0
    %1449 = vmatprep.subr.mxu0 0.0
    %1450 = vmatpush1.msra.mxu0 0.0
    %1451 = vmatprep.subr.mxu0 0.0
    %1452 = vmatpush1.msra.mxu0 0.0
    %1453 = vmatprep.subr.mxu0 0.0
    %1454 = vmatpush1.msra.mxu0 0.0
    %1455 = vmatprep.subr.mxu0 0.0
    %1456 = vmatpush1.msra.mxu0 0.0
    %1457 = vmatprep.subr.mxu0 0.0
    %1458 = vmatpush1.msra.mxu0 0.0
    %1459 = vmatprep.subr.mxu0 0.0
    %1460 = vmatpush1.msra.mxu0 0.0
    %1461 = vmatprep.subr.mxu0 0.0
    %1462 = vmatpush1.msra.mxu0 0.0
    %1463 = vmatprep.subr.mxu0 0.0
    %1464 = vmatpush1.msra.mxu0 0.0
    %1465 = vmatprep.subr.mxu0 0.0
    %1466 = vmatpush1.msra.mxu0 0.0
    %1467 = vmatprep.subr.mxu0 0.0
    %1468 = vmatpush1.msra.mxu0 0.0
    %1469 = vmatprep.subr.mxu0 0.0
    %1470 = vmatpush1.msra.mxu0 0.0
    %1471 = vmatprep.subr.mxu0 0.0
    %1472 = vmatpush1.msra.mxu0 0.0
    %1473 = vmatprep.subr.mxu0 0.0
    %1474 = vmatpush1.msra.mxu0 0.0
    %1475 = vmatprep.mubr.f32.mxu0 0.0
    %1476 = vmatmul.mubr.f32.gmra.mrb[0].mxu0 %v1409
    %v1477 = vpop.f32.mrb[0].mxu0
    %v1478 = vadd.f32 0.0, %v1477
    %v1479 = vpop.f32.mrb[0].mxu0
    %1480 = vdwg.mxu0
    %v1482 = vrot.slane %v1478, 1
    %1483 = vrot.lane.b32.xlu0 %v1482, 8
    %v1484 = vpop.permute.xlu0 %1483
    %v1486 = vrot.slane %v1478, 2
    %1487 = vrot.lane.b32.xlu0 %v1486, 16
    %v1488 = vpop.permute.xlu0 %1487
    %v1490 = vrot.slane %v1478, 3
    %1491 = vrot.lane.b32.xlu0 %v1490, 24
    %v1492 = vpop.permute.xlu0 %1491
    %v1494 = vrot.slane %v1478, 4
    %1495 = vrot.lane.b32.xlu0 %v1494, 32
    %v1496 = vpop.permute.xlu0 %1495
    %v1498 = vrot.slane %v1478, 5
    %1499 = vrot.lane.b32.xlu0 %v1498, 40
    %v1500 = vpop.permute.xlu0 %1499
    %v1502 = vrot.slane %v1478, 6
    %1503 = vrot.lane.b32.xlu0 %v1502, 48
    %v1504 = vpop.permute.xlu0 %1503
    %v1506 = vrot.slane %v1478, 7
    %1507 = vrot.lane.b32.xlu0 %v1506, 56
    %v1508 = vpop.permute.xlu0 %1507
    %v1510 = vsel %vm64, %v1478, %v1484
    %v1511 = vsel %vm340, %v1510, %v1488
    %v1512 = vsel %vm342, %v1511, %v1492
    %v1513 = vsel %vm344, %v1512, %v1496
    %v1514 = vsel %vm346, %v1513, %v1500
    %v1515 = vsel %vm348, %v1514, %v1504
    %v1516 = vsel %vm350, %v1515, %v1508
    %v1517 = vadd.f32 %v1309, %v821
    %1519 = vrot.lane.b32.xlu0 %v1517, 120
    %v1520 = vpop.permute.xlu0 %1519
    %v1521 = vsel %vm64, %v1520, 0
    %1523 = vmatprep.subr.mxu0 0.0
    %1524 = vmatpush1.msra.mxu0 %v57
    %1525 = vmatprep.subr.mxu0 0.0
    %1526 = vmatpush1.msra.mxu0 0.0
    %1527 = vmatprep.subr.mxu0 0.0
    %1528 = vmatpush1.msra.mxu0 0.0
    %1529 = vmatprep.subr.mxu0 0.0
    %1530 = vmatpush1.msra.mxu0 0.0
    %1531 = vmatprep.subr.mxu0 0.0
    %1532 = vmatpush1.msra.mxu0 0.0
    %1533 = vmatprep.subr.mxu0 0.0
    %1534 = vmatpush1.msra.mxu0 0.0
    %1535 = vmatprep.subr.mxu0 0.0
    %1536 = vmatpush1.msra.mxu0 0.0
    %1537 = vmatprep.subr.mxu0 0.0
    %1538 = vmatpush1.msra.mxu0 0.0
    %1539 = vmatprep.subr.mxu0 0.0
    %1540 = vmatpush1.msra.mxu0 0.0
    %1541 = vmatprep.subr.mxu0 0.0
    %1542 = vmatpush1.msra.mxu0 0.0
    %1543 = vmatprep.subr.mxu0 0.0
    %1544 = vmatpush1.msra.mxu0 0.0
    %1545 = vmatprep.subr.mxu0 0.0
    %1546 = vmatpush1.msra.mxu0 0.0
    %1547 = vmatprep.subr.mxu0 0.0
    %1548 = vmatpush1.msra.mxu0 0.0
    %1549 = vmatprep.subr.mxu0 0.0
    %1550 = vmatpush1.msra.mxu0 0.0
    %1551 = vmatprep.subr.mxu0 0.0
    %1552 = vmatpush1.msra.mxu0 0.0
    %1553 = vmatprep.subr.mxu0 0.0
    %1554 = vmatpush1.msra.mxu0 0.0
    %1555 = vmatprep.subr.mxu0 0.0
    %1556 = vmatpush1.msra.mxu0 0.0
    %1557 = vmatprep.subr.mxu0 0.0
    %1558 = vmatpush1.msra.mxu0 0.0
    %1559 = vmatprep.subr.mxu0 0.0
    %1560 = vmatpush1.msra.mxu0 0.0
    %1561 = vmatprep.subr.mxu0 0.0
    %1562 = vmatpush1.msra.mxu0 0.0
    %1563 = vmatprep.subr.mxu0 0.0
    %1564 = vmatpush1.msra.mxu0 0.0
    %1565 = vmatprep.subr.mxu0 0.0
    %1566 = vmatpush1.msra.mxu0 0.0
    %1567 = vmatprep.subr.mxu0 0.0
    %1568 = vmatpush1.msra.mxu0 0.0
    %1569 = vmatprep.subr.mxu0 0.0
    %1570 = vmatpush1.msra.mxu0 0.0
    %1571 = vmatprep.subr.mxu0 0.0
    %1572 = vmatpush1.msra.mxu0 0.0
    %1573 = vmatprep.subr.mxu0 0.0
    %1574 = vmatpush1.msra.mxu0 0.0
    %1575 = vmatprep.subr.mxu0 0.0
    %1576 = vmatpush1.msra.mxu0 0.0
    %1577 = vmatprep.subr.mxu0 0.0
    %1578 = vmatpush1.msra.mxu0 0.0
    %1579 = vmatprep.subr.mxu0 0.0
    %1580 = vmatpush1.msra.mxu0 0.0
    %1581 = vmatprep.subr.mxu0 0.0
    %1582 = vmatpush1.msra.mxu0 0.0
    %1583 = vmatprep.subr.mxu0 0.0
    %1584 = vmatpush1.msra.mxu0 0.0
    %1585 = vmatprep.subr.mxu0 0.0
    %1586 = vmatpush1.msra.mxu0 0.0
    %1587 = vmatprep.mubr.f32.mxu0 0.0
    %1588 = vmatmul.mubr.f32.gmra.mrb[0].mxu0 %v1521
    %v1589 = vpop.f32.mrb[0].mxu0
    %v1590 = vadd.f32 0.0, %v1589
    %v1591 = vpop.f32.mrb[0].mxu0
    %1592 = vdwg.mxu0
    %v1594 = vsel %vm64, %v1590, 0
    %1596 = vmatprep.subr.mxu0 0.0
    %1597 = vmatpush1.xpose.msra.mxu0 %v1594
    %1598 = vmatprep.subr.mxu0 0.0
    %1599 = vmatpush1.xpose.msra.mxu0 0.0
    %1600 = vmatprep.subr.mxu0 0.0
    %1601 = vmatpush1.xpose.msra.mxu0 0.0
    %1602 = vmatprep.subr.mxu0 0.0
    %1603 = vmatpush1.xpose.msra.mxu0 0.0
    %1604 = vmatprep.subr.mxu0 0.0
    %1605 = vmatpush1.xpose.msra.mxu0 0.0
    %1606 = vmatprep.subr.mxu0 0.0
    %1607 = vmatpush1.xpose.msra.mxu0 0.0
    %1608 = vmatprep.subr.mxu0 0.0
    %1609 = vmatpush1.xpose.msra.mxu0 0.0
    %1610 = vmatprep.subr.mxu0 0.0
    %1611 = vmatpush1.xpose.msra.mxu0 0.0
    %1612 = vmatprep.subr.mxu0 0.0
    %1613 = vmatpush1.xpose.msra.mxu0 0.0
    %1614 = vmatprep.subr.mxu0 0.0
    %1615 = vmatpush1.xpose.msra.mxu0 0.0
    %1616 = vmatprep.subr.mxu0 0.0
    %1617 = vmatpush1.xpose.msra.mxu0 0.0
    %1618 = vmatprep.subr.mxu0 0.0
    %1619 = vmatpush1.xpose.msra.mxu0 0.0
    %1620 = vmatprep.subr.mxu0 0.0
    %1621 = vmatpush1.xpose.msra.mxu0 0.0
    %1622 = vmatprep.subr.mxu0 0.0
    %1623 = vmatpush1.xpose.msra.mxu0 0.0
    %1624 = vmatprep.subr.mxu0 0.0
    %1625 = vmatpush1.xpose.msra.mxu0 0.0
    %1626 = vmatprep.subr.mxu0 0.0
    %1627 = vmatpush1.xpose.msra.mxu0 0.0
    %1628 = vmatprep.subr.mxu0 0.0
    %1629 = vmatpush1.xpose.msra.mxu0 0.0
    %1630 = vmatprep.subr.mxu0 0.0
    %1631 = vmatpush1.xpose.msra.mxu0 0.0
    %1632 = vmatprep.subr.mxu0 0.0
    %1633 = vmatpush1.xpose.msra.mxu0 0.0
    %1634 = vmatprep.subr.mxu0 0.0
    %1635 = vmatpush1.xpose.msra.mxu0 0.0
    %1636 = vmatprep.subr.mxu0 0.0
    %1637 = vmatpush1.xpose.msra.mxu0 0.0
    %1638 = vmatprep.subr.mxu0 0.0
    %1639 = vmatpush1.xpose.msra.mxu0 0.0
    %1640 = vmatprep.subr.mxu0 0.0
    %1641 = vmatpush1.xpose.msra.mxu0 0.0
    %1642 = vmatprep.subr.mxu0 0.0
    %1643 = vmatpush1.xpose.msra.mxu0 0.0
    %1644 = vmatprep.subr.mxu0 0.0
    %1645 = vmatpush1.xpose.msra.mxu0 0.0
    %1646 = vmatprep.subr.mxu0 0.0
    %1647 = vmatpush1.xpose.msra.mxu0 0.0
    %1648 = vmatprep.subr.mxu0 0.0
    %1649 = vmatpush1.xpose.msra.mxu0 0.0
    %1650 = vmatprep.subr.mxu0 0.0
    %1651 = vmatpush1.xpose.msra.mxu0 0.0
    %1652 = vmatprep.subr.mxu0 0.0
    %1653 = vmatpush1.xpose.msra.mxu0 0.0
    %1654 = vmatprep.subr.mxu0 0.0
    %1655 = vmatpush1.xpose.msra.mxu0 0.0
    %1656 = vmatprep.subr.mxu0 0.0
    %1657 = vmatpush1.xpose.msra.mxu0 0.0
    %1658 = vmatprep.subr.mxu0 0.0
    %1659 = vmatpush1.xpose.msra.mxu0 0.0
    %1660 = vmatprep.mubr.f32.mxu0 0.0
    %1661 = vmatmul.mubr.f32.gmra.mrb[0].mxu0 %v139
    %v1662 = vpop.f32.mrb[0].mxu0
    %v1663 = vadd.f32 0.0, %v1662
    %v1664 = vpop.f32.mrb[0].mxu0
    %1665 = vdwg.mxu0
    %1666 = vset.pattern.permute.xlu0 8
    %1667 = vperm.xlu0 %1666, %v1590
    %v1668 = vpop.permute.xlu0 %1667
    %v1670 = vlaneseq
    %v1671 = vshrl.u32 %v1670, 7
    %v1672 = vsub.s32 0, %v1671
    %v1673 = vrot.slane %v1663, %v1672
    %v1674 = vadd.f32 %v1668, %v1673
    %v1675 = vmul.f32 %v1674, 0.01
    %v1676 = vmax.f32 %v1674, %v1675
    %v1677 = vadd.f32 %v1676, %v56
    %v1678 = vsel %vm64, %v1677, -inf
    %1679 = vmax.xlane.f32.xlu0 %v1678
    %v1680 = vpop.xlane.xlu0 %1679
    %v1681 = vsub.f32 %v1677, %v1680
    %v1682 = vmul.f32 %v1681, 1.442695
    %v1683 = vpow.pop %v1682
    %v1684 = vsel %vm64, %v1683, 0.0
    %1685 = vadd.xlane.f32.xlu0 %v1684
    %v1686 = vpop.xlane.xlu0 %1685
    %v1687 = vrcp.pop %v1686
    %v1688 = vmul.f32 %v1683, %v1687
    %v1690 = vsel %vm64, %v1688, 0
    %1692 = vmatprep.subr.mxu0 0.0
    %1693 = vmatpush1.msra.mxu0 %v1590
    %1694 = vmatprep.subr.mxu0 0.0
    %1695 = vmatpush1.msra.mxu0 0.0
    %1696 = vmatprep.subr.mxu0 0.0
    %1697 = vmatpush1.msra.mxu0 0.0
    %1698 = vmatprep.subr.mxu0 0.0
    %1699 = vmatpush1.msra.mxu0 0.0
    %1700 = vmatprep.subr.mxu0 0.0
    %1701 = vmatpush1.msra.mxu0 0.0
    %1702 = vmatprep.subr.mxu0 0.0
    %1703 = vmatpush1.msra.mxu0 0.0
    %1704 = vmatprep.subr.mxu0 0.0
    %1705 = vmatpush1.msra.mxu0 0.0
    %1706 = vmatprep.subr.mxu0 0.0
    %1707 = vmatpush1.msra.mxu0 0.0
    %1708 = vmatprep.subr.mxu0 0.0
    %1709 = vmatpush1.msra.mxu0 0.0
    %1710 = vmatprep.subr.mxu0 0.0
    %1711 = vmatpush1.msra.mxu0 0.0
    %1712 = vmatprep.subr.mxu0 0.0
    %1713 = vmatpush1.msra.mxu0 0.0
    %1714 = vmatprep.subr.mxu0 0.0
    %1715 = vmatpush1.msra.mxu0 0.0
    %1716 = vmatprep.subr.mxu0 0.0
    %1717 = vmatpush1.msra.mxu0 0.0
    %1718 = vmatprep.subr.mxu0 0.0
    %1719 = vmatpush1.msra.mxu0 0.0
    %1720 = vmatprep.subr.mxu0 0.0
    %1721 = vmatpush1.msra.mxu0 0.0
    %1722 = vmatprep.subr.mxu0 0.0
    %1723 = vmatpush1.msra.mxu0 0.0
    %1724 = vmatprep.subr.mxu0 0.0
    %1725 = vmatpush1.msra.mxu0 0.0
    %1726 = vmatprep.subr.mxu0 0.0
    %1727 = vmatpush1.msra.mxu0 0.0
    %1728 = vmatprep.subr.mxu0 0.0
    %1729 = vmatpush1.msra.mxu0 0.0
    %1730 = vmatprep.subr.mxu0 0.0
    %1731 = vmatpush1.msra.mxu0 0.0
    %1732 = vmatprep.subr.mxu0 0.0
    %1733 = vmatpush1.msra.mxu0 0.0
    %1734 = vmatprep.subr.mxu0 0.0
    %1735 = vmatpush1.msra.mxu0 0.0
    %1736 = vmatprep.subr.mxu0 0.0
    %1737 = vmatpush1.msra.mxu0 0.0
    %1738 = vmatprep.subr.mxu0 0.0
    %1739 = vmatpush1.msra.mxu0 0.0
    %1740 = vmatprep.subr.mxu0 0.0
    %1741 = vmatpush1.msra.mxu0 0.0
    %1742 = vmatprep.subr.mxu0 0.0
    %1743 = vmatpush1.msra.mxu0 0.0
    %1744 = vmatprep.subr.mxu0 0.0
    %1745 = vmatpush1.msra.mxu0 0.0
    %1746 = vmatprep.subr.mxu0 0.0
    %1747 = vmatpush1.msra.mxu0 0.0
    %1748 = vmatprep.subr.mxu0 0.0
    %1749 = vmatpush1.msra.mxu0 0.0
    %1750 = vmatprep.subr.mxu0 0.0
    %1751 = vmatpush1.msra.mxu0 0.0
    %1752 = vmatprep.subr.mxu0 0.0
    %1753 = vmatpush1.msra.mxu0 0.0
    %1754 = vmatprep.subr.mxu0 0.0
    %1755 = vmatpush1.msra.mxu0 0.0
    %1756 = vmatprep.mubr.f32.mxu0 0.0
    %1757 = vmatmul.mubr.f32.gmra.mrb[0].mxu0 %v1690
    %v1758 = vpop.f32.mrb[0].mxu0
    %v1759 = vadd.f32 0.0, %v1758
    %v1760 = vpop.f32.mrb[0].mxu0
    %1761 = vdwg.mxu0
    %v1763 = vrot.slane %v1759, 1
    %1764 = vrot.lane.b32.xlu0 %v1763, 8
    %v1765 = vpop.permute.xlu0 %1764
    %v1767 = vrot.slane %v1759, 2
    %1768 = vrot.lane.b32.xlu0 %v1767, 16
    %v1769 = vpop.permute.xlu0 %1768
    %v1771 = vrot.slane %v1759, 3
    %1772 = vrot.lane.b32.xlu0 %v1771, 24
    %v1773 = vpop.permute.xlu0 %1772
    %v1775 = vrot.slane %v1759, 4
    %1776 = vrot.lane.b32.xlu0 %v1775, 32
    %v1777 = vpop.permute.xlu0 %1776
    %v1779 = vrot.slane %v1759, 5
    %1780 = vrot.lane.b32.xlu0 %v1779, 40
    %v1781 = vpop.permute.xlu0 %1780
    %v1783 = vrot.slane %v1759, 6
    %1784 = vrot.lane.b32.xlu0 %v1783, 48
    %v1785 = vpop.permute.xlu0 %1784
    %v1787 = vrot.slane %v1759, 7
    %1788 = vrot.lane.b32.xlu0 %v1787, 56
    %v1789 = vpop.permute.xlu0 %1788
    %1792 = vrot.lane.b32.xlu0 %v1516, 64
    %v1793 = vpop.permute.xlu0 %1792
    %v1795 = vsel %vm64, %v1759, %v1765
    %v1796 = vsel %vm340, %v1795, %v1769
    %v1797 = vsel %vm342, %v1796, %v1773
    %v1798 = vsel %vm344, %v1797, %v1777
    %v1799 = vsel %vm346, %v1798, %v1781
    %v1800 = vsel %vm348, %v1799, %v1785
    %v1801 = vsel %vm350, %v1800, %v1789
    %v1802 = vsel %vm352, %v1801, %v1793
    %1803 = vmatprep.subr.mxu0 %v355
    %1804 = vmatpush1.msra.mxu0 %v354
    %1805 = vmatprep.subr.mxu0 %v357
    %1806 = vmatpush1.msra.mxu0 %v356
    %1807 = vmatprep.subr.mxu0 %v359
    %1808 = vmatpush1.msra.mxu0 %v358
    %1809 = vmatprep.subr.mxu0 %v361
    %1810 = vmatpush1.msra.mxu0 %v360
    %1811 = vmatprep.subr.mxu0 %v363
    %1812 = vmatpush1.msra.mxu0 %v362
    %1813 = vmatprep.subr.mxu0 %v365
    %1814 = vmatpush1.msra.mxu0 %v364
    %1815 = vmatprep.subr.mxu0 %v367
    %1816 = vmatpush1.msra.mxu0 %v366
    %1817 = vmatprep.subr.mxu0 %v369
    %1818 = vmatpush1.msra.mxu0 %v368
    %1819 = vmatprep.subr.mxu0 %v371
    %1820 = vmatpush1.msra.mxu0 %v370
    %1821 = vmatprep.subr.mxu0 %v373
    %1822 = vmatpush1.msra.mxu0 %v372
    %1823 = vmatprep.subr.mxu0 %v375
    %1824 = vmatpush1.msra.mxu0 %v374
    %1825 = vmatprep.subr.mxu0 %v377
    %1826 = vmatpush1.msra.mxu0 %v376
    %1827 = vmatprep.subr.mxu0 %v379
    %1828 = vmatpush1.msra.mxu0 %v378
    %1829 = vmatprep.subr.mxu0 %v381
    %1830 = vmatpush1.msra.mxu0 %v380
    %1831 = vmatprep.subr.mxu0 %v383
    %1832 = vmatpush1.msra.mxu0 %v382
    %1833 = vmatprep.subr.mxu0 %v385
    %1834 = vmatpush1.msra.mxu0 %v384
    %1835 = vmatprep.subr.mxu0 0.0
    %1836 = vmatpush1.msra.mxu0 0.0
    %1837 = vmatprep.subr.mxu0 0.0
    %1838 = vmatpush1.msra.mxu0 0.0
    %1839 = vmatprep.subr.mxu0 0.0
    %1840 = vmatpush1.msra.mxu0 0.0
    %1841 = vmatprep.subr.mxu0 0.0
    %1842 = vmatpush1.msra.mxu0 0.0
    %1843 = vmatprep.subr.mxu0 0.0
    %1844 = vmatpush1.msra.mxu0 0.0
    %1845 = vmatprep.subr.mxu0 0.0
    %1846 = vmatpush1.msra.mxu0 0.0
    %1847 = vmatprep.subr.mxu0 0.0
    %1848 = vmatpush1.msra.mxu0 0.0
    %1849 = vmatprep.subr.mxu0 0.0
    %1850 = vmatpush1.msra.mxu0 0.0
    %1851 = vmatprep.subr.mxu0 0.0
    %1852 = vmatpush1.msra.mxu0 0.0
    %1853 = vmatprep.subr.mxu0 0.0
    %1854 = vmatpush1.msra.mxu0 0.0
    %1855 = vmatprep.subr.mxu0 0.0
    %1856 = vmatpush1.msra.mxu0 0.0
    %1857 = vmatprep.subr.mxu0 0.0
    %1858 = vmatpush1.msra.mxu0 0.0
    %1859 = vmatprep.subr.mxu0 0.0
    %1860 = vmatpush1.msra.mxu0 0.0
    %1861 = vmatprep.subr.mxu0 0.0
    %1862 = vmatpush1.msra.mxu0 0.0
    %1863 = vmatprep.subr.mxu0 0.0
    %1864 = vmatpush1.msra.mxu0 0.0
    %1865 = vmatprep.subr.mxu0 0.0
    %1866 = vmatpush1.msra.mxu0 0.0
    %1867 = vmatprep.mubr.f32.mxu0 0.0
    %1868 = vmatmul.mubr.f32.gmra.mrb[0].mxu0 %v1802
    %v1869 = vpop.f32.mrb[0].mxu0
    %v1870 = vadd.f32 %v390, %v1869
    %v1871 = vpop.f32.mrb[0].mxu0
    %v1872 = vadd.f32 %v394, %v1871
    %1873 = vdwg.mxu0
    %v1874 = vxor.u32 %v1870, 2147483648
    %v1875 = vmul.f32 %v1874, 1.442695
    %v1876 = vpow.pop %v1875
    %v1877 = vadd.f32 %v1876, 1.0
    %v1878 = vrcp.pop %v1877
    %v1879 = vmul.f32 1.0, %v1878
    %1881 = vrot.lane.b32.xlu0 %v1872, 64
    %v1882 = vpop.permute.xlu0 %1881
    %v1884 = vmul.f32 %v1879, %v1882
    %v1885 = vadd.f32 %v1872, %v1884
    %v1886 = vtanh.pop %v1885
    %v1887 = vsub.f32 1.0, %v1879
    %1889 = vrot.lane.b32.xlu0 %v1886, 64
    %v1890 = vpop.permute.xlu0 %1889
    %v1892 = vmul.f32 %v1887, %v1890
    %v1893 = vmul.f32 %v1879, %v1793
    %v1894 = vadd.f32 %v1892, %v1893
    %v1896 = vrot.slane %v1894, 7
    %1897 = vrot.lane.b32.xlu0 %v1896, 120
    %v1898 = vpop.permute.xlu0 %1897
    %v1900 = vrot.slane %v1894, 6
    %1901 = vrot.lane.b32.xlu0 %v1900, 112
    %v1902 = vpop.permute.xlu0 %1901
    %v1904 = vrot.slane %v1894, 5
    %1905 = vrot.lane.b32.xlu0 %v1904, 104
    %v1906 = vpop.permute.xlu0 %1905
    %v1908 = vrot.slane %v1894, 4
    %1909 = vrot.lane.b32.xlu0 %v1908, 96
    %v1910 = vpop.permute.xlu0 %1909
    %v1912 = vrot.slane %v1894, 3
    %1913 = vrot.lane.b32.xlu0 %v1912, 88
    %v1914 = vpop.permute.xlu0 %1913
    %v1916 = vrot.slane %v1894, 2
    %1917 = vrot.lane.b32.xlu0 %v1916, 80
    %v1918 = vpop.permute.xlu0 %1917
    %v1920 = vrot.slane %v1894, 1
    %1921 = vrot.lane.b32.xlu0 %v1920, 72
    %v1922 = vpop.permute.xlu0 %1921
    %v1924 = vsel %vm518, %v1894, %v1898
    %v1925 = vsel %vm520, %v1924, %v1902
    %v1926 = vsel %vm522, %v1925, %v1906
    %v1927 = vsel %vm524, %v1926, %v1910
    %v1928 = vsel %vm526, %v1927, %v1914
    %v1929 = vsel %vm528, %v1928, %v1918
    %v1930 = vsel %vm530, %v1929, %v1922
    %1932 = vrot.lane.b32.xlu0 %v1930, 64
    %v1933 = vpop.permute.xlu0 %1932
    %v1934 = vsel %vm64, %v1933, 0
    %1936 = vmatprep.subr.mxu0 0.0
    %1937 = vmatpush1.msra.mxu0 %v59
    %1938 = vmatprep.subr.mxu0 0.0
    %1939 = vmatpush1.msra.mxu0 0.0
    %1940 = vmatprep.subr.mxu0 0.0
    %1941 = vmatpush1.msra.mxu0 0.0
    %1942 = vmatprep.subr.mxu0 0.0
    %1943 = vmatpush1.msra.mxu0 0.0
    %1944 = vmatprep.subr.mxu0 0.0
    %1945 = vmatpush1.msra.mxu0 0.0
    %1946 = vmatprep.subr.mxu0 0.0
    %1947 = vmatpush1.msra.mxu0 0.0
    %1948 = vmatprep.subr.mxu0 0.0
    %1949 = vmatpush1.msra.mxu0 0.0
    %1950 = vmatprep.subr.mxu0 0.0
    %1951 = vmatpush1.msra.mxu0 0.0
    %1952 = vmatprep.subr.mxu0 0.0
    %1953 = vmatpush1.msra.mxu0 0.0
    %1954 = vmatprep.subr.mxu0 0.0
    %1955 = vmatpush1.msra.mxu0 0.0
    %1956 = vmatprep.subr.mxu0 0.0
    %1957 = vmatpush1.msra.mxu0 0.0
    %1958 = vmatprep.subr.mxu0 0.0
    %1959 = vmatpush1.msra.mxu0 0.0
    %1960 = vmatprep.subr.mxu0 0.0
    %1961 = vmatpush1.msra.mxu0 0.0
    %1962 = vmatprep.subr.mxu0 0.0
    %1963 = vmatpush1.msra.mxu0 0.0
    %1964 = vmatprep.subr.mxu0 0.0
    %1965 = vmatpush1.msra.mxu0 0.0
    %1966 = vmatprep.subr.mxu0 0.0
    %1967 = vmatpush1.msra.mxu0 0.0
    %1968 = vmatprep.subr.mxu0 0.0
    %1969 = vmatpush1.msra.mxu0 0.0
    %1970 = vmatprep.subr.mxu0 0.0
    %1971 = vmatpush1.msra.mxu0 0.0
    %1972 = vmatprep.subr.mxu0 0.0
    %1973 = vmatpush1.msra.mxu0 0.0
    %1974 = vmatprep.subr.mxu0 0.0
    %1975 = vmatpush1.msra.mxu0 0.0
    %1976 = vmatprep.subr.mxu0 0.0
    %1977 = vmatpush1.msra.mxu0 0.0
    %1978 = vmatprep.subr.mxu0 0.0
    %1979 = vmatpush1.msra.mxu0 0.0
    %1980 = vmatprep.subr.mxu0 0.0
    %1981 = vmatpush1.msra.mxu0 0.0
    %1982 = vmatprep.subr.mxu0 0.0
    %1983 = vmatpush1.msra.mxu0 0.0
    %1984 = vmatprep.subr.mxu0 0.0
    %1985 = vmatpush1.msra.mxu0 0.0
    %1986 = vmatprep.subr.mxu0 0.0
    %1987 = vmatpush1.msra.mxu0 0.0
    %1988 = vmatprep.subr.mxu0 0.0
    %1989 = vmatpush1.msra.mxu0 0.0
    %1990 = vmatprep.subr.mxu0 0.0
    %1991 = vmatpush1.msra.mxu0 0.0
    %1992 = vmatprep.subr.mxu0 0.0
    %1993 = vmatpush1.msra.mxu0 0.0
    %1994 = vmatprep.subr.mxu0 0.0
    %1995 = vmatpush1.msra.mxu0 0.0
    %1996 = vmatprep.subr.mxu0 0.0
    %1997 = vmatpush1.msra.mxu0 0.0
    %1998 = vmatprep.subr.mxu0 0.0
    %1999 = vmatpush1.msra.mxu0 0.0
    %2000 = vmatprep.mubr.f32.mxu0 0.0
    %2001 = vmatmul.mubr.f32.gmra.mrb[0].mxu0 %v1934
    %v2002 = vpop.f32.mrb[0].mxu0
    %v2003 = vadd.f32 0.0, %v2002
    %v2004 = vpop.f32.mrb[0].mxu0
    %2005 = vdwg.mxu0
    %v2007 = vsel %vm64, %v2003, 0
    %2009 = vmatprep.subr.mxu0 0.0
    %2010 = vmatpush1.xpose.msra.mxu0 %v2007
    %2011 = vmatprep.subr.mxu0 0.0
    %2012 = vmatpush1.xpose.msra.mxu0 0.0
    %2013 = vmatprep.subr.mxu0 0.0
    %2014 = vmatpush1.xpose.msra.mxu0 0.0
    %2015 = vmatprep.subr.mxu0 0.0
    %2016 = vmatpush1.xpose.msra.mxu0 0.0
    %2017 = vmatprep.subr.mxu0 0.0
    %2018 = vmatpush1.xpose.msra.mxu0 0.0
    %2019 = vmatprep.subr.mxu0 0.0
    %2020 = vmatpush1.xpose.msra.mxu0 0.0
    %2021 = vmatprep.subr.mxu0 0.0
    %2022 = vmatpush1.xpose.msra.mxu0 0.0
    %2023 = vmatprep.subr.mxu0 0.0
    %2024 = vmatpush1.xpose.msra.mxu0 0.0
    %2025 = vmatprep.subr.mxu0 0.0
    %2026 = vmatpush1.xpose.msra.mxu0 0.0
    %2027 = vmatprep.subr.mxu0 0.0
    %2028 = vmatpush1.xpose.msra.mxu0 0.0
    %2029 = vmatprep.subr.mxu0 0.0
    %2030 = vmatpush1.xpose.msra.mxu0 0.0
    %2031 = vmatprep.subr.mxu0 0.0
    %2032 = vmatpush1.xpose.msra.mxu0 0.0
    %2033 = vmatprep.subr.mxu0 0.0
    %2034 = vmatpush1.xpose.msra.mxu0 0.0
    %2035 = vmatprep.subr.mxu0 0.0
    %2036 = vmatpush1.xpose.msra.mxu0 0.0
    %2037 = vmatprep.subr.mxu0 0.0
    %2038 = vmatpush1.xpose.msra.mxu0 0.0
    %2039 = vmatprep.subr.mxu0 0.0
    %2040 = vmatpush1.xpose.msra.mxu0 0.0
    %2041 = vmatprep.subr.mxu0 0.0
    %2042 = vmatpush1.xpose.msra.mxu0 0.0
    %2043 = vmatprep.subr.mxu0 0.0
    %2044 = vmatpush1.xpose.msra.mxu0 0.0
    %2045 = vmatprep.subr.mxu0 0.0
    %2046 = vmatpush1.xpose.msra.mxu0 0.0
    %2047 = vmatprep.subr.mxu0 0.0
    %2048 = vmatpush1.xpose.msra.mxu0 0.0
    %2049 = vmatprep.subr.mxu0 0.0
    %2050 = vmatpush1.xpose.msra.mxu0 0.0
    %2051 = vmatprep.subr.mxu0 0.0
    %2052 = vmatpush1.xpose.msra.mxu0 0.0
    %2053 = vmatprep.subr.mxu0 0.0
    %2054 = vmatpush1.xpose.msra.mxu0 0.0
    %2055 = vmatprep.subr.mxu0 0.0
    %2056 = vmatpush1.xpose.msra.mxu0 0.0
    %2057 = vmatprep.subr.mxu0 0.0
    %2058 = vmatpush1.xpose.msra.mxu0 0.0
    %2059 = vmatprep.subr.mxu0 0.0
    %2060 = vmatpush1.xpose.msra.mxu0 0.0
    %2061 = vmatprep.subr.mxu0 0.0
    %2062 = vmatpush1.xpose.msra.mxu0 0.0
    %2063 = vmatprep.subr.mxu0 0.0
    %2064 = vmatpush1.xpose.msra.mxu0 0.0
    %2065 = vmatprep.subr.mxu0 0.0
    %2066 = vmatpush1.xpose.msra.mxu0 0.0
    %2067 = vmatprep.subr.mxu0 0.0
    %2068 = vmatpush1.xpose.msra.mxu0 0.0
    %2069 = vmatprep.subr.mxu0 0.0
    %2070 = vmatpush1.xpose.msra.mxu0 0.0
    %2071 = vmatprep.subr.mxu0 0.0
    %2072 = vmatpush1.xpose.msra.mxu0 0.0
    %2073 = vmatprep.mubr.f32.mxu0 0.0
    %2074 = vmatmul.mubr.f32.gmra.mrb[0].mxu0 %v608
    %v2075 = vpop.f32.mrb[0].mxu0
    %v2076 = vadd.f32 0.0, %v2075
    %v2077 = vpop.f32.mrb[0].mxu0
    %2078 = vdwg.mxu0
    %2079 = vset.pattern.permute.xlu0 16
    %2080 = vperm.xlu0 %2079, %v2003
    %v2081 = vpop.permute.xlu0 %2080
    %v2083 = vlaneseq
    %v2084 = vshrl.u32 %v2083, 7
    %v2085 = vsub.s32 0, %v2084
    %v2086 = vrot.slane %v2076, %v2085
    %v2087 = vadd.f32 %v2081, %v2086
    %v2088 = vmul.f32 %v2087, 0.01
    %v2089 = vmax.f32 %v2087, %v2088
    %v2090 = vadd.f32 %v2089, %v56
    %v2091 = vsel %vm64, %v2090, -inf
    %2092 = vmax.xlane.f32.xlu0 %v2091
    %v2093 = vpop.xlane.xlu0 %2092
    %v2094 = vsub.f32 %v2090, %v2093
    %v2095 = vmul.f32 %v2094, 1.442695
    %v2096 = vpow.pop %v2095
    %v2097 = vsel %vm64, %v2096, 0.0
    %2098 = vadd.xlane.f32.xlu0 %v2097
    %v2099 = vpop.xlane.xlu0 %2098
    %v2100 = vrcp.pop %v2099
    %v2101 = vmul.f32 %v2096, %v2100
    %v2103 = vsel %vm64, %v2101, 0
    %2105 = vmatprep.subr.mxu0 0.0
    %2106 = vmatpush1.msra.mxu0 %v2003
    %2107 = vmatprep.subr.mxu0 0.0
    %2108 = vmatpush1.msra.mxu0 0.0
    %2109 = vmatprep.subr.mxu0 0.0
    %2110 = vmatpush1.msra.mxu0 0.0
    %2111 = vmatprep.subr.mxu0 0.0
    %2112 = vmatpush1.msra.mxu0 0.0
    %2113 = vmatprep.subr.mxu0 0.0
    %2114 = vmatpush1.msra.mxu0 0.0
    %2115 = vmatprep.subr.mxu0 0.0
    %2116 = vmatpush1.msra.mxu0 0.0
    %2117 = vmatprep.subr.mxu0 0.0
    %2118 = vmatpush1.msra.mxu0 0.0
    %2119 = vmatprep.subr.mxu0 0.0
    %2120 = vmatpush1.msra.mxu0 0.0
    %2121 = vmatprep.subr.mxu0 0.0
    %2122 = vmatpush1.msra.mxu0 0.0
    %2123 = vmatprep.subr.mxu0 0.0
    %2124 = vmatpush1.msra.mxu0 0.0
    %2125 = vmatprep.subr.mxu0 0.0
    %2126 = vmatpush1.msra.mxu0 0.0
    %2127 = vmatprep.subr.mxu0 0.0
    %2128 = vmatpush1.msra.mxu0 0.0
    %2129 = vmatprep.subr.mxu0 0.0
    %2130 = vmatpush1.msra.mxu0 0.0
    %2131 = vmatprep.subr.mxu0 0.0
    %2132 = vmatpush1.msra.mxu0 0.0
    %2133 = vmatprep.subr.mxu0 0.0
    %2134 = vmatpush1.msra.mxu0 0.0
    %2135 = vmatprep.subr.mxu0 0.0
    %2136 = vmatpush1.msra.mxu0 0.0
    %2137 = vmatprep.subr.mxu0 0.0
    %2138 = vmatpush1.msra.mxu0 0.0
    %2139 = vmatprep.subr.mxu0 0.0
    %2140 = vmatpush1.msra.mxu0 0.0
    %2141 = vmatprep.subr.mxu0 0.0
    %2142 = vmatpush1.msra.mxu0 0.0
    %2143 = vmatprep.subr.mxu0 0.0
    %2144 = vmatpush1.msra.mxu0 0.0
    %2145 = vmatprep.subr.mxu0 0.0
    %2146 = vmatpush1.msra.mxu0 0.0
    %2147 = vmatprep.subr.mxu0 0.0
    %2148 = vmatpush1.msra.mxu0 0.0
    %2149 = vmatprep.subr.mxu0 0.0
    %2150 = vmatpush1.msra.mxu0 0.0
    %2151 = vmatprep.subr.mxu0 0.0
    %2152 = vmatpush1.msra.mxu0 0.0
    %2153 = vmatprep.subr.mxu0 0.0
    %2154 = vmatpush1.msra.mxu0 0.0
    %2155 = vmatprep.subr.mxu0 0.0
    %2156 = vmatpush1.msra.mxu0 0.0
    %2157 = vmatprep.subr.mxu0 0.0
    %2158 = vmatpush1.msra.mxu0 0.0
    %2159 = vmatprep.subr.mxu0 0.0
    %2160 = vmatpush1.msra.mxu0 0.0
    %2161 = vmatprep.subr.mxu0 0.0
    %2162 = vmatpush1.msra.mxu0 0.0
    %2163 = vmatprep.subr.mxu0 0.0
    %2164 = vmatpush1.msra.mxu0 0.0
    %2165 = vmatprep.subr.mxu0 0.0
    %2166 = vmatpush1.msra.mxu0 0.0
    %2167 = vmatprep.subr.mxu0 0.0
    %2168 = vmatpush1.msra.mxu0 0.0
    %2169 = vmatprep.mubr.f32.mxu0 0.0
    %2170 = vmatmul.mubr.f32.gmra.mrb[0].mxu0 %v2103
    %v2171 = vpop.f32.mrb[0].mxu0
    %v2172 = vadd.f32 0.0, %v2171
    %v2173 = vpop.f32.mrb[0].mxu0
    %2174 = vdwg.mxu0
    %v2176 = vrot.slane %v2172, 1
    %2177 = vrot.lane.b32.xlu0 %v2176, 8
    %v2178 = vpop.permute.xlu0 %2177
    %v2180 = vrot.slane %v2172, 2
    %2181 = vrot.lane.b32.xlu0 %v2180, 16
    %v2182 = vpop.permute.xlu0 %2181
    %v2184 = vrot.slane %v2172, 3
    %2185 = vrot.lane.b32.xlu0 %v2184, 24
    %v2186 = vpop.permute.xlu0 %2185
    %v2188 = vrot.slane %v2172, 4
    %2189 = vrot.lane.b32.xlu0 %v2188, 32
    %v2190 = vpop.permute.xlu0 %2189
    %v2192 = vrot.slane %v2172, 5
    %2193 = vrot.lane.b32.xlu0 %v2192, 40
    %v2194 = vpop.permute.xlu0 %2193
    %v2196 = vrot.slane %v2172, 6
    %2197 = vrot.lane.b32.xlu0 %v2196, 48
    %v2198 = vpop.permute.xlu0 %2197
    %v2200 = vrot.slane %v2172, 7
    %2201 = vrot.lane.b32.xlu0 %v2200, 56
    %v2202 = vpop.permute.xlu0 %2201
    %v2204 = vsel %vm64, %v2172, %v2178
    %v2205 = vsel %vm340, %v2204, %v2182
    %v2206 = vsel %vm342, %v2205, %v2186
    %v2207 = vsel %vm344, %v2206, %v2190
    %v2208 = vsel %vm346, %v2207, %v2194
    %v2209 = vsel %vm348, %v2208, %v2198
    %v2210 = vsel %vm350, %v2209, %v2202
    %v2211 = vadd.f32 %v2003, %v821
    %2213 = vrot.lane.b32.xlu0 %v2211, 120
    %v2214 = vpop.permute.xlu0 %2213
    %v2215 = vsel %vm64, %v2214, 0
    %2217 = vmatprep.subr.mxu0 0.0
    %2218 = vmatpush1.msra.mxu0 %v57
    %2219 = vmatprep.subr.mxu0 0.0
    %2220 = vmatpush1.msra.mxu0 0.0
    %2221 = vmatprep.subr.mxu0 0.0
    %2222 = vmatpush1.msra.mxu0 0.0
    %2223 = vmatprep.subr.mxu0 0.0
    %2224 = vmatpush1.msra.mxu0 0.0
    %2225 = vmatprep.subr.mxu0 0.0
    %2226 = vmatpush1.msra.mxu0 0.0
    %2227 = vmatprep.subr.mxu0 0.0
    %2228 = vmatpush1.msra.mxu0 0.0
    %2229 = vmatprep.subr.mxu0 0.0
    %2230 = vmatpush1.msra.mxu0 0.0
    %2231 = vmatprep.subr.mxu0 0.0
    %2232 = vmatpush1.msra.mxu0 0.0
    %2233 = vmatprep.subr.mxu0 0.0
    %2234 = vmatpush1.msra.mxu0 0.0
    %2235 = vmatprep.subr.mxu0 0.0
    %2236 = vmatpush1.msra.mxu0 0.0
    %2237 = vmatprep.subr.mxu0 0.0
    %2238 = vmatpush1.msra.mxu0 0.0
    %2239 = vmatprep.subr.mxu0 0.0
    %2240 = vmatpush1.msra.mxu0 0.0
    %2241 = vmatprep.subr.mxu0 0.0
    %2242 = vmatpush1.msra.mxu0 0.0
    %2243 = vmatprep.subr.mxu0 0.0
    %2244 = vmatpush1.msra.mxu0 0.0
    %2245 = vmatprep.subr.mxu0 0.0
    %2246 = vmatpush1.msra.mxu0 0.0
    %2247 = vmatprep.subr.mxu0 0.0
    %2248 = vmatpush1.msra.mxu0 0.0
    %2249 = vmatprep.subr.mxu0 0.0
    %2250 = vmatpush1.msra.mxu0 0.0
    %2251 = vmatprep.subr.mxu0 0.0
    %2252 = vmatpush1.msra.mxu0 0.0
    %2253 = vmatprep.subr.mxu0 0.0
    %2254 = vmatpush1.msra.mxu0 0.0
    %2255 = vmatprep.subr.mxu0 0.0
    %2256 = vmatpush1.msra.mxu0 0.0
    %2257 = vmatprep.subr.mxu0 0.0
    %2258 = vmatpush1.msra.mxu0 0.0
    %2259 = vmatprep.subr.mxu0 0.0
    %2260 = vmatpush1.msra.mxu0 0.0
    %2261 = vmatprep.subr.mxu0 0.0
    %2262 = vmatpush1.msra.mxu0 0.0
    %2263 = vmatprep.subr.mxu0 0.0
    %2264 = vmatpush1.msra.mxu0 0.0
    %2265 = vmatprep.subr.mxu0 0.0
    %2266 = vmatpush1.msra.mxu0 0.0
    %2267 = vmatprep.subr.mxu0 0.0
    %2268 = vmatpush1.msra.mxu0 0.0
    %2269 = vmatprep.subr.mxu0 0.0
    %2270 = vmatpush1.msra.mxu0 0.0
    %2271 = vmatprep.subr.mxu0 0.0
    %2272 = vmatpush1.msra.mxu0 0.0
    %2273 = vmatprep.subr.mxu0 0.0
    %2274 = vmatpush1.msra.mxu0 0.0
    %2275 = vmatprep.subr.mxu0 0.0
    %2276 = vmatpush1.msra.mxu0 0.0
    %2277 = vmatprep.subr.mxu0 0.0
    %2278 = vmatpush1.msra.mxu0 0.0
    %2279 = vmatprep.subr.mxu0 0.0
    %2280 = vmatpush1.msra.mxu0 0.0
    %2281 = vmatprep.mubr.f32.mxu0 0.0
    %2282 = vmatmul.mubr.f32.gmra.mrb[0].mxu0 %v2215
    %v2283 = vpop.f32.mrb[0].mxu0
    %v2284 = vadd.f32 0.0, %v2283
    %v2285 = vpop.f32.mrb[0].mxu0
    %2286 = vdwg.mxu0
    %v2288 = vsel %vm64, %v2284, 0
    %2290 = vmatprep.subr.mxu0 0.0
    %2291 = vmatpush1.xpose.msra.mxu0 %v2288
    %2292 = vmatprep.subr.mxu0 0.0
    %2293 = vmatpush1.xpose.msra.mxu0 0.0
    %2294 = vmatprep.subr.mxu0 0.0
    %2295 = vmatpush1.xpose.msra.mxu0 0.0
    %2296 = vmatprep.subr.mxu0 0.0
    %2297 = vmatpush1.xpose.msra.mxu0 0.0
    %2298 = vmatprep.subr.mxu0 0.0
    %2299 = vmatpush1.xpose.msra.mxu0 0.0
    %2300 = vmatprep.subr.mxu0 0.0
    %2301 = vmatpush1.xpose.msra.mxu0 0.0
    %2302 = vmatprep.subr.mxu0 0.0
    %2303 = vmatpush1.xpose.msra.mxu0 0.0
    %2304 = vmatprep.subr.mxu0 0.0
    %2305 = vmatpush1.xpose.msra.mxu0 0.0
    %2306 = vmatprep.subr.mxu0 0.0
    %2307 = vmatpush1.xpose.msra.mxu0 0.0
    %2308 = vmatprep.subr.mxu0 0.0
    %2309 = vmatpush1.xpose.msra.mxu0 0.0
    %2310 = vmatprep.subr.mxu0 0.0
    %2311 = vmatpush1.xpose.msra.mxu0 0.0
    %2312 = vmatprep.subr.mxu0 0.0
    %2313 = vmatpush1.xpose.msra.mxu0 0.0
    %2314 = vmatprep.subr.mxu0 0.0
    %2315 = vmatpush1.xpose.msra.mxu0 0.0
    %2316 = vmatprep.subr.mxu0 0.0
    %2317 = vmatpush1.xpose.msra.mxu0 0.0
    %2318 = vmatprep.subr.mxu0 0.0
    %2319 = vmatpush1.xpose.msra.mxu0 0.0
    %2320 = vmatprep.subr.mxu0 0.0
    %2321 = vmatpush1.xpose.msra.mxu0 0.0
    %2322 = vmatprep.subr.mxu0 0.0
    %2323 = vmatpush1.xpose.msra.mxu0 0.0
    %2324 = vmatprep.subr.mxu0 0.0
    %2325 = vmatpush1.xpose.msra.mxu0 0.0
    %2326 = vmatprep.subr.mxu0 0.0
    %2327 = vmatpush1.xpose.msra.mxu0 0.0
    %2328 = vmatprep.subr.mxu0 0.0
    %2329 = vmatpush1.xpose.msra.mxu0 0.0
    %2330 = vmatprep.subr.mxu0 0.0
    %2331 = vmatpush1.xpose.msra.mxu0 0.0
    %2332 = vmatprep.subr.mxu0 0.0
    %2333 = vmatpush1.xpose.msra.mxu0 0.0
    %2334 = vmatprep.subr.mxu0 0.0
    %2335 = vmatpush1.xpose.msra.mxu0 0.0
    %2336 = vmatprep.subr.mxu0 0.0
    %2337 = vmatpush1.xpose.msra.mxu0 0.0
    %2338 = vmatprep.subr.mxu0 0.0
    %2339 = vmatpush1.xpose.msra.mxu0 0.0
    %2340 = vmatprep.subr.mxu0 0.0
    %2341 = vmatpush1.xpose.msra.mxu0 0.0
    %2342 = vmatprep.subr.mxu0 0.0
    %2343 = vmatpush1.xpose.msra.mxu0 0.0
    %2344 = vmatprep.subr.mxu0 0.0
    %2345 = vmatpush1.xpose.msra.mxu0 0.0
    %2346 = vmatprep.subr.mxu0 0.0
    %2347 = vmatpush1.xpose.msra.mxu0 0.0
    %2348 = vmatprep.subr.mxu0 0.0
    %2349 = vmatpush1.xpose.msra.mxu0 0.0
    %2350 = vmatprep.subr.mxu0 0.0
    %2351 = vmatpush1.xpose.msra.mxu0 0.0
    %2352 = vmatprep.subr.mxu0 0.0
    %2353 = vmatpush1.xpose.msra.mxu0 0.0
    %2354 = vmatprep.mubr.f32.mxu0 0.0
    %2355 = vmatmul.mubr.f32.gmra.mrb[0].mxu0 %v139
    %v2356 = vpop.f32.mrb[0].mxu0
    %v2357 = vadd.f32 0.0, %v2356
    %v2358 = vpop.f32.mrb[0].mxu0
    %2359 = vdwg.mxu0
    %2360 = vset.pattern.permute.xlu0 8
    %2361 = vperm.xlu0 %2360, %v2284
    %v2362 = vpop.permute.xlu0 %2361
    %v2364 = vlaneseq
    %v2365 = vshrl.u32 %v2364, 7
    %v2366 = vsub.s32 0, %v2365
    %v2367 = vrot.slane %v2357, %v2366
    %v2368 = vadd.f32 %v2362, %v2367
    %v2369 = vmul.f32 %v2368, 0.01
    %v2370 = vmax.f32 %v2368, %v2369
    %v2371 = vadd.f32 %v2370, %v56
    %v2372 = vsel %vm64, %v2371, -inf
    %2373 = vmax.xlane.f32.xlu0 %v2372
    %v2374 = vpop.xlane.xlu0 %2373
    %v2375 = vsub.f32 %v2371, %v2374
    %v2376 = vmul.f32 %v2375, 1.442695
    %v2377 = vpow.pop %v2376
    %v2378 = vsel %vm64, %v2377, 0.0
    %2379 = vadd.xlane.f32.xlu0 %v2378
    %v2380 = vpop.xlane.xlu0 %2379
    %v2381 = vrcp.pop %v2380
    %v2382 = vmul.f32 %v2377, %v2381
    %v2384 = vsel %vm64, %v2382, 0
    %2386 = vmatprep.subr.mxu0 0.0
    %2387 = vmatpush1.msra.mxu0 %v2284
    %2388 = vmatprep.subr.mxu0 0.0
    %2389 = vmatpush1.msra.mxu0 0.0
    %2390 = vmatprep.subr.mxu0 0.0
    %2391 = vmatpush1.msra.mxu0 0.0
    %2392 = vmatprep.subr.mxu0 0.0
    %2393 = vmatpush1.msra.mxu0 0.0
    %2394 = vmatprep.subr.mxu0 0.0
    %2395 = vmatpush1.msra.mxu0 0.0
    %2396 = vmatprep.subr.mxu0 0.0
    %2397 = vmatpush1.msra.mxu0 0.0
    %2398 = vmatprep.subr.mxu0 0.0
    %2399 = vmatpush1.msra.mxu0 0.0
    %2400 = vmatprep.subr.mxu0 0.0
    %2401 = vmatpush1.msra.mxu0 0.0
    %2402 = vmatprep.subr.mxu0 0.0
    %2403 = vmatpush1.msra.mxu0 0.0
    %2404 = vmatprep.subr.mxu0 0.0
    %2405 = vmatpush1.msra.mxu0 0.0
    %2406 = vmatprep.subr.mxu0 0.0
    %2407 = vmatpush1.msra.mxu0 0.0
    %2408 = vmatprep.subr.mxu0 0.0
    %2409 = vmatpush1.msra.mxu0 0.0
    %2410 = vmatprep.subr.mxu0 0.0
    %2411 = vmatpush1.msra.mxu0 0.0
    %2412 = vmatprep.subr.mxu0 0.0
    %2413 = vmatpush1.msra.mxu0 0.0
    %2414 = vmatprep.subr.mxu0 0.0
    %2415 = vmatpush1.msra.mxu0 0.0
    %2416 = vmatprep.subr.mxu0 0.0
    %2417 = vmatpush1.msra.mxu0 0.0
    %2418 = vmatprep.subr.mxu0 0.0
    %2419 = vmatpush1.msra.mxu0 0.0
    %2420 = vmatprep.subr.mxu0 0.0
    %2421 = vmatpush1.msra.mxu0 0.0
    %2422 = vmatprep.subr.mxu0 0.0
    %2423 = vmatpush1.msra.mxu0 0.0
    %2424 = vmatprep.subr.mxu0 0.0
    %2425 = vmatpush1.msra.mxu0 0.0
    %2426 = vmatprep.subr.mxu0 0.0
    %2427 = vmatpush1.msra.mxu0 0.0
    %2428 = vmatprep.subr.mxu0 0.0
    %2429 = vmatpush1.msra.mxu0 0.0
    %2430 = vmatprep.subr.mxu0 0.0
    %2431 = vmatpush1.msra.mxu0 0.0
    %2432 = vmatprep.subr.mxu0 0.0
    %2433 = vmatpush1.msra.mxu0 0.0
    %2434 = vmatprep.subr.mxu0 0.0
    %2435 = vmatpush1.msra.mxu0 0.0
    %2436 = vmatprep.subr.mxu0 0.0
    %2437 = vmatpush1.msra.mxu0 0.0
    %2438 = vmatprep.subr.mxu0 0.0
    %2439 = vmatpush1.msra.mxu0 0.0
    %2440 = vmatprep.subr.mxu0 0.0
    %2441 = vmatpush1.msra.mxu0 0.0
    %2442 = vmatprep.subr.mxu0 0.0
    %2443 = vmatpush1.msra.mxu0 0.0
    %2444 = vmatprep.subr.mxu0 0.0
    %2445 = vmatpush1.msra.mxu0 0.0
    %2446 = vmatprep.subr.mxu0 0.0
    %2447 = vmatpush1.msra.mxu0 0.0
    %2448 = vmatprep.subr.mxu0 0.0
    %2449 = vmatpush1.msra.mxu0 0.0
    %2450 = vmatprep.mubr.f32.mxu0 0.0
    %2451 = vmatmul.mubr.f32.gmra.mrb[0].mxu0 %v2384
    %v2452 = vpop.f32.mrb[0].mxu0
    %v2453 = vadd.f32 0.0, %v2452
    %v2454 = vpop.f32.mrb[0].mxu0
    %2455 = vdwg.mxu0
    %v2457 = vrot.slane %v2453, 1
    %2458 = vrot.lane.b32.xlu0 %v2457, 8
    %v2459 = vpop.permute.xlu0 %2458
    %v2461 = vrot.slane %v2453, 2
    %2462 = vrot.lane.b32.xlu0 %v2461, 16
    %v2463 = vpop.permute.xlu0 %2462
    %v2465 = vrot.slane %v2453, 3
    %2466 = vrot.lane.b32.xlu0 %v2465, 24
    %v2467 = vpop.permute.xlu0 %2466
    %v2469 = vrot.slane %v2453, 4
    %2470 = vrot.lane.b32.xlu0 %v2469, 32
    %v2471 = vpop.permute.xlu0 %2470
    %v2473 = vrot.slane %v2453, 5
    %2474 = vrot.lane.b32.xlu0 %v2473, 40
    %v2475 = vpop.permute.xlu0 %2474
    %v2477 = vrot.slane %v2453, 6
    %2478 = vrot.lane.b32.xlu0 %v2477, 48
    %v2479 = vpop.permute.xlu0 %2478
    %v2481 = vrot.slane %v2453, 7
    %2482 = vrot.lane.b32.xlu0 %v2481, 56
    %v2483 = vpop.permute.xlu0 %2482
    %2486 = vrot.lane.b32.xlu0 %v2210, 64
    %v2487 = vpop.permute.xlu0 %2486
    %v2489 = vsel %vm64, %v2453, %v2459
    %v2490 = vsel %vm340, %v2489, %v2463
    %v2491 = vsel %vm342, %v2490, %v2467
    %v2492 = vsel %vm344, %v2491, %v2471
    %v2493 = vsel %vm346, %v2492, %v2475
    %v2494 = vsel %vm348, %v2493, %v2479
    %v2495 = vsel %vm350, %v2494, %v2483
    %v2496 = vsel %vm352, %v2495, %v2487
    %2497 = vmatprep.subr.mxu0 %v355
    %2498 = vmatpush1.msra.mxu0 %v354
    %2499 = vmatprep.subr.mxu0 %v357
    %2500 = vmatpush1.msra.mxu0 %v356
    %2501 = vmatprep.subr.mxu0 %v359
    %2502 = vmatpush1.msra.mxu0 %v358
    %2503 = vmatprep.subr.mxu0 %v361
    %2504 = vmatpush1.msra.mxu0 %v360
    %2505 = vmatprep.subr.mxu0 %v363
    %2506 = vmatpush1.msra.mxu0 %v362
    %2507 = vmatprep.subr.mxu0 %v365
    %2508 = vmatpush1.msra.mxu0 %v364
    %2509 = vmatprep.subr.mxu0 %v367
    %2510 = vmatpush1.msra.mxu0 %v366
    %2511 = vmatprep.subr.mxu0 %v369
    %2512 = vmatpush1.msra.mxu0 %v368
    %2513 = vmatprep.subr.mxu0 %v371
    %2514 = vmatpush1.msra.mxu0 %v370
    %2515 = vmatprep.subr.mxu0 %v373
    %2516 = vmatpush1.msra.mxu0 %v372
    %2517 = vmatprep.subr.mxu0 %v375
    %2518 = vmatpush1.msra.mxu0 %v374
    %2519 = vmatprep.subr.mxu0 %v377
    %2520 = vmatpush1.msra.mxu0 %v376
    %2521 = vmatprep.subr.mxu0 %v379
    %2522 = vmatpush1.msra.mxu0 %v378
    %2523 = vmatprep.subr.mxu0 %v381
    %2524 = vmatpush1.msra.mxu0 %v380
    %2525 = vmatprep.subr.mxu0 %v383
    %2526 = vmatpush1.msra.mxu0 %v382
    %2527 = vmatprep.subr.mxu0 %v385
    %2528 = vmatpush1.msra.mxu0 %v384
    %2529 = vmatprep.subr.mxu0 0.0
    %2530 = vmatpush1.msra.mxu0 0.0
    %2531 = vmatprep.subr.mxu0 0.0
    %2532 = vmatpush1.msra.mxu0 0.0
    %2533 = vmatprep.subr.mxu0 0.0
    %2534 = vmatpush1.msra.mxu0 0.0
    %2535 = vmatprep.subr.mxu0 0.0
    %2536 = vmatpush1.msra.mxu0 0.0
    %2537 = vmatprep.subr.mxu0 0.0
    %2538 = vmatpush1.msra.mxu0 0.0
    %2539 = vmatprep.subr.mxu0 0.0
    %2540 = vmatpush1.msra.mxu0 0.0
    %2541 = vmatprep.subr.mxu0 0.0
    %2542 = vmatpush1.msra.mxu0 0.0
    %2543 = vmatprep.subr.mxu0 0.0
    %2544 = vmatpush1.msra.mxu0 0.0
    %2545 = vmatprep.subr.mxu0 0.0
    %2546 = vmatpush1.msra.mxu0 0.0
    %2547 = vmatprep.subr.mxu0 0.0
    %2548 = vmatpush1.msra.mxu0 0.0
    %2549 = vmatprep.subr.mxu0 0.0
    %2550 = vmatpush1.msra.mxu0 0.0
    %2551 = vmatprep.subr.mxu0 0.0
    %2552 = vmatpush1.msra.mxu0 0.0
    %2553 = vmatprep.subr.mxu0 0.0
    %2554 = vmatpush1.msra.mxu0 0.0
    %2555 = vmatprep.subr.mxu0 0.0
    %2556 = vmatpush1.msra.mxu0 0.0
    %2557 = vmatprep.subr.mxu0 0.0
    %2558 = vmatpush1.msra.mxu0 0.0
    %2559 = vmatprep.subr.mxu0 0.0
    %2560 = vmatpush1.msra.mxu0 0.0
    %2561 = vmatprep.mubr.f32.mxu0 0.0
    %2562 = vmatmul.mubr.f32.gmra.mrb[0].mxu0 %v2496
    %v2563 = vpop.f32.mrb[0].mxu0
    %v2564 = vadd.f32 %v390, %v2563
    %v2565 = vpop.f32.mrb[0].mxu0
    %v2566 = vadd.f32 %v394, %v2565
    %2567 = vdwg.mxu0
    %v2568 = vxor.u32 %v2564, 2147483648
    %v2569 = vmul.f32 %v2568, 1.442695
    %v2570 = vpow.pop %v2569
    %v2571 = vadd.f32 %v2570, 1.0
    %v2572 = vrcp.pop %v2571
    %v2573 = vmul.f32 1.0, %v2572
    %2575 = vrot.lane.b32.xlu0 %v2566, 64
    %v2576 = vpop.permute.xlu0 %2575
    %v2578 = vmul.f32 %v2573, %v2576
    %v2579 = vadd.f32 %v2566, %v2578
    %v2580 = vtanh.pop %v2579
    %v2581 = vsub.f32 1.0, %v2573
    %2583 = vrot.lane.b32.xlu0 %v2580, 64
    %v2584 = vpop.permute.xlu0 %2583
    %v2586 = vmul.f32 %v2581, %v2584
    %v2587 = vmul.f32 %v2573, %v2487
    %v2588 = vadd.f32 %v2586, %v2587
    %v2590 = vrot.slane %v2588, 7
    %2591 = vrot.lane.b32.xlu0 %v2590, 120
    %v2592 = vpop.permute.xlu0 %2591
    %v2594 = vrot.slane %v2588, 6
    %2595 = vrot.lane.b32.xlu0 %v2594, 112
    %v2596 = vpop.permute.xlu0 %2595
    %v2598 = vrot.slane %v2588, 5
    %2599 = vrot.lane.b32.xlu0 %v2598, 104
    %v2600 = vpop.permute.xlu0 %2599
    %v2602 = vrot.slane %v2588, 4
    %2603 = vrot.lane.b32.xlu0 %v2602, 96
    %v2604 = vpop.permute.xlu0 %2603
    %v2606 = vrot.slane %v2588, 3
    %2607 = vrot.lane.b32.xlu0 %v2606, 88
    %v2608 = vpop.permute.xlu0 %2607
    %v2610 = vrot.slane %v2588, 2
    %2611 = vrot.lane.b32.xlu0 %v2610, 80
    %v2612 = vpop.permute.xlu0 %2611
    %v2614 = vrot.slane %v2588, 1
    %2615 = vrot.lane.b32.xlu0 %v2614, 72
    %v2616 = vpop.permute.xlu0 %2615
    %v2618 = vsel %vm518, %v2588, %v2592
    %v2619 = vsel %vm520, %v2618, %v2596
    %v2620 = vsel %vm522, %v2619, %v2600
    %v2621 = vsel %vm524, %v2620, %v2604
    %v2622 = vsel %vm526, %v2621, %v2608
    %v2623 = vsel %vm528, %v2622, %v2612
    %v2624 = vsel %vm530, %v2623, %v2616
    %2626 = vrot.lane.b32.xlu0 %v2624, 64
    %v2627 = vpop.permute.xlu0 %2626
    %v2628 = vsel %vm64, %v2627, 0
    %2630 = vmatprep.subr.mxu0 0.0
    %2631 = vmatpush1.msra.mxu0 %v59
    %2632 = vmatprep.subr.mxu0 0.0
    %2633 = vmatpush1.msra.mxu0 0.0
    %2634 = vmatprep.subr.mxu0 0.0
    %2635 = vmatpush1.msra.mxu0 0.0
    %2636 = vmatprep.subr.mxu0 0.0
    %2637 = vmatpush1.msra.mxu0 0.0
    %2638 = vmatprep.subr.mxu0 0.0
    %2639 = vmatpush1.msra.mxu0 0.0
    %2640 = vmatprep.subr.mxu0 0.0
    %2641 = vmatpush1.msra.mxu0 0.0
    %2642 = vmatprep.subr.mxu0 0.0
    %2643 = vmatpush1.msra.mxu0 0.0
    %2644 = vmatprep.subr.mxu0 0.0
    %2645 = vmatpush1.msra.mxu0 0.0
    %2646 = vmatprep.subr.mxu0 0.0
    %2647 = vmatpush1.msra.mxu0 0.0
    %2648 = vmatprep.subr.mxu0 0.0
    %2649 = vmatpush1.msra.mxu0 0.0
    %2650 = vmatprep.subr.mxu0 0.0
    %2651 = vmatpush1.msra.mxu0 0.0
    %2652 = vmatprep.subr.mxu0 0.0
    %2653 = vmatpush1.msra.mxu0 0.0
    %2654 = vmatprep.subr.mxu0 0.0
    %2655 = vmatpush1.msra.mxu0 0.0
    %2656 = vmatprep.subr.mxu0 0.0
    %2657 = vmatpush1.msra.mxu0 0.0
    %2658 = vmatprep.subr.mxu0 0.0
    %2659 = vmatpush1.msra.mxu0 0.0
    %2660 = vmatprep.subr.mxu0 0.0
    %2661 = vmatpush1.msra.mxu0 0.0
    %2662 = vmatprep.subr.mxu0 0.0
    %2663 = vmatpush1.msra.mxu0 0.0
    %2664 = vmatprep.subr.mxu0 0.0
    %2665 = vmatpush1.msra.mxu0 0.0
    %2666 = vmatprep.subr.mxu0 0.0
    %2667 = vmatpush1.msra.mxu0 0.0
    %2668 = vmatprep.subr.mxu0 0.0
    %2669 = vmatpush1.msra.mxu0 0.0
    %2670 = vmatprep.subr.mxu0 0.0
    %2671 = vmatpush1.msra.mxu0 0.0
    %2672 = vmatprep.subr.mxu0 0.0
    %2673 = vmatpush1.msra.mxu0 0.0
    %2674 = vmatprep.subr.mxu0 0.0
    %2675 = vmatpush1.msra.mxu0 0.0
    %2676 = vmatprep.subr.mxu0 0.0
    %2677 = vmatpush1.msra.mxu0 0.0
    %2678 = vmatprep.subr.mxu0 0.0
    %2679 = vmatpush1.msra.mxu0 0.0
    %2680 = vmatprep.subr.mxu0 0.0
    %2681 = vmatpush1.msra.mxu0 0.0
    %2682 = vmatprep.subr.mxu0 0.0
    %2683 = vmatpush1.msra.mxu0 0.0
    %2684 = vmatprep.subr.mxu0 0.0
    %2685 = vmatpush1.msra.mxu0 0.0
    %2686 = vmatprep.subr.mxu0 0.0
    %2687 = vmatpush1.msra.mxu0 0.0
    %2688 = vmatprep.subr.mxu0 0.0
    %2689 = vmatpush1.msra.mxu0 0.0
    %2690 = vmatprep.subr.mxu0 0.0
    %2691 = vmatpush1.msra.mxu0 0.0
    %2692 = vmatprep.subr.mxu0 0.0
    %2693 = vmatpush1.msra.mxu0 0.0
    %2694 = vmatprep.mubr.f32.mxu0 0.0
    %2695 = vmatmul.mubr.f32.gmra.mrb[0].mxu0 %v2628
    %v2696 = vpop.f32.mrb[0].mxu0
    %v2697 = vadd.f32 0.0, %v2696
    %v2698 = vpop.f32.mrb[0].mxu0
    %2699 = vdwg.mxu0
    %v2701 = vsel %vm64, %v2697, 0
    %2703 = vmatprep.subr.mxu0 0.0
    %2704 = vmatpush1.xpose.msra.mxu0 %v2701
    %2705 = vmatprep.subr.mxu0 0.0
    %2706 = vmatpush1.xpose.msra.mxu0 0.0
    %2707 = vmatprep.subr.mxu0 0.0
    %2708 = vmatpush1.xpose.msra.mxu0 0.0
    %2709 = vmatprep.subr.mxu0 0.0
    %2710 = vmatpush1.xpose.msra.mxu0 0.0
    %2711 = vmatprep.subr.mxu0 0.0
    %2712 = vmatpush1.xpose.msra.mxu0 0.0
    %2713 = vmatprep.subr.mxu0 0.0
    %2714 = vmatpush1.xpose.msra.mxu0 0.0
    %2715 = vmatprep.subr.mxu0 0.0
    %2716 = vmatpush1.xpose.msra.mxu0 0.0
    %2717 = vmatprep.subr.mxu0 0.0
    %2718 = vmatpush1.xpose.msra.mxu0 0.0
    %2719 = vmatprep.subr.mxu0 0.0
    %2720 = vmatpush1.xpose.msra.mxu0 0.0
    %2721 = vmatprep.subr.mxu0 0.0
    %2722 = vmatpush1.xpose.msra.mxu0 0.0
    %2723 = vmatprep.subr.mxu0 0.0
    %2724 = vmatpush1.xpose.msra.mxu0 0.0
    %2725 = vmatprep.subr.mxu0 0.0
    %2726 = vmatpush1.xpose.msra.mxu0 0.0
    %2727 = vmatprep.subr.mxu0 0.0
    %2728 = vmatpush1.xpose.msra.mxu0 0.0
    %2729 = vmatprep.subr.mxu0 0.0
    %2730 = vmatpush1.xpose.msra.mxu0 0.0
    %2731 = vmatprep.subr.mxu0 0.0
    %2732 = vmatpush1.xpose.msra.mxu0 0.0
    %2733 = vmatprep.subr.mxu0 0.0
    %2734 = vmatpush1.xpose.msra.mxu0 0.0
    %2735 = vmatprep.subr.mxu0 0.0
    %2736 = vmatpush1.xpose.msra.mxu0 0.0
    %2737 = vmatprep.subr.mxu0 0.0
    %2738 = vmatpush1.xpose.msra.mxu0 0.0
    %2739 = vmatprep.subr.mxu0 0.0
    %2740 = vmatpush1.xpose.msra.mxu0 0.0
    %2741 = vmatprep.subr.mxu0 0.0
    %2742 = vmatpush1.xpose.msra.mxu0 0.0
    %2743 = vmatprep.subr.mxu0 0.0
    %2744 = vmatpush1.xpose.msra.mxu0 0.0
    %2745 = vmatprep.subr.mxu0 0.0
    %2746 = vmatpush1.xpose.msra.mxu0 0.0
    %2747 = vmatprep.subr.mxu0 0.0
    %2748 = vmatpush1.xpose.msra.mxu0 0.0
    %2749 = vmatprep.subr.mxu0 0.0
    %2750 = vmatpush1.xpose.msra.mxu0 0.0
    %2751 = vmatprep.subr.mxu0 0.0
    %2752 = vmatpush1.xpose.msra.mxu0 0.0
    %2753 = vmatprep.subr.mxu0 0.0
    %2754 = vmatpush1.xpose.msra.mxu0 0.0
    %2755 = vmatprep.subr.mxu0 0.0
    %2756 = vmatpush1.xpose.msra.mxu0 0.0
    %2757 = vmatprep.subr.mxu0 0.0
    %2758 = vmatpush1.xpose.msra.mxu0 0.0
    %2759 = vmatprep.subr.mxu0 0.0
    %2760 = vmatpush1.xpose.msra.mxu0 0.0
    %2761 = vmatprep.subr.mxu0 0.0
    %2762 = vmatpush1.xpose.msra.mxu0 0.0
    %2763 = vmatprep.subr.mxu0 0.0
    %2764 = vmatpush1.xpose.msra.mxu0 0.0
    %2765 = vmatprep.subr.mxu0 0.0
    %2766 = vmatpush1.xpose.msra.mxu0 0.0
    %2767 = vmatprep.mubr.f32.mxu0 0.0
    %2768 = vmatmul.mubr.f32.gmra.mrb[0].mxu0 %v608
    %v2769 = vpop.f32.mrb[0].mxu0
    %v2770 = vadd.f32 0.0, %v2769
    %v2771 = vpop.f32.mrb[0].mxu0
    %2772 = vdwg.mxu0
    %2773 = vset.pattern.permute.xlu0 16
    %2774 = vperm.xlu0 %2773, %v2697
    %v2775 = vpop.permute.xlu0 %2774
    %v2777 = vlaneseq
    %v2778 = vshrl.u32 %v2777, 7
    %v2779 = vsub.s32 0, %v2778
    %v2780 = vrot.slane %v2770, %v2779
    %v2781 = vadd.f32 %v2775, %v2780
    %v2782 = vmul.f32 %v2781, 0.01
    %v2783 = vmax.f32 %v2781, %v2782
    %v2784 = vadd.f32 %v2783, %v56
    %v2785 = vsel %vm64, %v2784, -inf
    %2786 = vmax.xlane.f32.xlu0 %v2785
    %v2787 = vpop.xlane.xlu0 %2786
    %v2788 = vsub.f32 %v2784, %v2787
    %v2789 = vmul.f32 %v2788, 1.442695
    %v2790 = vpow.pop %v2789
    %v2791 = vsel %vm64, %v2790, 0.0
    %2792 = vadd.xlane.f32.xlu0 %v2791
    %v2793 = vpop.xlane.xlu0 %2792
    %v2794 = vrcp.pop %v2793
    %v2795 = vmul.f32 %v2790, %v2794
    %v2797 = vsel %vm64, %v2795, 0
    %2799 = vmatprep.subr.mxu0 0.0
    %2800 = vmatpush1.msra.mxu0 %v2697
    %2801 = vmatprep.subr.mxu0 0.0
    %2802 = vmatpush1.msra.mxu0 0.0
    %2803 = vmatprep.subr.mxu0 0.0
    %2804 = vmatpush1.msra.mxu0 0.0
    %2805 = vmatprep.subr.mxu0 0.0
    %2806 = vmatpush1.msra.mxu0 0.0
    %2807 = vmatprep.subr.mxu0 0.0
    %2808 = vmatpush1.msra.mxu0 0.0
    %2809 = vmatprep.subr.mxu0 0.0
    %2810 = vmatpush1.msra.mxu0 0.0
    %2811 = vmatprep.subr.mxu0 0.0
    %2812 = vmatpush1.msra.mxu0 0.0
    %2813 = vmatprep.subr.mxu0 0.0
    %2814 = vmatpush1.msra.mxu0 0.0
    %2815 = vmatprep.subr.mxu0 0.0
    %2816 = vmatpush1.msra.mxu0 0.0
    %2817 = vmatprep.subr.mxu0 0.0
    %2818 = vmatpush1.msra.mxu0 0.0
    %2819 = vmatprep.subr.mxu0 0.0
    %2820 = vmatpush1.msra.mxu0 0.0
    %2821 = vmatprep.subr.mxu0 0.0
    %2822 = vmatpush1.msra.mxu0 0.0
    %2823 = vmatprep.subr.mxu0 0.0
    %2824 = vmatpush1.msra.mxu0 0.0
    %2825 = vmatprep.subr.mxu0 0.0
    %2826 = vmatpush1.msra.mxu0 0.0
    %2827 = vmatprep.subr.mxu0 0.0
    %2828 = vmatpush1.msra.mxu0 0.0
    %2829 = vmatprep.subr.mxu0 0.0
    %2830 = vmatpush1.msra.mxu0 0.0
    %2831 = vmatprep.subr.mxu0 0.0
    %2832 = vmatpush1.msra.mxu0 0.0
    %2833 = vmatprep.subr.mxu0 0.0
    %2834 = vmatpush1.msra.mxu0 0.0
    %2835 = vmatprep.subr.mxu0 0.0
    %2836 = vmatpush1.msra.mxu0 0.0
    %2837 = vmatprep.subr.mxu0 0.0
    %2838 = vmatpush1.msra.mxu0 0.0
    %2839 = vmatprep.subr.mxu0 0.0
    %2840 = vmatpush1.msra.mxu0 0.0
    %2841 = vmatprep.subr.mxu0 0.0
    %2842 = vmatpush1.msra.mxu0 0.0
    %2843 = vmatprep.subr.mxu0 0.0
    %2844 = vmatpush1.msra.mxu0 0.0
    %2845 = vmatprep.subr.mxu0 0.0
    %2846 = vmatpush1.msra.mxu0 0.0
    %2847 = vmatprep.subr.mxu0 0.0
    %2848 = vmatpush1.msra.mxu0 0.0
    %2849 = vmatprep.subr.mxu0 0.0
    %2850 = vmatpush1.msra.mxu0 0.0
    %2851 = vmatprep.subr.mxu0 0.0
    %2852 = vmatpush1.msra.mxu0 0.0
    %2853 = vmatprep.subr.mxu0 0.0
    %2854 = vmatpush1.msra.mxu0 0.0
    %2855 = vmatprep.subr.mxu0 0.0
    %2856 = vmatpush1.msra.mxu0 0.0
    %2857 = vmatprep.subr.mxu0 0.0
    %2858 = vmatpush1.msra.mxu0 0.0
    %2859 = vmatprep.subr.mxu0 0.0
    %2860 = vmatpush1.msra.mxu0 0.0
    %2861 = vmatprep.subr.mxu0 0.0
    %2862 = vmatpush1.msra.mxu0 0.0
    %2863 = vmatprep.mubr.f32.mxu0 0.0
    %2864 = vmatmul.mubr.f32.gmra.mrb[0].mxu0 %v2797
    %v2865 = vpop.f32.mrb[0].mxu0
    %v2866 = vadd.f32 0.0, %v2865
    %v2867 = vpop.f32.mrb[0].mxu0
    %2868 = vdwg.mxu0
    %v2870 = vrot.slane %v2866, 1
    %2871 = vrot.lane.b32.xlu0 %v2870, 8
    %v2872 = vpop.permute.xlu0 %2871
    %v2874 = vrot.slane %v2866, 2
    %2875 = vrot.lane.b32.xlu0 %v2874, 16
    %v2876 = vpop.permute.xlu0 %2875
    %v2878 = vrot.slane %v2866, 3
    %2879 = vrot.lane.b32.xlu0 %v2878, 24
    %v2880 = vpop.permute.xlu0 %2879
    %v2882 = vrot.slane %v2866, 4
    %2883 = vrot.lane.b32.xlu0 %v2882, 32
    %v2884 = vpop.permute.xlu0 %2883
    %v2886 = vrot.slane %v2866, 5
    %2887 = vrot.lane.b32.xlu0 %v2886, 40
    %v2888 = vpop.permute.xlu0 %2887
    %v2890 = vrot.slane %v2866, 6
    %2891 = vrot.lane.b32.xlu0 %v2890, 48
    %v2892 = vpop.permute.xlu0 %2891
    %v2894 = vrot.slane %v2866, 7
    %2895 = vrot.lane.b32.xlu0 %v2894, 56
    %v2896 = vpop.permute.xlu0 %2895
    %v2898 = vsel %vm64, %v2866, %v2872
    %v2899 = vsel %vm340, %v2898, %v2876
    %v2900 = vsel %vm342, %v2899, %v2880
    %v2901 = vsel %vm344, %v2900, %v2884
    %v2902 = vsel %vm346, %v2901, %v2888
    %v2903 = vsel %vm348, %v2902, %v2892
    %v2904 = vsel %vm350, %v2903, %v2896
    %v2905 = vld [vmem:[%s9] sm:$0xff]
    %v2906 = vld [vmem:[%s9 + $0x8] sm:$0xff]
    %v2907 = vld [vmem:[%s9 + $0x10] sm:$0xff]
    %v2908 = vld [vmem:[%s9 + $0x18] sm:$0xff]
    %v2909 = vld [vmem:[%s9 + $0x20] sm:$0xff]
    %v2910 = vld [vmem:[%s9 + $0x28] sm:$0xff]
    %v2911 = vld [vmem:[%s9 + $0x30] sm:$0xff]
    %v2912 = vld [vmem:[%s9 + $0x38] sm:$0xff]
    %v2913 = vld [vmem:[%s10] sm:$0x1]
    %v2915 = vsel %vm352, %v2904, 0
    %2917 = vmatprep.subr.mxu0 0.0
    %2918 = vmatpush1.msra.mxu0 %v2905
    %2919 = vmatprep.subr.mxu0 0.0
    %2920 = vmatpush1.msra.mxu0 %v2906
    %2921 = vmatprep.subr.mxu0 0.0
    %2922 = vmatpush1.msra.mxu0 %v2907
    %2923 = vmatprep.subr.mxu0 0.0
    %2924 = vmatpush1.msra.mxu0 %v2908
    %2925 = vmatprep.subr.mxu0 0.0
    %2926 = vmatpush1.msra.mxu0 %v2909
    %2927 = vmatprep.subr.mxu0 0.0
    %2928 = vmatpush1.msra.mxu0 %v2910
    %2929 = vmatprep.subr.mxu0 0.0
    %2930 = vmatpush1.msra.mxu0 %v2911
    %2931 = vmatprep.subr.mxu0 0.0
    %2932 = vmatpush1.msra.mxu0 %v2912
    %2933 = vmatprep.subr.mxu0 0.0
    %2934 = vmatpush1.msra.mxu0 0.0
    %2935 = vmatprep.subr.mxu0 0.0
    %2936 = vmatpush1.msra.mxu0 0.0
    %2937 = vmatprep.subr.mxu0 0.0
    %2938 = vmatpush1.msra.mxu0 0.0
    %2939 = vmatprep.subr.mxu0 0.0
    %2940 = vmatpush1.msra.mxu0 0.0
    %2941 = vmatprep.subr.mxu0 0.0
    %2942 = vmatpush1.msra.mxu0 0.0
    %2943 = vmatprep.subr.mxu0 0.0
    %2944 = vmatpush1.msra.mxu0 0.0
    %2945 = vmatprep.subr.mxu0 0.0
    %2946 = vmatpush1.msra.mxu0 0.0
    %2947 = vmatprep.subr.mxu0 0.0
    %2948 = vmatpush1.msra.mxu0 0.0
    %2949 = vmatprep.subr.mxu0 0.0
    %2950 = vmatpush1.msra.mxu0 0.0
    %2951 = vmatprep.subr.mxu0 0.0
    %2952 = vmatpush1.msra.mxu0 0.0
    %2953 = vmatprep.subr.mxu0 0.0
    %2954 = vmatpush1.msra.mxu0 0.0
    %2955 = vmatprep.subr.mxu0 0.0
    %2956 = vmatpush1.msra.mxu0 0.0
    %2957 = vmatprep.subr.mxu0 0.0
    %2958 = vmatpush1.msra.mxu0 0.0
    %2959 = vmatprep.subr.mxu0 0.0
    %2960 = vmatpush1.msra.mxu0 0.0
    %2961 = vmatprep.subr.mxu0 0.0
    %2962 = vmatpush1.msra.mxu0 0.0
    %2963 = vmatprep.subr.mxu0 0.0
    %2964 = vmatpush1.msra.mxu0 0.0
    %2965 = vmatprep.subr.mxu0 0.0
    %2966 = vmatpush1.msra.mxu0 0.0
    %2967 = vmatprep.subr.mxu0 0.0
    %2968 = vmatpush1.msra.mxu0 0.0
    %2969 = vmatprep.subr.mxu0 0.0
    %2970 = vmatpush1.msra.mxu0 0.0
    %2971 = vmatprep.subr.mxu0 0.0
    %2972 = vmatpush1.msra.mxu0 0.0
    %2973 = vmatprep.subr.mxu0 0.0
    %2974 = vmatpush1.msra.mxu0 0.0
    %2975 = vmatprep.subr.mxu0 0.0
    %2976 = vmatpush1.msra.mxu0 0.0
    %2977 = vmatprep.subr.mxu0 0.0
    %2978 = vmatpush1.msra.mxu0 0.0
    %2979 = vmatprep.subr.mxu0 0.0
    %2980 = vmatpush1.msra.mxu0 0.0
    %2981 = vmatprep.mubr.f32.mxu0 0.0
    %2982 = vmatmul.mubr.f32.gmra.mrb[0].mxu0 %v2915
    %v2983 = vpop.f32.mrb[0].mxu0
    %v2984 = vadd.f32 %v2913, %v2983
    %v2985 = vpop.f32.mrb[0].mxu0
    %2986 = vdwg.mxu0
    %2988 = vst.msk [vmem:[#allocation5] sm:$0xff] %vm64, %v2627
    %vm2989 = vcmask 253952
    %2990 = vst.msk [vmem:[#allocation6] sm:$0x1] %vm2989, %v2984
    // Predicated region
    $region50: #{_planning_gat_jit.1} parent=1 // pred_check
      _
    $region51: #{_planning_gat_jit.1} parent=1 // pred_check_branch
      %2992 = sbr.rel (0) target = $region53
    $region52: #{_planning_gat_jit.1} parent=1 // pred_region
      %s2994 = ssub.s32 128, 128
      %2995 = vsyncadd [#allocation4], %s2994
      %s2997 = sshll.u32 [#allocation5], 4
      %s2998 = int_to_ptr.vmem [resolvable:$true] %s2997
      %3000 = dma.vmem_to_hbm [thread:$0]  %s2998, 128, %s11, [#allocation4]
    $region53: #{_planning_gat_jit.1} parent=1 // pred_fallthru
      _
    // Predicated region
    $region54: #{_planning_gat_jit.1} parent=1 // pred_check
      _
    $region55: #{_planning_gat_jit.1} parent=1 // pred_check_branch
      %3002 = sbr.rel (0) target = $region57
    $region56: #{_planning_gat_jit.1} parent=1 // pred_region
      %s3004 = ssub.s32 16, 16
      %3005 = vsyncadd [#allocation7], %s3004
      %s3007 = sshll.u32 [#allocation6], 4
      %s3008 = int_to_ptr.vmem [resolvable:$true] %s3007
      %3010 = dma.vmem_to_hbm [thread:$0]  %s3008, 16, %s12, [#allocation7]
    $region57: #{_planning_gat_jit.1} parent=1 // pred_fallthru
      _
    // Predicated region
    $region58: #{_planning_gat_jit.1} parent=1 // pred_check
      _
    $region59: #{_planning_gat_jit.1} parent=1 // pred_check_branch
      %3012 = sbr.rel (0) target = $region61
    $region60: #{_planning_gat_jit.1} parent=1 // pred_region
      %3013 = dma.done [#allocation4], 128
    $region61: #{_planning_gat_jit.1} parent=1 // pred_fallthru
      _
    // Predicated region
    $region62: #{_planning_gat_jit.1} parent=1 // pred_check
      _
    $region63: #{_planning_gat_jit.1} parent=1 // pred_check_branch
      %3015 = sbr.rel (0) target = $region65
    $region64: #{_planning_gat_jit.1} parent=1 // pred_region
      %3016 = dma.done [#allocation7], 16
    $region65: #{_planning_gat_jit.1} parent=1 // pred_fallthru
      _
    %3017 = vsyncpa [#allocation3], 1
    %3018 = vsyncpa [#allocation4], 1
    %3019 = vsyncpa [#allocation7], 1

</llo_original>
